<compile_context>
chip_gen: v7x
topology: tpu7x:2x2x1
jax: 0.10.0
libtpu: 0.0.40
codegen_flags: <defaults>
</compile_context>

<pallas_src>
import jax
import jax.numpy as jnp
from jax.experimental import pallas as pl
from jax.experimental.pallas import tpu as pltpu

NEG_SLOPE = 0.1
TM_MAX = 512            # rows of the im2col matrix per grid step
VMEM_LIMIT = 48 << 20   # < v7x's 64 MiB physical VMEM, > v6e's 32 MiB default


def _round_up(x, m):
    return (x + m - 1) // m * m


def _conv3x3_lrelu_kernel(x_ref, w_ref, b_ref, o_ref):
    """x_ref: (TM, 9*Cin) im2col rows; w_ref: (9*Cin, Cout); b_ref: (1, Cout);
    o_ref: (TM, Cout).  One deep-K MXU matmul + fused bias + LeakyReLU(0.1)."""
    acc = jnp.dot(x_ref[...], w_ref[...], preferred_element_type=jnp.float32)
    acc = acc + b_ref[...]
    o_ref[...] = jnp.where(acc >= 0, acc, NEG_SLOPE * acc).astype(o_ref.dtype)


def conv3x3_lrelu(x_nhwc, w_hwio, b, stride):
    """3x3 conv, padding=1, given stride, fused LeakyReLU(0.1).

    x_nhwc: (N, H, W, Cin), w_hwio: (3, 3, Cin, Cout), b: (Cout,)
    returns: (N, Ho, Wo, Cout)
    """
    n, h, w, cin = x_nhwc.shape
    cout = w_hwio.shape[-1]
    ho = (h + 2 - 3) // stride + 1
    wo = (w + 2 - 3) // stride + 1
    m = n * ho * wo
    k = 9 * cin

    xp = jnp.pad(x_nhwc, ((0, 0), (1, 1), (1, 1), (0, 0)))

    # Glue (pure data movement, no FLOPs): pack the 9 strided taps into one
    # lane-dense (M, 9*Cin) matrix whose column order (kh, kw, cin) matches
    # w_hwio.reshape(9*Cin, Cout).
    cols = []
    for kh in range(3):
        for kw in range(3):
            t = jax.lax.slice(
                xp,
                (0, kh, kw, 0),
                (n, kh + (ho - 1) * stride + 1, kw + (wo - 1) * stride + 1, cin),
                (1, stride, stride, 1),
            )
            cols.append(t.reshape(m, cin))
    patches = jnp.concatenate(cols, axis=1)        # (M, 9*Cin)
    wf = w_hwio.reshape(k, cout)                   # (9*Cin, Cout)
    bf = b.reshape(1, cout)                        # (1, Cout)

    # Tile the M axis; pad to a multiple of the tile so block shapes divide.
    tm = min(TM_MAX, _round_up(m, 8))
    m_pad = _round_up(m, tm)
    if m_pad != m:
        patches = jnp.pad(patches, ((0, m_pad - m), (0, 0)))

    grid_spec = pltpu.PrefetchScalarGridSpec(
        num_scalar_prefetch=0,
        grid=(m_pad // tm,),
        in_specs=[
            pl.BlockSpec((tm, k), lambda i: (i, 0)),     # pipelined row tiles
            pl.BlockSpec((k, cout), lambda i: (0, 0)),   # weights stay resident
            pl.BlockSpec((1, cout), lambda i: (0, 0)),   # bias stays resident
        ],
        out_specs=pl.BlockSpec((tm, cout), lambda i: (i, 0)),
    )

    out = pl.pallas_call(
        _conv3x3_lrelu_kernel,
        out_shape=jax.ShapeDtypeStruct((m_pad, cout), x_nhwc.dtype),
        grid_spec=grid_spec,
        compiler_params=pltpu.CompilerParams(
            dimension_semantics=("parallel",),   # shard M tiles over v7x's 2 TCs
            vmem_limit_bytes=VMEM_LIMIT,
        ),
    )(patches, wf, bf)

    if m_pad != m:
        out = out[:m]
    return out.reshape(n, ho, wo, cout)


# ---------------------------------------------------------------------------
# Parameter construction (deterministic synthetic init).
# ---------------------------------------------------------------------------

# (cin, cout, stride) for every conv layer, matching FeatPyramid.__init__.
_STAGE_CONFIGS = [
    # conv_stage0
    [(3, 24, 1), (24, 24, 1), (24, 24, 1), (24, 24, 1)],
    # conv_stage1
    [(24, 48, 2), (48, 48, 1), (48, 48, 1), (48, 48, 1)],
    # conv_stage2
    [(48, 96, 2), (96, 96, 1), (96, 96, 1), (96, 96, 1)],
]


def init_feat_pyramid_params(key):
    params = []
    for stage_cfg in _STAGE_CONFIGS:
        stage_params = []
        for cin, cout, stride in stage_cfg:
            key, kw, kb = jax.random.split(key, 3)
            fan_in = cin * 9
            scale = 1.0 / jnp.sqrt(fan_in)
            w = jax.random.uniform(kw, (3, 3, cin, cout), jnp.float32,
                                   minval=-scale, maxval=scale)
            b = jax.random.uniform(kb, (cout,), jnp.float32,
                                   minval=-scale, maxval=scale)
            stage_params.append((w, b, stride))
        params.append(stage_params)
    return params


def feat_pyramid_forward(params, img_nchw):
    """Forward pass of FeatPyramid.  img_nchw: (N, 3, H, W) -> [C0, C1, C2] NCHW."""
    x = jnp.transpose(img_nchw, (0, 2, 3, 1))  # NCHW -> NHWC
    feats = []
    for stage_params in params:
        for w, b, stride in stage_params:
            x = conv3x3_lrelu(x, w, b, stride)
        feats.append(jnp.transpose(x, (0, 3, 1, 2)))  # NHWC -> NCHW
    return feats


# ---------------------------------------------------------------------------
# Pure-JAX reference (for correctness check).
# ---------------------------------------------------------------------------

def _ref_forward(params, img_nchw):
    x = jnp.transpose(img_nchw, (0, 2, 3, 1))
    feats = []
    for stage_params in params:
        for w, b, stride in stage_params:
            y = jax.lax.conv_general_dilated(
                x, w, window_strides=(stride, stride),
                padding=((1, 1), (1, 1)),
                dimension_numbers=("NHWC", "HWIO", "NHWC"),
            ) + b
            x = jnp.where(y >= 0, y, NEG_SLOPE * y)
        feats.append(jnp.transpose(x, (0, 3, 1, 2)))
    return feats


if __name__ == "__main__":
    key = jax.random.PRNGKey(0)
    k_param, k_img = jax.random.split(key)

    params = init_feat_pyramid_params(k_param)
    img = jax.random.normal(k_img, (2, 3, 16, 16), jnp.float32)  # NCHW

    fwd = jax.jit(lambda im: feat_pyramid_forward(params, im))
    c0, c1, c2 = fwd(img)
    jax.block_until_ready((c0, c1, c2))

    assert c0.shape == (2, 24, 16, 16), c0.shape
    assert c1.shape == (2, 48, 8, 8), c1.shape
    assert c2.shape == (2, 96, 4, 4), c2.shape

    r0, r1, r2 = _ref_forward(params, img)
    for got, want in ((c0, r0), (c1, r1), (c2, r2)):
        assert jnp.allclose(got, want, atol=1e-3, rtol=1e-3), \
            float(jnp.max(jnp.abs(got - want)))

    print("KERNEL_OK")
</pallas_src>

<mosaic_0001>
module attributes {stable_mosaic.version = 11 : i64} {
  func.func @_conv3x3_lrelu_kernel(%arg0: i32, %arg1: memref<512x27xf32, #tpu.memory_space<vmem>>, %arg2: memref<27x24xf32, #tpu.memory_space<vmem>>, %arg3: memref<1x24xf32, #tpu.memory_space<vmem>>, %arg4: memref<512x24xf32, #tpu.memory_space<vmem>>) attributes {dimension_semantics = [#tpu.dimension_semantics<parallel>], iteration_bounds = array<i64: 1>, scalar_prefetch = 0 : i64, scratch_operands = 0 : i64, tpu.core_type = #tpu.core_type<tc>, window_params = [{transform_indices = @transform_0, window_bounds = array<i64: 512, 27>}, {pipeline_mode = #tpu.pipeline_mode<synchronous>, transform_indices = @transform_1, window_bounds = array<i64: 27, 24>}, {pipeline_mode = #tpu.pipeline_mode<synchronous>, transform_indices = @transform_2, window_bounds = array<i64: 1, 24>}, {transform_indices = @transform_3, window_bounds = array<i64: 512, 24>}]} {
    %c0 = arith.constant 0 : index
    %c0_0 = arith.constant 0 : index
    %0 = vector.load %arg1[%c0, %c0_0] : memref<512x27xf32, #tpu.memory_space<vmem>>, vector<512x27xf32>
    %c0_1 = arith.constant 0 : index
    %c0_2 = arith.constant 0 : index
    %1 = vector.load %arg2[%c0_1, %c0_2] : memref<27x24xf32, #tpu.memory_space<vmem>>, vector<27x24xf32>
    %cst = arith.constant dense<0.000000e+00> : vector<512x24xf32>
    %2 = tpu.matmul %0, %1, %cst {dimension_numbers = #tpu.dot_dimension_numbers<[1], [0], [0], [1], [0, 0, 1, 1], [], []>} : vector<512x27xf32>, vector<27x24xf32>, vector<512x24xf32> -> vector<512x24xf32>
    %c0_3 = arith.constant 0 : index
    %c0_4 = arith.constant 0 : index
    %3 = vector.load %arg3[%c0_3, %c0_4] : memref<1x24xf32, #tpu.memory_space<vmem>>, vector<1x24xf32>
    %4 = vector.broadcast %3 : vector<1x24xf32> to vector<512x24xf32>
    %5 = arith.addf %2, %4 : vector<512x24xf32>
    %cst_5 = arith.constant 0.000000e+00 : f32
    %6 = vector.broadcast %cst_5 : f32 to vector<512x24xf32>
    %7 = arith.cmpf oge, %5, %6 : vector<512x24xf32>
    %cst_6 = arith.constant 1.000000e-01 : f32
    %8 = vector.broadcast %cst_6 : f32 to vector<512x24xf32>
    %9 = arith.mulf %8, %5 : vector<512x24xf32>
    %10 = arith.select %7, %5, %9 : vector<512x24xi1>, vector<512x24xf32>
    %c0_7 = arith.constant 0 : index
    %c0_8 = arith.constant 0 : index
    %11 = vector.load %arg4[%c0_7, %c0_8] : memref<512x24xf32, #tpu.memory_space<vmem>>, vector<512x24xf32>
    tpu.vector_store %arg4[%c0_7, %c0_8], %10 {strides = array<i32>} : memref<512x24xf32, #tpu.memory_space<vmem>>, vector<512x24xf32>,
    return
  }
  func.func @transform_0(%arg0: i32) -> (i32, i32) {
    %c0_i32 = arith.constant 0 : i32
    %c0_i32_0 = arith.constant 0 : i32
    return %arg0, %c0_i32 : i32, i32
  }
  func.func @transform_1(%arg0: i32) -> (i32, i32) {
    %c0_i32 = arith.constant 0 : i32
    %c0_i32_0 = arith.constant 0 : i32
    %c0_i32_1 = arith.constant 0 : i32
    return %c0_i32, %c0_i32_0 : i32, i32
  }
  func.func @transform_2(%arg0: i32) -> (i32, i32) {
    %c0_i32 = arith.constant 0 : i32
    %c0_i32_0 = arith.constant 0 : i32
    %c0_i32_1 = arith.constant 0 : i32
    return %c0_i32, %c0_i32_0 : i32, i32
  }
  func.func @transform_3(%arg0: i32) -> (i32, i32) {
    %c0_i32 = arith.constant 0 : i32
    %c0_i32_0 = arith.constant 0 : i32
    return %arg0, %c0_i32 : i32, i32
  }
}

module attributes {stable_mosaic.version = 11 : i64} {
  func.func @_conv3x3_lrelu_kernel(%arg0: i32, %arg1: memref<512x216xf32, #tpu.memory_space<vmem>>, %arg2: memref<216x24xf32, #tpu.memory_space<vmem>>, %arg3: memref<1x24xf32, #tpu.memory_space<vmem>>, %arg4: memref<512x24xf32, #tpu.memory_space<vmem>>) attributes {dimension_semantics = [#tpu.dimension_semantics<parallel>], iteration_bounds = array<i64: 1>, scalar_prefetch = 0 : i64, scratch_operands = 0 : i64, tpu.core_type = #tpu.core_type<tc>, window_params = [{transform_indices = @transform_0, window_bounds = array<i64: 512, 216>}, {pipeline_mode = #tpu.pipeline_mode<synchronous>, transform_indices = @transform_1, window_bounds = array<i64: 216, 24>}, {pipeline_mode = #tpu.pipeline_mode<synchronous>, transform_indices = @transform_2, window_bounds = array<i64: 1, 24>}, {transform_indices = @transform_3, window_bounds = array<i64: 512, 24>}]} {
    %c0 = arith.constant 0 : index
    %c0_0 = arith.constant 0 : index
    %0 = vector.load %arg1[%c0, %c0_0] : memref<512x216xf32, #tpu.memory_space<vmem>>, vector<512x216xf32>
    %c0_1 = arith.constant 0 : index
    %c0_2 = arith.constant 0 : index
    %1 = vector.load %arg2[%c0_1, %c0_2] : memref<216x24xf32, #tpu.memory_space<vmem>>, vector<216x24xf32>
    %cst = arith.constant dense<0.000000e+00> : vector<512x24xf32>
    %2 = tpu.matmul %0, %1, %cst {dimension_numbers = #tpu.dot_dimension_numbers<[1], [0], [0], [1], [0, 0, 1, 1], [], []>} : vector<512x216xf32>, vector<216x24xf32>, vector<512x24xf32> -> vector<512x24xf32>
    %c0_3 = arith.constant 0 : index
    %c0_4 = arith.constant 0 : index
    %3 = vector.load %arg3[%c0_3, %c0_4] : memref<1x24xf32, #tpu.memory_space<vmem>>, vector<1x24xf32>
    %4 = vector.broadcast %3 : vector<1x24xf32> to vector<512x24xf32>
    %5 = arith.addf %2, %4 : vector<512x24xf32>
    %cst_5 = arith.constant 0.000000e+00 : f32
    %6 = vector.broadcast %cst_5 : f32 to vector<512x24xf32>
    %7 = arith.cmpf oge, %5, %6 : vector<512x24xf32>
    %cst_6 = arith.constant 1.000000e-01 : f32
    %8 = vector.broadcast %cst_6 : f32 to vector<512x24xf32>
    %9 = arith.mulf %8, %5 : vector<512x24xf32>
    %10 = arith.select %7, %5, %9 : vector<512x24xi1>, vector<512x24xf32>
    %c0_7 = arith.constant 0 : index
    %c0_8 = arith.constant 0 : index
    %11 = vector.load %arg4[%c0_7, %c0_8] : memref<512x24xf32, #tpu.memory_space<vmem>>, vector<512x24xf32>
    tpu.vector_store %arg4[%c0_7, %c0_8], %10 {strides = array<i32>} : memref<512x24xf32, #tpu.memory_space<vmem>>, vector<512x24xf32>,
    return
  }
  func.func @transform_0(%arg0: i32) -> (i32, i32) {
    %c0_i32 = arith.constant 0 : i32
    %c0_i32_0 = arith.constant 0 : i32
    return %arg0, %c0_i32 : i32, i32
  }
  func.func @transform_1(%arg0: i32) -> (i32, i32) {
    %c0_i32 = arith.constant 0 : i32
    %c0_i32_0 = arith.constant 0 : i32
    %c0_i32_1 = arith.constant 0 : i32
    return %c0_i32, %c0_i32_0 : i32, i32
  }
  func.func @transform_2(%arg0: i32) -> (i32, i32) {
    %c0_i32 = arith.constant 0 : i32
    %c0_i32_0 = arith.constant 0 : i32
    %c0_i32_1 = arith.constant 0 : i32
    return %c0_i32, %c0_i32_0 : i32, i32
  }
  func.func @transform_3(%arg0: i32) -> (i32, i32) {
    %c0_i32 = arith.constant 0 : i32
    %c0_i32_0 = arith.constant 0 : i32
    return %arg0, %c0_i32 : i32, i32
  }
}

module attributes {stable_mosaic.version = 11 : i64} {
  func.func @_conv3x3_lrelu_kernel(%arg0: i32, %arg1: memref<128x216xf32, #tpu.memory_space<vmem>>, %arg2: memref<216x48xf32, #tpu.memory_space<vmem>>, %arg3: memref<1x48xf32, #tpu.memory_space<vmem>>, %arg4: memref<128x48xf32, #tpu.memory_space<vmem>>) attributes {dimension_semantics = [#tpu.dimension_semantics<parallel>], iteration_bounds = array<i64: 1>, scalar_prefetch = 0 : i64, scratch_operands = 0 : i64, tpu.core_type = #tpu.core_type<tc>, window_params = [{transform_indices = @transform_0, window_bounds = array<i64: 128, 216>}, {pipeline_mode = #tpu.pipeline_mode<synchronous>, transform_indices = @transform_1, window_bounds = array<i64: 216, 48>}, {pipeline_mode = #tpu.pipeline_mode<synchronous>, transform_indices = @transform_2, window_bounds = array<i64: 1, 48>}, {transform_indices = @transform_3, window_bounds = array<i64: 128, 48>}]} {
    %c0 = arith.constant 0 : index
    %c0_0 = arith.constant 0 : index
    %0 = vector.load %arg1[%c0, %c0_0] : memref<128x216xf32, #tpu.memory_space<vmem>>, vector<128x216xf32>
    %c0_1 = arith.constant 0 : index
    %c0_2 = arith.constant 0 : index
    %1 = vector.load %arg2[%c0_1, %c0_2] : memref<216x48xf32, #tpu.memory_space<vmem>>, vector<216x48xf32>
    %cst = arith.constant dense<0.000000e+00> : vector<128x48xf32>
    %2 = tpu.matmul %0, %1, %cst {dimension_numbers = #tpu.dot_dimension_numbers<[1], [0], [0], [1], [0, 0, 1, 1], [], []>} : vector<128x216xf32>, vector<216x48xf32>, vector<128x48xf32> -> vector<128x48xf32>
    %c0_3 = arith.constant 0 : index
    %c0_4 = arith.constant 0 : index
    %3 = vector.load %arg3[%c0_3, %c0_4] : memref<1x48xf32, #tpu.memory_space<vmem>>, vector<1x48xf32>
    %4 = vector.broadcast %3 : vector<1x48xf32> to vector<128x48xf32>
    %5 = arith.addf %2, %4 : vector<128x48xf32>
    %cst_5 = arith.constant 0.000000e+00 : f32
    %6 = vector.broadcast %cst_5 : f32 to vector<128x48xf32>
    %7 = arith.cmpf oge, %5, %6 : vector<128x48xf32>
    %cst_6 = arith.constant 1.000000e-01 : f32
    %8 = vector.broadcast %cst_6 : f32 to vector<128x48xf32>
    %9 = arith.mulf %8, %5 : vector<128x48xf32>
    %10 = arith.select %7, %5, %9 : vector<128x48xi1>, vector<128x48xf32>
    %c0_7 = arith.constant 0 : index
    %c0_8 = arith.constant 0 : index
    %11 = vector.load %arg4[%c0_7, %c0_8] : memref<128x48xf32, #tpu.memory_space<vmem>>, vector<128x48xf32>
    tpu.vector_store %arg4[%c0_7, %c0_8], %10 {strides = array<i32>} : memref<128x48xf32, #tpu.memory_space<vmem>>, vector<128x48xf32>,
    return
  }
  func.func @transform_0(%arg0: i32) -> (i32, i32) {
    %c0_i32 = arith.constant 0 : i32
    %c0_i32_0 = arith.constant 0 : i32
    return %arg0, %c0_i32 : i32, i32
  }
  func.func @transform_1(%arg0: i32) -> (i32, i32) {
    %c0_i32 = arith.constant 0 : i32
    %c0_i32_0 = arith.constant 0 : i32
    %c0_i32_1 = arith.constant 0 : i32
    return %c0_i32, %c0_i32_0 : i32, i32
  }
  func.func @transform_2(%arg0: i32) -> (i32, i32) {
    %c0_i32 = arith.constant 0 : i32
    %c0_i32_0 = arith.constant 0 : i32
    %c0_i32_1 = arith.constant 0 : i32
    return %c0_i32, %c0_i32_0 : i32, i32
  }
  func.func @transform_3(%arg0: i32) -> (i32, i32) {
    %c0_i32 = arith.constant 0 : i32
    %c0_i32_0 = arith.constant 0 : i32
    return %arg0, %c0_i32 : i32, i32
  }
}

module attributes {stable_mosaic.version = 11 : i64} {
  func.func @_conv3x3_lrelu_kernel(%arg0: i32, %arg1: memref<128x432xf32, #tpu.memory_space<vmem>>, %arg2: memref<432x48xf32, #tpu.memory_space<vmem>>, %arg3: memref<1x48xf32, #tpu.memory_space<vmem>>, %arg4: memref<128x48xf32, #tpu.memory_space<vmem>>) attributes {dimension_semantics = [#tpu.dimension_semantics<parallel>], iteration_bounds = array<i64: 1>, scalar_prefetch = 0 : i64, scratch_operands = 0 : i64, tpu.core_type = #tpu.core_type<tc>, window_params = [{transform_indices = @transform_0, window_bounds = array<i64: 128, 432>}, {pipeline_mode = #tpu.pipeline_mode<synchronous>, transform_indices = @transform_1, window_bounds = array<i64: 432, 48>}, {pipeline_mode = #tpu.pipeline_mode<synchronous>, transform_indices = @transform_2, window_bounds = array<i64: 1, 48>}, {transform_indices = @transform_3, window_bounds = array<i64: 128, 48>}]} {
    %c0 = arith.constant 0 : index
    %c0_0 = arith.constant 0 : index
    %0 = vector.load %arg1[%c0, %c0_0] : memref<128x432xf32, #tpu.memory_space<vmem>>, vector<128x432xf32>
    %c0_1 = arith.constant 0 : index
    %c0_2 = arith.constant 0 : index
    %1 = vector.load %arg2[%c0_1, %c0_2] : memref<432x48xf32, #tpu.memory_space<vmem>>, vector<432x48xf32>
    %cst = arith.constant dense<0.000000e+00> : vector<128x48xf32>
    %2 = tpu.matmul %0, %1, %cst {dimension_numbers = #tpu.dot_dimension_numbers<[1], [0], [0], [1], [0, 0, 1, 1], [], []>} : vector<128x432xf32>, vector<432x48xf32>, vector<128x48xf32> -> vector<128x48xf32>
    %c0_3 = arith.constant 0 : index
    %c0_4 = arith.constant 0 : index
    %3 = vector.load %arg3[%c0_3, %c0_4] : memref<1x48xf32, #tpu.memory_space<vmem>>, vector<1x48xf32>
    %4 = vector.broadcast %3 : vector<1x48xf32> to vector<128x48xf32>
    %5 = arith.addf %2, %4 : vector<128x48xf32>
    %cst_5 = arith.constant 0.000000e+00 : f32
    %6 = vector.broadcast %cst_5 : f32 to vector<128x48xf32>
    %7 = arith.cmpf oge, %5, %6 : vector<128x48xf32>
    %cst_6 = arith.constant 1.000000e-01 : f32
    %8 = vector.broadcast %cst_6 : f32 to vector<128x48xf32>
    %9 = arith.mulf %8, %5 : vector<128x48xf32>
    %10 = arith.select %7, %5, %9 : vector<128x48xi1>, vector<128x48xf32>
    %c0_7 = arith.constant 0 : index
    %c0_8 = arith.constant 0 : index
    %11 = vector.load %arg4[%c0_7, %c0_8] : memref<128x48xf32, #tpu.memory_space<vmem>>, vector<128x48xf32>
    tpu.vector_store %arg4[%c0_7, %c0_8], %10 {strides = array<i32>} : memref<128x48xf32, #tpu.memory_space<vmem>>, vector<128x48xf32>,
    return
  }
  func.func @transform_0(%arg0: i32) -> (i32, i32) {
    %c0_i32 = arith.constant 0 : i32
    %c0_i32_0 = arith.constant 0 : i32
    return %arg0, %c0_i32 : i32, i32
  }
  func.func @transform_1(%arg0: i32) -> (i32, i32) {
    %c0_i32 = arith.constant 0 : i32
    %c0_i32_0 = arith.constant 0 : i32
    %c0_i32_1 = arith.constant 0 : i32
    return %c0_i32, %c0_i32_0 : i32, i32
  }
  func.func @transform_2(%arg0: i32) -> (i32, i32) {
    %c0_i32 = arith.constant 0 : i32
    %c0_i32_0 = arith.constant 0 : i32
    %c0_i32_1 = arith.constant 0 : i32
    return %c0_i32, %c0_i32_0 : i32, i32
  }
  func.func @transform_3(%arg0: i32) -> (i32, i32) {
    %c0_i32 = arith.constant 0 : i32
    %c0_i32_0 = arith.constant 0 : i32
    return %arg0, %c0_i32 : i32, i32
  }
}

module attributes {stable_mosaic.version = 11 : i64} {
  func.func @_conv3x3_lrelu_kernel(%arg0: i32, %arg1: memref<32x432xf32, #tpu.memory_space<vmem>>, %arg2: memref<432x96xf32, #tpu.memory_space<vmem>>, %arg3: memref<1x96xf32, #tpu.memory_space<vmem>>, %arg4: memref<32x96xf32, #tpu.memory_space<vmem>>) attributes {dimension_semantics = [#tpu.dimension_semantics<parallel>], iteration_bounds = array<i64: 1>, scalar_prefetch = 0 : i64, scratch_operands = 0 : i64, tpu.core_type = #tpu.core_type<tc>, window_params = [{transform_indices = @transform_0, window_bounds = array<i64: 32, 432>}, {pipeline_mode = #tpu.pipeline_mode<synchronous>, transform_indices = @transform_1, window_bounds = array<i64: 432, 96>}, {pipeline_mode = #tpu.pipeline_mode<synchronous>, transform_indices = @transform_2, window_bounds = array<i64: 1, 96>}, {transform_indices = @transform_3, window_bounds = array<i64: 32, 96>}]} {
    %c0 = arith.constant 0 : index
    %c0_0 = arith.constant 0 : index
    %0 = vector.load %arg1[%c0, %c0_0] : memref<32x432xf32, #tpu.memory_space<vmem>>, vector<32x432xf32>
    %c0_1 = arith.constant 0 : index
    %c0_2 = arith.constant 0 : index
    %1 = vector.load %arg2[%c0_1, %c0_2] : memref<432x96xf32, #tpu.memory_space<vmem>>, vector<432x96xf32>
    %cst = arith.constant dense<0.000000e+00> : vector<32x96xf32>
    %2 = tpu.matmul %0, %1, %cst {dimension_numbers = #tpu.dot_dimension_numbers<[1], [0], [0], [1], [0, 0, 1, 1], [], []>} : vector<32x432xf32>, vector<432x96xf32>, vector<32x96xf32> -> vector<32x96xf32>
    %c0_3 = arith.constant 0 : index
    %c0_4 = arith.constant 0 : index
    %3 = vector.load %arg3[%c0_3, %c0_4] : memref<1x96xf32, #tpu.memory_space<vmem>>, vector<1x96xf32>
    %4 = vector.broadcast %3 : vector<1x96xf32> to vector<32x96xf32>
    %5 = arith.addf %2, %4 : vector<32x96xf32>
    %cst_5 = arith.constant 0.000000e+00 : f32
    %6 = vector.broadcast %cst_5 : f32 to vector<32x96xf32>
    %7 = arith.cmpf oge, %5, %6 : vector<32x96xf32>
    %cst_6 = arith.constant 1.000000e-01 : f32
    %8 = vector.broadcast %cst_6 : f32 to vector<32x96xf32>
    %9 = arith.mulf %8, %5 : vector<32x96xf32>
    %10 = arith.select %7, %5, %9 : vector<32x96xi1>, vector<32x96xf32>
    %c0_7 = arith.constant 0 : index
    %c0_8 = arith.constant 0 : index
    %11 = vector.load %arg4[%c0_7, %c0_8] : memref<32x96xf32, #tpu.memory_space<vmem>>, vector<32x96xf32>
    tpu.vector_store %arg4[%c0_7, %c0_8], %10 {strides = array<i32>} : memref<32x96xf32, #tpu.memory_space<vmem>>, vector<32x96xf32>,
    return
  }
  func.func @transform_0(%arg0: i32) -> (i32, i32) {
    %c0_i32 = arith.constant 0 : i32
    %c0_i32_0 = arith.constant 0 : i32
    return %arg0, %c0_i32 : i32, i32
  }
  func.func @transform_1(%arg0: i32) -> (i32, i32) {
    %c0_i32 = arith.constant 0 : i32
    %c0_i32_0 = arith.constant 0 : i32
    %c0_i32_1 = arith.constant 0 : i32
    return %c0_i32, %c0_i32_0 : i32, i32
  }
  func.func @transform_2(%arg0: i32) -> (i32, i32) {
    %c0_i32 = arith.constant 0 : i32
    %c0_i32_0 = arith.constant 0 : i32
    %c0_i32_1 = arith.constant 0 : i32
    return %c0_i32, %c0_i32_0 : i32, i32
  }
  func.func @transform_3(%arg0: i32) -> (i32, i32) {
    %c0_i32 = arith.constant 0 : i32
    %c0_i32_0 = arith.constant 0 : i32
    return %arg0, %c0_i32 : i32, i32
  }
}

module attributes {stable_mosaic.version = 11 : i64} {
  func.func @_conv3x3_lrelu_kernel(%arg0: i32, %arg1: memref<32x864xf32, #tpu.memory_space<vmem>>, %arg2: memref<864x96xf32, #tpu.memory_space<vmem>>, %arg3: memref<1x96xf32, #tpu.memory_space<vmem>>, %arg4: memref<32x96xf32, #tpu.memory_space<vmem>>) attributes {dimension_semantics = [#tpu.dimension_semantics<parallel>], iteration_bounds = array<i64: 1>, scalar_prefetch = 0 : i64, scratch_operands = 0 : i64, tpu.core_type = #tpu.core_type<tc>, window_params = [{transform_indices = @transform_0, window_bounds = array<i64: 32, 864>}, {pipeline_mode = #tpu.pipeline_mode<synchronous>, transform_indices = @transform_1, window_bounds = array<i64: 864, 96>}, {pipeline_mode = #tpu.pipeline_mode<synchronous>, transform_indices = @transform_2, window_bounds = array<i64: 1, 96>}, {transform_indices = @transform_3, window_bounds = array<i64: 32, 96>}]} {
    %c0 = arith.constant 0 : index
    %c0_0 = arith.constant 0 : index
    %0 = vector.load %arg1[%c0, %c0_0] : memref<32x864xf32, #tpu.memory_space<vmem>>, vector<32x864xf32>
    %c0_1 = arith.constant 0 : index
    %c0_2 = arith.constant 0 : index
    %1 = vector.load %arg2[%c0_1, %c0_2] : memref<864x96xf32, #tpu.memory_space<vmem>>, vector<864x96xf32>
    %cst = arith.constant dense<0.000000e+00> : vector<32x96xf32>
    %2 = tpu.matmul %0, %1, %cst {dimension_numbers = #tpu.dot_dimension_numbers<[1], [0], [0], [1], [0, 0, 1, 1], [], []>} : vector<32x864xf32>, vector<864x96xf32>, vector<32x96xf32> -> vector<32x96xf32>
    %c0_3 = arith.constant 0 : index
    %c0_4 = arith.constant 0 : index
    %3 = vector.load %arg3[%c0_3, %c0_4] : memref<1x96xf32, #tpu.memory_space<vmem>>, vector<1x96xf32>
    %4 = vector.broadcast %3 : vector<1x96xf32> to vector<32x96xf32>
    %5 = arith.addf %2, %4 : vector<32x96xf32>
    %cst_5 = arith.constant 0.000000e+00 : f32
    %6 = vector.broadcast %cst_5 : f32 to vector<32x96xf32>
    %7 = arith.cmpf oge, %5, %6 : vector<32x96xf32>
    %cst_6 = arith.constant 1.000000e-01 : f32
    %8 = vector.broadcast %cst_6 : f32 to vector<32x96xf32>
    %9 = arith.mulf %8, %5 : vector<32x96xf32>
    %10 = arith.select %7, %5, %9 : vector<32x96xi1>, vector<32x96xf32>
    %c0_7 = arith.constant 0 : index
    %c0_8 = arith.constant 0 : index
    %11 = vector.load %arg4[%c0_7, %c0_8] : memref<32x96xf32, #tpu.memory_space<vmem>>, vector<32x96xf32>
    tpu.vector_store %arg4[%c0_7, %c0_8], %10 {strides = array<i32>} : memref<32x96xf32, #tpu.memory_space<vmem>>, vector<32x96xf32>,
    return
  }
  func.func @transform_0(%arg0: i32) -> (i32, i32) {
    %c0_i32 = arith.constant 0 : i32
    %c0_i32_0 = arith.constant 0 : i32
    return %arg0, %c0_i32 : i32, i32
  }
  func.func @transform_1(%arg0: i32) -> (i32, i32) {
    %c0_i32 = arith.constant 0 : i32
    %c0_i32_0 = arith.constant 0 : i32
    %c0_i32_1 = arith.constant 0 : i32
    return %c0_i32, %c0_i32_0 : i32, i32
  }
  func.func @transform_2(%arg0: i32) -> (i32, i32) {
    %c0_i32 = arith.constant 0 : i32
    %c0_i32_0 = arith.constant 0 : i32
    %c0_i32_1 = arith.constant 0 : i32
    return %c0_i32, %c0_i32_0 : i32, i32
  }
  func.func @transform_3(%arg0: i32) -> (i32, i32) {
    %c0_i32 = arith.constant 0 : i32
    %c0_i32_0 = arith.constant 0 : i32
    return %arg0, %c0_i32 : i32, i32
  }
}

module attributes {stable_mosaic.version = 11 : i64} {
  func.func @_conv3x3_lrelu_kernel(%arg0: i32, %arg1: memref<32x864xf32, #tpu.memory_space<vmem>>, %arg2: memref<864x96xf32, #tpu.memory_space<vmem>>, %arg3: memref<1x96xf32, #tpu.memory_space<vmem>>, %arg4: memref<32x96xf32, #tpu.memory_space<vmem>>) attributes {dimension_semantics = [#tpu.dimension_semantics<parallel>], iteration_bounds = array<i64: 1>, scalar_prefetch = 0 : i64, scratch_operands = 0 : i64, tpu.core_type = #tpu.core_type<tc>, window_params = [{transform_indices = @transform_0, window_bounds = array<i64: 32, 864>}, {pipeline_mode = #tpu.pipeline_mode<synchronous>, transform_indices = @transform_1, window_bounds = array<i64: 864, 96>}, {pipeline_mode = #tpu.pipeline_mode<synchronous>, transform_indices = @transform_2, window_bounds = array<i64: 1, 96>}, {transform_indices = @transform_3, window_bounds = array<i64: 32, 96>}]} {
    %c0 = arith.constant 0 : index
    %c0_0 = arith.constant 0 : index
    %0 = vector.load %arg1[%c0, %c0_0] : memref<32x864xf32, #tpu.memory_space<vmem>>, vector<32x864xf32>
    %c0_1 = arith.constant 0 : index
    %c0_2 = arith.constant 0 : index
    %1 = vector.load %arg2[%c0_1, %c0_2] : memref<864x96xf32, #tpu.memory_space<vmem>>, vector<864x96xf32>
    %cst = arith.constant dense<0.000000e+00> : vector<32x96xf32>
    %2 = tpu.matmul %0, %1, %cst {dimension_numbers = #tpu.dot_dimension_numbers<[1], [0], [0], [1], [0, 0, 1, 1], [], []>} : vector<32x864xf32>, vector<864x96xf32>, vector<32x96xf32> -> vector<32x96xf32>
    %c0_3 = arith.constant 0 : index
    %c0_4 = arith.constant 0 : index
    %3 = vector.load %arg3[%c0_3, %c0_4] : memref<1x96xf32, #tpu.memory_space<vmem>>, vector<1x96xf32>
    %4 = vector.broadcast %3 : vector<1x96xf32> to vector<32x96xf32>
    %5 = arith.addf %2, %4 : vector<32x96xf32>
    %cst_5 = arith.constant 0.000000e+00 : f32
    %6 = vector.broadcast %cst_5 : f32 to vector<32x96xf32>
    %7 = arith.cmpf oge, %5, %6 : vector<32x96xf32>
    %cst_6 = arith.constant 1.000000e-01 : f32
    %8 = vector.broadcast %cst_6 : f32 to vector<32x96xf32>
    %9 = arith.mulf %8, %5 : vector<32x96xf32>
    %10 = arith.select %7, %5, %9 : vector<32x96xi1>, vector<32x96xf32>
    %c0_7 = arith.constant 0 : index
    %c0_8 = arith.constant 0 : index
    %11 = vector.load %arg4[%c0_7, %c0_8] : memref<32x96xf32, #tpu.memory_space<vmem>>, vector<32x96xf32>
    tpu.vector_store %arg4[%c0_7, %c0_8], %10 {strides = array<i32>} : memref<32x96xf32, #tpu.memory_space<vmem>>, vector<32x96xf32>,
    return
  }
  func.func @transform_0(%arg0: i32) -> (i32, i32) {
    %c0_i32 = arith.constant 0 : i32
    %c0_i32_0 = arith.constant 0 : i32
    return %arg0, %c0_i32 : i32, i32
  }
  func.func @transform_1(%arg0: i32) -> (i32, i32) {
    %c0_i32 = arith.constant 0 : i32
    %c0_i32_0 = arith.constant 0 : i32
    %c0_i32_1 = arith.constant 0 : i32
    return %c0_i32, %c0_i32_0 : i32, i32
  }
  func.func @transform_2(%arg0: i32) -> (i32, i32) {
    %c0_i32 = arith.constant 0 : i32
    %c0_i32_0 = arith.constant 0 : i32
    %c0_i32_1 = arith.constant 0 : i32
    return %c0_i32, %c0_i32_0 : i32, i32
  }
  func.func @transform_3(%arg0: i32) -> (i32, i32) {
    %c0_i32 = arith.constant 0 : i32
    %c0_i32_0 = arith.constant 0 : i32
    return %arg0, %c0_i32 : i32, i32
  }
}

</mosaic_0001>

<llo_original>
// kernel: _lambda_.12
$region0: #{_lambda_.12}
  #allocation0 [shape = 'u32[]', space=smem, size = 0x4, offset = 0x4, fixed_abs, tag = 'smem constant byte address 0x4 - core index']
  #allocation1 [shape = 'u32[144,128]{1,0:T(1,128)}', space=vmem, size = 0x12000, scoped, tag = 'internal scratch']
  %s0 = inlined_call_operand.vmem [shape: f32[512,27], index: 0, kind: input, shape index: {}]
  %s1 = inlined_call_operand.vmem [shape: f32[27,24], index: 1, kind: input, shape index: {}]
  %s2 = inlined_call_operand.vmem [shape: f32[1,24], index: 2, kind: input, shape index: {}]
  %s3 = inlined_call_operand.vmem [shape: f32[512,24], index: 3, kind: output, shape index: {}]
  %s4 = sld [smem:[#allocation0]]
  $region22: #{_lambda_.12} parent=0
    _
  %s6 = ssub.s32 1, %s4
  %s7 = scalar_select 0, %s6, %s4
  // Predicated region
  $region2: #{_lambda_.12} parent=0 // pred_check
    _
  $region3: #{_lambda_.12} parent=0 // pred_check_branch
    %9 = sbr.rel (0) target = $region5
  $region4: #{_lambda_.12} parent=0 // pred_region
    _
  $region5: #{_lambda_.12} parent=0 // pred_fallthru
    _
  // Predicated region
  $region6: #{_lambda_.12} parent=0 // pred_check
    _
  $region7: #{_lambda_.12} parent=0 // pred_check_branch
    %11 = sbr.rel (0) target = $region9
  $region8: #{_lambda_.12} parent=0 // pred_region
    _
  $region9: #{_lambda_.12} parent=0 // pred_fallthru
    _
  // Predicated region
  $region10: #{_lambda_.12} parent=0 // pred_check
    _
  $region11: #{_lambda_.12} parent=0 // pred_check_branch
    %13 = sbr.rel (0) target = $region13
  $region12: #{_lambda_.12} parent=0 // pred_region
    _
  $region13: #{_lambda_.12} parent=0 // pred_fallthru
    _
  %v14 = vld [vmem:[%s0] sm:$0xff]
  %v15 = vld [vmem:[%s0 + $0x8] sm:$0xff]
  %v16 = vld [vmem:[%s0 + $0x10] sm:$0xff]
  %v17 = vld [vmem:[%s0 + $0x18] sm:$0xff]
  %v18 = vld [vmem:[%s0 + $0x20] sm:$0xff]
  %v19 = vld [vmem:[%s0 + $0x28] sm:$0xff]
  %v20 = vld [vmem:[%s0 + $0x30] sm:$0xff]
  %v21 = vld [vmem:[%s0 + $0x38] sm:$0xff]
  %v22 = vld [vmem:[%s0 + $0x40] sm:$0xff]
  %v23 = vld [vmem:[%s0 + $0x48] sm:$0xff]
  %v24 = vld [vmem:[%s0 + $0x50] sm:$0xff]
  %v25 = vld [vmem:[%s0 + $0x58] sm:$0xff]
  %v26 = vld [vmem:[%s0 + $0x60] sm:$0xff]
  %v27 = vld [vmem:[%s0 + $0x68] sm:$0xff]
  %v28 = vld [vmem:[%s0 + $0x70] sm:$0xff]
  %v29 = vld [vmem:[%s0 + $0x78] sm:$0xff]
  %v30 = vld [vmem:[%s0 + $0x80] sm:$0xff]
  %v31 = vld [vmem:[%s0 + $0x88] sm:$0xff]
  %v32 = vld [vmem:[%s0 + $0x90] sm:$0xff]
  %v33 = vld [vmem:[%s0 + $0x98] sm:$0xff]
  %v34 = vld [vmem:[%s0 + $0xa0] sm:$0xff]
  %v35 = vld [vmem:[%s0 + $0xa8] sm:$0xff]
  %v36 = vld [vmem:[%s0 + $0xb0] sm:$0xff]
  %v37 = vld [vmem:[%s0 + $0xb8] sm:$0xff]
  %v38 = vld [vmem:[%s0 + $0xc0] sm:$0xff]
  %v39 = vld [vmem:[%s0 + $0xc8] sm:$0xff]
  %v40 = vld [vmem:[%s0 + $0xd0] sm:$0xff]
  %v41 = vld [vmem:[%s0 + $0xd8] sm:$0xff]
  %v42 = vld [vmem:[%s0 + $0xe0] sm:$0xff]
  %v43 = vld [vmem:[%s0 + $0xe8] sm:$0xff]
  %v44 = vld [vmem:[%s0 + $0xf0] sm:$0xff]
  %v45 = vld [vmem:[%s0 + $0xf8] sm:$0xff]
  %v46 = vld [vmem:[%s0 + $0x100] sm:$0xff]
  %v47 = vld [vmem:[%s0 + $0x108] sm:$0xff]
  %v48 = vld [vmem:[%s0 + $0x110] sm:$0xff]
  %v49 = vld [vmem:[%s0 + $0x118] sm:$0xff]
  %v50 = vld [vmem:[%s0 + $0x120] sm:$0xff]
  %v51 = vld [vmem:[%s0 + $0x128] sm:$0xff]
  %v52 = vld [vmem:[%s0 + $0x130] sm:$0xff]
  %v53 = vld [vmem:[%s0 + $0x138] sm:$0xff]
  %v54 = vld [vmem:[%s0 + $0x140] sm:$0xff]
  %v55 = vld [vmem:[%s0 + $0x148] sm:$0xff]
  %v56 = vld [vmem:[%s0 + $0x150] sm:$0xff]
  %v57 = vld [vmem:[%s0 + $0x158] sm:$0xff]
  %v58 = vld [vmem:[%s0 + $0x160] sm:$0xff]
  %v59 = vld [vmem:[%s0 + $0x168] sm:$0xff]
  %v60 = vld [vmem:[%s0 + $0x170] sm:$0xff]
  %v61 = vld [vmem:[%s0 + $0x178] sm:$0xff]
  %v62 = vld [vmem:[%s0 + $0x180] sm:$0xff]
  %v63 = vld [vmem:[%s0 + $0x188] sm:$0xff]
  %v64 = vld [vmem:[%s0 + $0x190] sm:$0xff]
  %v65 = vld [vmem:[%s0 + $0x198] sm:$0xff]
  %v66 = vld [vmem:[%s0 + $0x1a0] sm:$0xff]
  %v67 = vld [vmem:[%s0 + $0x1a8] sm:$0xff]
  %v68 = vld [vmem:[%s0 + $0x1b0] sm:$0xff]
  %v69 = vld [vmem:[%s0 + $0x1b8] sm:$0xff]
  %v70 = vld [vmem:[%s0 + $0x1c0] sm:$0xff]
  %v71 = vld [vmem:[%s0 + $0x1c8] sm:$0xff]
  %v72 = vld [vmem:[%s0 + $0x1d0] sm:$0xff]
  %v73 = vld [vmem:[%s0 + $0x1d8] sm:$0xff]
  %v74 = vld [vmem:[%s0 + $0x1e0] sm:$0xff]
  %v75 = vld [vmem:[%s0 + $0x1e8] sm:$0xff]
  %v76 = vld [vmem:[%s0 + $0x1f0] sm:$0xff]
  %v77 = vld [vmem:[%s0 + $0x1f8] sm:$0xff]
  %v78 = vld [vmem:[%s1] sm:$0xff]
  %v79 = vld [vmem:[%s1 + $0x8] sm:$0xff]
  %v80 = vld [vmem:[%s1 + $0x10] sm:$0xff]
  %v81 = vld [vmem:[%s1 + $0x18] sm:$0x7]
  %v82 = vld [vmem:[%s2] sm:$0x1]
  %v84 = vlaneseq
  %v85 = vshrl.u32 %v84, 7
  %v86 = vsub.s32 0, %v85
  %v87 = vrot.slane %v82, %v86
  %vm89 = vcmask 220160
  %v91 = vsel %vm89, %v14, 0
  %v94 = vsel %vm89, %v15, 0
  %v97 = vsel %vm89, %v16, 0
  %v100 = vsel %vm89, %v17, 0
  %v103 = vsel %vm89, %v18, 0
  %v106 = vsel %vm89, %v19, 0
  %v109 = vsel %vm89, %v20, 0
  %v112 = vsel %vm89, %v21, 0
  %v115 = vsel %vm89, %v22, 0
  %v118 = vsel %vm89, %v23, 0
  %v121 = vsel %vm89, %v24, 0
  %v124 = vsel %vm89, %v25, 0
  %v127 = vsel %vm89, %v26, 0
  %v130 = vsel %vm89, %v27, 0
  %v133 = vsel %vm89, %v28, 0
  %v136 = vsel %vm89, %v29, 0
  %v139 = vsel %vm89, %v30, 0
  %v142 = vsel %vm89, %v31, 0
  %v145 = vsel %vm89, %v32, 0
  %v148 = vsel %vm89, %v33, 0
  %v151 = vsel %vm89, %v34, 0
  %v154 = vsel %vm89, %v35, 0
  %v157 = vsel %vm89, %v36, 0
  %v160 = vsel %vm89, %v37, 0
  %v163 = vsel %vm89, %v38, 0
  %v166 = vsel %vm89, %v39, 0
  %v169 = vsel %vm89, %v40, 0
  %v172 = vsel %vm89, %v41, 0
  %v175 = vsel %vm89, %v42, 0
  %v178 = vsel %vm89, %v43, 0
  %v181 = vsel %vm89, %v44, 0
  %v184 = vsel %vm89, %v45, 0
  %v187 = vsel %vm89, %v46, 0
  %v190 = vsel %vm89, %v47, 0
  %v193 = vsel %vm89, %v48, 0
  %v196 = vsel %vm89, %v49, 0
  %v199 = vsel %vm89, %v50, 0
  %v202 = vsel %vm89, %v51, 0
  %v205 = vsel %vm89, %v52, 0
  %v208 = vsel %vm89, %v53, 0
  %v211 = vsel %vm89, %v54, 0
  %v214 = vsel %vm89, %v55, 0
  %v217 = vsel %vm89, %v56, 0
  %v220 = vsel %vm89, %v57, 0
  %v223 = vsel %vm89, %v58, 0
  %v226 = vsel %vm89, %v59, 0
  %v229 = vsel %vm89, %v60, 0
  %v232 = vsel %vm89, %v61, 0
  %v235 = vsel %vm89, %v62, 0
  %v238 = vsel %vm89, %v63, 0
  %v241 = vsel %vm89, %v64, 0
  %v244 = vsel %vm89, %v65, 0
  %v247 = vsel %vm89, %v66, 0
  %v250 = vsel %vm89, %v67, 0
  %v253 = vsel %vm89, %v68, 0
  %v256 = vsel %vm89, %v69, 0
  %v259 = vsel %vm89, %v70, 0
  %v262 = vsel %vm89, %v71, 0
  %v265 = vsel %vm89, %v72, 0
  %v268 = vsel %vm89, %v73, 0
  %v271 = vsel %vm89, %v74, 0
  %v274 = vsel %vm89, %v75, 0
  %v277 = vsel %vm89, %v76, 0
  %v280 = vsel %vm89, %v77, 0
  %vm282 = vcmask 1042432
  %v284 = vsel %vm282, %v81, 0
  %286 = vmatprep.subr.mxu0 0.0
  %287 = vmatpush1.msra.mxu0 %v78
  %288 = vmatprep.subr.mxu0 0.0
  %289 = vmatpush1.msra.mxu0 %v79
  %290 = vmatprep.subr.mxu0 0.0
  %291 = vmatpush1.msra.mxu0 %v80
  %292 = vmatprep.subr.mxu0 0.0
  %293 = vmatpush1.msra.mxu0 %v284
  %294 = vmatprep.subr.mxu0 0.0
  %295 = vmatpush1.msra.mxu0 0.0
  %296 = vmatprep.subr.mxu0 0.0
  %297 = vmatpush1.msra.mxu0 0.0
  %298 = vmatprep.subr.mxu0 0.0
  %299 = vmatpush1.msra.mxu0 0.0
  %300 = vmatprep.subr.mxu0 0.0
  %301 = vmatpush1.msra.mxu0 0.0
  %302 = vmatprep.subr.mxu0 0.0
  %303 = vmatpush1.msra.mxu0 0.0
  %304 = vmatprep.subr.mxu0 0.0
  %305 = vmatpush1.msra.mxu0 0.0
  %306 = vmatprep.subr.mxu0 0.0
  %307 = vmatpush1.msra.mxu0 0.0
  %308 = vmatprep.subr.mxu0 0.0
  %309 = vmatpush1.msra.mxu0 0.0
  %310 = vmatprep.subr.mxu0 0.0
  %311 = vmatpush1.msra.mxu0 0.0
  %312 = vmatprep.subr.mxu0 0.0
  %313 = vmatpush1.msra.mxu0 0.0
  %314 = vmatprep.subr.mxu0 0.0
  %315 = vmatpush1.msra.mxu0 0.0
  %316 = vmatprep.subr.mxu0 0.0
  %317 = vmatpush1.msra.mxu0 0.0
  %318 = vmatprep.subr.mxu0 0.0
  %319 = vmatpush1.msra.mxu0 0.0
  %320 = vmatprep.subr.mxu0 0.0
  %321 = vmatpush1.msra.mxu0 0.0
  %322 = vmatprep.subr.mxu0 0.0
  %323 = vmatpush1.msra.mxu0 0.0
  %324 = vmatprep.subr.mxu0 0.0
  %325 = vmatpush1.msra.mxu0 0.0
  %326 = vmatprep.subr.mxu0 0.0
  %327 = vmatpush1.msra.mxu0 0.0
  %328 = vmatprep.subr.mxu0 0.0
  %329 = vmatpush1.msra.mxu0 0.0
  %330 = vmatprep.subr.mxu0 0.0
  %331 = vmatpush1.msra.mxu0 0.0
  %332 = vmatprep.subr.mxu0 0.0
  %333 = vmatpush1.msra.mxu0 0.0
  %334 = vmatprep.subr.mxu0 0.0
  %335 = vmatpush1.msra.mxu0 0.0
  %336 = vmatprep.subr.mxu0 0.0
  %337 = vmatpush1.msra.mxu0 0.0
  %338 = vmatprep.subr.mxu0 0.0
  %339 = vmatpush1.msra.mxu0 0.0
  %340 = vmatprep.subr.mxu0 0.0
  %341 = vmatpush1.msra.mxu0 0.0
  %342 = vmatprep.subr.mxu0 0.0
  %343 = vmatpush1.msra.mxu0 0.0
  %344 = vmatprep.subr.mxu0 0.0
  %345 = vmatpush1.msra.mxu0 0.0
  %346 = vmatprep.subr.mxu0 0.0
  %347 = vmatpush1.msra.mxu0 0.0
  %348 = vmatprep.subr.mxu0 0.0
  %349 = vmatpush1.msra.mxu0 0.0
  %350 = vmatprep.mubr.f32.mxu0 0.0
  %351 = vmatmul.mubr.f32.gmra.mrb[0].mxu0 %v91
  %v352 = vpop.f32.mrb[0].mxu0
  %v353 = vadd.f32 %v87, %v352
  %v354 = vpop.f32.mrb[0].mxu0
  %355 = vmatprep.mubr.f32.mxu0 0.0
  %356 = vmatmul.mubr.f32.gmra.mrb[0].mxu0 %v94
  %v357 = vpop.f32.mrb[0].mxu0
  %v358 = vadd.f32 %v87, %v357
  %v359 = vpop.f32.mrb[0].mxu0
  %360 = vmatprep.mubr.f32.mxu0 0.0
  %361 = vmatmul.mubr.f32.gmra.mrb[0].mxu0 %v97
  %v362 = vpop.f32.mrb[0].mxu0
  %v363 = vadd.f32 %v87, %v362
  %v364 = vpop.f32.mrb[0].mxu0
  %365 = vmatprep.mubr.f32.mxu0 0.0
  %366 = vmatmul.mubr.f32.gmra.mrb[0].mxu0 %v100
  %v367 = vpop.f32.mrb[0].mxu0
  %v368 = vadd.f32 %v87, %v367
  %v369 = vpop.f32.mrb[0].mxu0
  %370 = vmatprep.mubr.f32.mxu0 0.0
  %371 = vmatmul.mubr.f32.gmra.mrb[0].mxu0 %v103
  %v372 = vpop.f32.mrb[0].mxu0
  %v373 = vadd.f32 %v87, %v372
  %v374 = vpop.f32.mrb[0].mxu0
  %375 = vmatprep.mubr.f32.mxu0 0.0
  %376 = vmatmul.mubr.f32.gmra.mrb[0].mxu0 %v106
  %v377 = vpop.f32.mrb[0].mxu0
  %v378 = vadd.f32 %v87, %v377
  %v379 = vpop.f32.mrb[0].mxu0
  %380 = vmatprep.mubr.f32.mxu0 0.0
  %381 = vmatmul.mubr.f32.gmra.mrb[0].mxu0 %v109
  %v382 = vpop.f32.mrb[0].mxu0
  %v383 = vadd.f32 %v87, %v382
  %v384 = vpop.f32.mrb[0].mxu0
  %385 = vmatprep.mubr.f32.mxu0 0.0
  %386 = vmatmul.mubr.f32.gmra.mrb[0].mxu0 %v112
  %v387 = vpop.f32.mrb[0].mxu0
  %v388 = vadd.f32 %v87, %v387
  %v389 = vpop.f32.mrb[0].mxu0
  %390 = vmatprep.mubr.f32.mxu0 0.0
  %391 = vmatmul.mubr.f32.gmra.mrb[0].mxu0 %v115
  %v392 = vpop.f32.mrb[0].mxu0
  %v393 = vadd.f32 %v87, %v392
  %v394 = vpop.f32.mrb[0].mxu0
  %395 = vmatprep.mubr.f32.mxu0 0.0
  %396 = vmatmul.mubr.f32.gmra.mrb[0].mxu0 %v118
  %v397 = vpop.f32.mrb[0].mxu0
  %v398 = vadd.f32 %v87, %v397
  %v399 = vpop.f32.mrb[0].mxu0
  %400 = vmatprep.mubr.f32.mxu0 0.0
  %401 = vmatmul.mubr.f32.gmra.mrb[0].mxu0 %v121
  %v402 = vpop.f32.mrb[0].mxu0
  %v403 = vadd.f32 %v87, %v402
  %v404 = vpop.f32.mrb[0].mxu0
  %405 = vmatprep.mubr.f32.mxu0 0.0
  %406 = vmatmul.mubr.f32.gmra.mrb[0].mxu0 %v124
  %v407 = vpop.f32.mrb[0].mxu0
  %v408 = vadd.f32 %v87, %v407
  %v409 = vpop.f32.mrb[0].mxu0
  %410 = vmatprep.mubr.f32.mxu0 0.0
  %411 = vmatmul.mubr.f32.gmra.mrb[0].mxu0 %v127
  %v412 = vpop.f32.mrb[0].mxu0
  %v413 = vadd.f32 %v87, %v412
  %v414 = vpop.f32.mrb[0].mxu0
  %415 = vmatprep.mubr.f32.mxu0 0.0
  %416 = vmatmul.mubr.f32.gmra.mrb[0].mxu0 %v130
  %v417 = vpop.f32.mrb[0].mxu0
  %v418 = vadd.f32 %v87, %v417
  %v419 = vpop.f32.mrb[0].mxu0
  %420 = vmatprep.mubr.f32.mxu0 0.0
  %421 = vmatmul.mubr.f32.gmra.mrb[0].mxu0 %v133
  %v422 = vpop.f32.mrb[0].mxu0
  %v423 = vadd.f32 %v87, %v422
  %v424 = vpop.f32.mrb[0].mxu0
  %425 = vmatprep.mubr.f32.mxu0 0.0
  %426 = vmatmul.mubr.f32.gmra.mrb[0].mxu0 %v136
  %v427 = vpop.f32.mrb[0].mxu0
  %v428 = vadd.f32 %v87, %v427
  %v429 = vpop.f32.mrb[0].mxu0
  %430 = vmatprep.mubr.f32.mxu0 0.0
  %431 = vmatmul.mubr.f32.gmra.mrb[0].mxu0 %v139
  %v432 = vpop.f32.mrb[0].mxu0
  %v433 = vadd.f32 %v87, %v432
  %v434 = vpop.f32.mrb[0].mxu0
  %435 = vmatprep.mubr.f32.mxu0 0.0
  %436 = vmatmul.mubr.f32.gmra.mrb[0].mxu0 %v142
  %v437 = vpop.f32.mrb[0].mxu0
  %v438 = vadd.f32 %v87, %v437
  %v439 = vpop.f32.mrb[0].mxu0
  %440 = vmatprep.mubr.f32.mxu0 0.0
  %441 = vmatmul.mubr.f32.gmra.mrb[0].mxu0 %v145
  %v442 = vpop.f32.mrb[0].mxu0
  %v443 = vadd.f32 %v87, %v442
  %v444 = vpop.f32.mrb[0].mxu0
  %445 = vmatprep.mubr.f32.mxu0 0.0
  %446 = vmatmul.mubr.f32.gmra.mrb[0].mxu0 %v148
  %v447 = vpop.f32.mrb[0].mxu0
  %v448 = vadd.f32 %v87, %v447
  %v449 = vpop.f32.mrb[0].mxu0
  %450 = vmatprep.mubr.f32.mxu0 0.0
  %451 = vmatmul.mubr.f32.gmra.mrb[0].mxu0 %v151
  %v452 = vpop.f32.mrb[0].mxu0
  %v453 = vadd.f32 %v87, %v452
  %v454 = vpop.f32.mrb[0].mxu0
  %455 = vmatprep.mubr.f32.mxu0 0.0
  %456 = vmatmul.mubr.f32.gmra.mrb[0].mxu0 %v154
  %v457 = vpop.f32.mrb[0].mxu0
  %v458 = vadd.f32 %v87, %v457
  %v459 = vpop.f32.mrb[0].mxu0
  %460 = vmatprep.mubr.f32.mxu0 0.0
  %461 = vmatmul.mubr.f32.gmra.mrb[0].mxu0 %v157
  %v462 = vpop.f32.mrb[0].mxu0
  %v463 = vadd.f32 %v87, %v462
  %v464 = vpop.f32.mrb[0].mxu0
  %465 = vmatprep.mubr.f32.mxu0 0.0
  %466 = vmatmul.mubr.f32.gmra.mrb[0].mxu0 %v160
  %v467 = vpop.f32.mrb[0].mxu0
  %v468 = vadd.f32 %v87, %v467
  %v469 = vpop.f32.mrb[0].mxu0
  %470 = vmatprep.mubr.f32.mxu0 0.0
  %471 = vmatmul.mubr.f32.gmra.mrb[0].mxu0 %v163
  %v472 = vpop.f32.mrb[0].mxu0
  %v473 = vadd.f32 %v87, %v472
  %v474 = vpop.f32.mrb[0].mxu0
  %475 = vmatprep.mubr.f32.mxu0 0.0
  %476 = vmatmul.mubr.f32.gmra.mrb[0].mxu0 %v166
  %v477 = vpop.f32.mrb[0].mxu0
  %v478 = vadd.f32 %v87, %v477
  %v479 = vpop.f32.mrb[0].mxu0
  %480 = vmatprep.mubr.f32.mxu0 0.0
  %481 = vmatmul.mubr.f32.gmra.mrb[0].mxu0 %v169
  %v482 = vpop.f32.mrb[0].mxu0
  %v483 = vadd.f32 %v87, %v482
  %v484 = vpop.f32.mrb[0].mxu0
  %485 = vmatprep.mubr.f32.mxu0 0.0
  %486 = vmatmul.mubr.f32.gmra.mrb[0].mxu0 %v172
  %v487 = vpop.f32.mrb[0].mxu0
  %v488 = vadd.f32 %v87, %v487
  %v489 = vpop.f32.mrb[0].mxu0
  %490 = vmatprep.mubr.f32.mxu0 0.0
  %491 = vmatmul.mubr.f32.gmra.mrb[0].mxu0 %v175
  %v492 = vpop.f32.mrb[0].mxu0
  %v493 = vadd.f32 %v87, %v492
  %v494 = vpop.f32.mrb[0].mxu0
  %495 = vmatprep.mubr.f32.mxu0 0.0
  %496 = vmatmul.mubr.f32.gmra.mrb[0].mxu0 %v178
  %v497 = vpop.f32.mrb[0].mxu0
  %v498 = vadd.f32 %v87, %v497
  %v499 = vpop.f32.mrb[0].mxu0
  %500 = vmatprep.mubr.f32.mxu0 0.0
  %501 = vmatmul.mubr.f32.gmra.mrb[0].mxu0 %v181
  %v502 = vpop.f32.mrb[0].mxu0
  %v503 = vadd.f32 %v87, %v502
  %v504 = vpop.f32.mrb[0].mxu0
  %505 = vmatprep.mubr.f32.mxu0 0.0
  %506 = vmatmul.mubr.f32.gmra.mrb[0].mxu0 %v184
  %v507 = vpop.f32.mrb[0].mxu0
  %v508 = vadd.f32 %v87, %v507
  %v509 = vpop.f32.mrb[0].mxu0
  %510 = vmatprep.mubr.f32.mxu0 0.0
  %511 = vmatmul.mubr.f32.gmra.mrb[0].mxu0 %v187
  %v512 = vpop.f32.mrb[0].mxu0
  %v513 = vadd.f32 %v87, %v512
  %v514 = vpop.f32.mrb[0].mxu0
  %515 = vmatprep.mubr.f32.mxu0 0.0
  %516 = vmatmul.mubr.f32.gmra.mrb[0].mxu0 %v190
  %v517 = vpop.f32.mrb[0].mxu0
  %v518 = vadd.f32 %v87, %v517
  %v519 = vpop.f32.mrb[0].mxu0
  %520 = vmatprep.mubr.f32.mxu0 0.0
  %521 = vmatmul.mubr.f32.gmra.mrb[0].mxu0 %v193
  %v522 = vpop.f32.mrb[0].mxu0
  %v523 = vadd.f32 %v87, %v522
  %v524 = vpop.f32.mrb[0].mxu0
  %525 = vmatprep.mubr.f32.mxu0 0.0
  %526 = vmatmul.mubr.f32.gmra.mrb[0].mxu0 %v196
  %v527 = vpop.f32.mrb[0].mxu0
  %v528 = vadd.f32 %v87, %v527
  %v529 = vpop.f32.mrb[0].mxu0
  %530 = vmatprep.mubr.f32.mxu0 0.0
  %531 = vmatmul.mubr.f32.gmra.mrb[0].mxu0 %v199
  %v532 = vpop.f32.mrb[0].mxu0
  %v533 = vadd.f32 %v87, %v532
  %v534 = vpop.f32.mrb[0].mxu0
  %535 = vmatprep.mubr.f32.mxu0 0.0
  %536 = vmatmul.mubr.f32.gmra.mrb[0].mxu0 %v202
  %v537 = vpop.f32.mrb[0].mxu0
  %v538 = vadd.f32 %v87, %v537
  %v539 = vpop.f32.mrb[0].mxu0
  %540 = vmatprep.mubr.f32.mxu0 0.0
  %541 = vmatmul.mubr.f32.gmra.mrb[0].mxu0 %v205
  %v542 = vpop.f32.mrb[0].mxu0
  %v543 = vadd.f32 %v87, %v542
  %v544 = vpop.f32.mrb[0].mxu0
  %545 = vmatprep.mubr.f32.mxu0 0.0
  %546 = vmatmul.mubr.f32.gmra.mrb[0].mxu0 %v208
  %v547 = vpop.f32.mrb[0].mxu0
  %v548 = vadd.f32 %v87, %v547
  %v549 = vpop.f32.mrb[0].mxu0
  %550 = vmatprep.mubr.f32.mxu0 0.0
  %551 = vmatmul.mubr.f32.gmra.mrb[0].mxu0 %v211
  %v552 = vpop.f32.mrb[0].mxu0
  %v553 = vadd.f32 %v87, %v552
  %v554 = vpop.f32.mrb[0].mxu0
  %555 = vmatprep.mubr.f32.mxu0 0.0
  %556 = vmatmul.mubr.f32.gmra.mrb[0].mxu0 %v214
  %v557 = vpop.f32.mrb[0].mxu0
  %v558 = vadd.f32 %v87, %v557
  %v559 = vpop.f32.mrb[0].mxu0
  %560 = vmatprep.mubr.f32.mxu0 0.0
  %561 = vmatmul.mubr.f32.gmra.mrb[0].mxu0 %v217
  %v562 = vpop.f32.mrb[0].mxu0
  %v563 = vadd.f32 %v87, %v562
  %v564 = vpop.f32.mrb[0].mxu0
  %565 = vmatprep.mubr.f32.mxu0 0.0
  %566 = vmatmul.mubr.f32.gmra.mrb[0].mxu0 %v220
  %v567 = vpop.f32.mrb[0].mxu0
  %v568 = vadd.f32 %v87, %v567
  %v569 = vpop.f32.mrb[0].mxu0
  %570 = vmatprep.mubr.f32.mxu0 0.0
  %571 = vmatmul.mubr.f32.gmra.mrb[0].mxu0 %v223
  %v572 = vpop.f32.mrb[0].mxu0
  %v573 = vadd.f32 %v87, %v572
  %v574 = vpop.f32.mrb[0].mxu0
  %575 = vmatprep.mubr.f32.mxu0 0.0
  %576 = vmatmul.mubr.f32.gmra.mrb[0].mxu0 %v226
  %v577 = vpop.f32.mrb[0].mxu0
  %v578 = vadd.f32 %v87, %v577
  %v579 = vpop.f32.mrb[0].mxu0
  %580 = vmatprep.mubr.f32.mxu0 0.0
  %581 = vmatmul.mubr.f32.gmra.mrb[0].mxu0 %v229
  %v582 = vpop.f32.mrb[0].mxu0
  %v583 = vadd.f32 %v87, %v582
  %v584 = vpop.f32.mrb[0].mxu0
  %585 = vmatprep.mubr.f32.mxu0 0.0
  %586 = vmatmul.mubr.f32.gmra.mrb[0].mxu0 %v232
  %v587 = vpop.f32.mrb[0].mxu0
  %v588 = vadd.f32 %v87, %v587
  %v589 = vpop.f32.mrb[0].mxu0
  %590 = vmatprep.mubr.f32.mxu0 0.0
  %591 = vmatmul.mubr.f32.gmra.mrb[0].mxu0 %v235
  %v592 = vpop.f32.mrb[0].mxu0
  %v593 = vadd.f32 %v87, %v592
  %v594 = vpop.f32.mrb[0].mxu0
  %595 = vmatprep.mubr.f32.mxu0 0.0
  %596 = vmatmul.mubr.f32.gmra.mrb[0].mxu0 %v238
  %v597 = vpop.f32.mrb[0].mxu0
  %v598 = vadd.f32 %v87, %v597
  %v599 = vpop.f32.mrb[0].mxu0
  %600 = vmatprep.mubr.f32.mxu0 0.0
  %601 = vmatmul.mubr.f32.gmra.mrb[0].mxu0 %v241
  %v602 = vpop.f32.mrb[0].mxu0
  %v603 = vadd.f32 %v87, %v602
  %v604 = vpop.f32.mrb[0].mxu0
  %605 = vmatprep.mubr.f32.mxu0 0.0
  %606 = vmatmul.mubr.f32.gmra.mrb[0].mxu0 %v244
  %v607 = vpop.f32.mrb[0].mxu0
  %v608 = vadd.f32 %v87, %v607
  %v609 = vpop.f32.mrb[0].mxu0
  %610 = vmatprep.mubr.f32.mxu0 0.0
  %611 = vmatmul.mubr.f32.gmra.mrb[0].mxu0 %v247
  %v612 = vpop.f32.mrb[0].mxu0
  %v613 = vadd.f32 %v87, %v612
  %v614 = vpop.f32.mrb[0].mxu0
  %615 = vmatprep.mubr.f32.mxu0 0.0
  %616 = vmatmul.mubr.f32.gmra.mrb[0].mxu0 %v250
  %v617 = vpop.f32.mrb[0].mxu0
  %v618 = vadd.f32 %v87, %v617
  %v619 = vpop.f32.mrb[0].mxu0
  %620 = vmatprep.mubr.f32.mxu0 0.0
  %621 = vmatmul.mubr.f32.gmra.mrb[0].mxu0 %v253
  %v622 = vpop.f32.mrb[0].mxu0
  %v623 = vadd.f32 %v87, %v622
  %v624 = vpop.f32.mrb[0].mxu0
  %625 = vmatprep.mubr.f32.mxu0 0.0
  %626 = vmatmul.mubr.f32.gmra.mrb[0].mxu0 %v256
  %v627 = vpop.f32.mrb[0].mxu0
  %v628 = vadd.f32 %v87, %v627
  %v629 = vpop.f32.mrb[0].mxu0
  %630 = vmatprep.mubr.f32.mxu0 0.0
  %631 = vmatmul.mubr.f32.gmra.mrb[0].mxu0 %v259
  %v632 = vpop.f32.mrb[0].mxu0
  %v633 = vadd.f32 %v87, %v632
  %v634 = vpop.f32.mrb[0].mxu0
  %635 = vmatprep.mubr.f32.mxu0 0.0
  %636 = vmatmul.mubr.f32.gmra.mrb[0].mxu0 %v262
  %v637 = vpop.f32.mrb[0].mxu0
  %v638 = vadd.f32 %v87, %v637
  %v639 = vpop.f32.mrb[0].mxu0
  %640 = vmatprep.mubr.f32.mxu0 0.0
  %641 = vmatmul.mubr.f32.gmra.mrb[0].mxu0 %v265
  %v642 = vpop.f32.mrb[0].mxu0
  %v643 = vadd.f32 %v87, %v642
  %v644 = vpop.f32.mrb[0].mxu0
  %645 = vmatprep.mubr.f32.mxu0 0.0
  %646 = vmatmul.mubr.f32.gmra.mrb[0].mxu0 %v268
  %v647 = vpop.f32.mrb[0].mxu0
  %v648 = vadd.f32 %v87, %v647
  %v649 = vpop.f32.mrb[0].mxu0
  %650 = vmatprep.mubr.f32.mxu0 0.0
  %651 = vmatmul.mubr.f32.gmra.mrb[0].mxu0 %v271
  %v652 = vpop.f32.mrb[0].mxu0
  %v653 = vadd.f32 %v87, %v652
  %v654 = vpop.f32.mrb[0].mxu0
  %655 = vmatprep.mubr.f32.mxu0 0.0
  %656 = vmatmul.mubr.f32.gmra.mrb[0].mxu0 %v274
  %v657 = vpop.f32.mrb[0].mxu0
  %v658 = vadd.f32 %v87, %v657
  %v659 = vpop.f32.mrb[0].mxu0
  %660 = vmatprep.mubr.f32.mxu0 0.0
  %661 = vmatmul.mubr.f32.gmra.mrb[0].mxu0 %v277
  %v662 = vpop.f32.mrb[0].mxu0
  %v663 = vadd.f32 %v87, %v662
  %v664 = vpop.f32.mrb[0].mxu0
  %665 = vmatprep.mubr.f32.mxu0 0.0
  %666 = vmatmul.mubr.f32.gmra.mrb[0].mxu0 %v280
  %v667 = vpop.f32.mrb[0].mxu0
  %v668 = vadd.f32 %v87, %v667
  %v669 = vpop.f32.mrb[0].mxu0
  %670 = vdwg.mxu0
  %vm671 = vcmp.ge.f32.partialorder %v353, 0.0
  %vm672 = vcmp.ge.f32.partialorder %v358, 0.0
  %vm673 = vcmp.ge.f32.partialorder %v363, 0.0
  %vm674 = vcmp.ge.f32.partialorder %v368, 0.0
  %vm675 = vcmp.ge.f32.partialorder %v373, 0.0
  %vm676 = vcmp.ge.f32.partialorder %v378, 0.0
  %vm677 = vcmp.ge.f32.partialorder %v383, 0.0
  %vm678 = vcmp.ge.f32.partialorder %v388, 0.0
  %vm679 = vcmp.ge.f32.partialorder %v393, 0.0
  %vm680 = vcmp.ge.f32.partialorder %v398, 0.0
  %vm681 = vcmp.ge.f32.partialorder %v403, 0.0
  %vm682 = vcmp.ge.f32.partialorder %v408, 0.0
  %vm683 = vcmp.ge.f32.partialorder %v413, 0.0
  %vm684 = vcmp.ge.f32.partialorder %v418, 0.0
  %vm685 = vcmp.ge.f32.partialorder %v423, 0.0
  %vm686 = vcmp.ge.f32.partialorder %v428, 0.0
  %vm687 = vcmp.ge.f32.partialorder %v433, 0.0
  %vm688 = vcmp.ge.f32.partialorder %v438, 0.0
  %vm689 = vcmp.ge.f32.partialorder %v443, 0.0
  %vm690 = vcmp.ge.f32.partialorder %v448, 0.0
  %vm691 = vcmp.ge.f32.partialorder %v453, 0.0
  %vm692 = vcmp.ge.f32.partialorder %v458, 0.0
  %vm693 = vcmp.ge.f32.partialorder %v463, 0.0
  %vm694 = vcmp.ge.f32.partialorder %v468, 0.0
  %vm695 = vcmp.ge.f32.partialorder %v473, 0.0
  %vm696 = vcmp.ge.f32.partialorder %v478, 0.0
  %vm697 = vcmp.ge.f32.partialorder %v483, 0.0
  %vm698 = vcmp.ge.f32.partialorder %v488, 0.0
  %vm699 = vcmp.ge.f32.partialorder %v493, 0.0
  %vm700 = vcmp.ge.f32.partialorder %v498, 0.0
  %vm701 = vcmp.ge.f32.partialorder %v503, 0.0
  %vm702 = vcmp.ge.f32.partialorder %v508, 0.0
  %vm703 = vcmp.ge.f32.partialorder %v513, 0.0
  %vm704 = vcmp.ge.f32.partialorder %v518, 0.0
  %vm705 = vcmp.ge.f32.partialorder %v523, 0.0
  %vm706 = vcmp.ge.f32.partialorder %v528, 0.0
  %vm707 = vcmp.ge.f32.partialorder %v533, 0.0
  %vm708 = vcmp.ge.f32.partialorder %v538, 0.0
  %vm709 = vcmp.ge.f32.partialorder %v543, 0.0
  %vm710 = vcmp.ge.f32.partialorder %v548, 0.0
  %vm711 = vcmp.ge.f32.partialorder %v553, 0.0
  %vm712 = vcmp.ge.f32.partialorder %v558, 0.0
  %vm713 = vcmp.ge.f32.partialorder %v563, 0.0
  %vm714 = vcmp.ge.f32.partialorder %v568, 0.0
  %vm715 = vcmp.ge.f32.partialorder %v573, 0.0
  %vm716 = vcmp.ge.f32.partialorder %v578, 0.0
  %vm717 = vcmp.ge.f32.partialorder %v583, 0.0
  %vm718 = vcmp.ge.f32.partialorder %v588, 0.0
  %vm719 = vcmp.ge.f32.partialorder %v593, 0.0
  %vm720 = vcmp.ge.f32.partialorder %v598, 0.0
  %vm721 = vcmp.ge.f32.partialorder %v603, 0.0
  %vm722 = vcmp.ge.f32.partialorder %v608, 0.0
  %vm723 = vcmp.ge.f32.partialorder %v613, 0.0
  %vm724 = vcmp.ge.f32.partialorder %v618, 0.0
  %vm725 = vcmp.ge.f32.partialorder %v623, 0.0
  %vm726 = vcmp.ge.f32.partialorder %v628, 0.0
  %vm727 = vcmp.ge.f32.partialorder %v633, 0.0
  %vm728 = vcmp.ge.f32.partialorder %v638, 0.0
  %vm729 = vcmp.ge.f32.partialorder %v643, 0.0
  %vm730 = vcmp.ge.f32.partialorder %v648, 0.0
  %vm731 = vcmp.ge.f32.partialorder %v653, 0.0
  %vm732 = vcmp.ge.f32.partialorder %v658, 0.0
  %vm733 = vcmp.ge.f32.partialorder %v663, 0.0
  %vm734 = vcmp.ge.f32.partialorder %v668, 0.0
  %v735 = vmul.f32 %v353, 0.1
  %v736 = vmul.f32 %v358, 0.1
  %v737 = vmul.f32 %v363, 0.1
  %v738 = vmul.f32 %v368, 0.1
  %v739 = vmul.f32 %v373, 0.1
  %v740 = vmul.f32 %v378, 0.1
  %v741 = vmul.f32 %v383, 0.1
  %v742 = vmul.f32 %v388, 0.1
  %v743 = vmul.f32 %v393, 0.1
  %v744 = vmul.f32 %v398, 0.1
  %v745 = vmul.f32 %v403, 0.1
  %v746 = vmul.f32 %v408, 0.1
  %v747 = vmul.f32 %v413, 0.1
  %v748 = vmul.f32 %v418, 0.1
  %v749 = vmul.f32 %v423, 0.1
  %v750 = vmul.f32 %v428, 0.1
  %v751 = vmul.f32 %v433, 0.1
  %v752 = vmul.f32 %v438, 0.1
  %v753 = vmul.f32 %v443, 0.1
  %v754 = vmul.f32 %v448, 0.1
  %v755 = vmul.f32 %v453, 0.1
  %v756 = vmul.f32 %v458, 0.1
  %v757 = vmul.f32 %v463, 0.1
  %v758 = vmul.f32 %v468, 0.1
  %v759 = vmul.f32 %v473, 0.1
  %v760 = vmul.f32 %v478, 0.1
  %v761 = vmul.f32 %v483, 0.1
  %v762 = vmul.f32 %v488, 0.1
  %v763 = vmul.f32 %v493, 0.1
  %v764 = vmul.f32 %v498, 0.1
  %v765 = vmul.f32 %v503, 0.1
  %v766 = vmul.f32 %v508, 0.1
  %v767 = vmul.f32 %v513, 0.1
  %v768 = vmul.f32 %v518, 0.1
  %v769 = vmul.f32 %v523, 0.1
  %v770 = vmul.f32 %v528, 0.1
  %v771 = vmul.f32 %v533, 0.1
  %v772 = vmul.f32 %v538, 0.1
  %v773 = vmul.f32 %v543, 0.1
  %v774 = vmul.f32 %v548, 0.1
  %v775 = vmul.f32 %v553, 0.1
  %v776 = vmul.f32 %v558, 0.1
  %v777 = vmul.f32 %v563, 0.1
  %v778 = vmul.f32 %v568, 0.1
  %v779 = vmul.f32 %v573, 0.1
  %v780 = vmul.f32 %v578, 0.1
  %v781 = vmul.f32 %v583, 0.1
  %v782 = vmul.f32 %v588, 0.1
  %v783 = vmul.f32 %v593, 0.1
  %v784 = vmul.f32 %v598, 0.1
  %v785 = vmul.f32 %v603, 0.1
  %v786 = vmul.f32 %v608, 0.1
  %v787 = vmul.f32 %v613, 0.1
  %v788 = vmul.f32 %v618, 0.1
  %v789 = vmul.f32 %v623, 0.1
  %v790 = vmul.f32 %v628, 0.1
  %v791 = vmul.f32 %v633, 0.1
  %v792 = vmul.f32 %v638, 0.1
  %v793 = vmul.f32 %v643, 0.1
  %v794 = vmul.f32 %v648, 0.1
  %v795 = vmul.f32 %v653, 0.1
  %v796 = vmul.f32 %v658, 0.1
  %v797 = vmul.f32 %v663, 0.1
  %v798 = vmul.f32 %v668, 0.1
  %v799 = vsel %vm671, %v353, %v735
  %v800 = vsel %vm672, %v358, %v736
  %v801 = vsel %vm673, %v363, %v737
  %v802 = vsel %vm674, %v368, %v738
  %v803 = vsel %vm675, %v373, %v739
  %v804 = vsel %vm676, %v378, %v740
  %v805 = vsel %vm677, %v383, %v741
  %v806 = vsel %vm678, %v388, %v742
  %v807 = vsel %vm679, %v393, %v743
  %v808 = vsel %vm680, %v398, %v744
  %v809 = vsel %vm681, %v403, %v745
  %v810 = vsel %vm682, %v408, %v746
  %v811 = vsel %vm683, %v413, %v747
  %v812 = vsel %vm684, %v418, %v748
  %v813 = vsel %vm685, %v423, %v749
  %v814 = vsel %vm686, %v428, %v750
  %v815 = vsel %vm687, %v433, %v751
  %v816 = vsel %vm688, %v438, %v752
  %v817 = vsel %vm689, %v443, %v753
  %v818 = vsel %vm690, %v448, %v754
  %v819 = vsel %vm691, %v453, %v755
  %v820 = vsel %vm692, %v458, %v756
  %v821 = vsel %vm693, %v463, %v757
  %v822 = vsel %vm694, %v468, %v758
  %v823 = vsel %vm695, %v473, %v759
  %v824 = vsel %vm696, %v478, %v760
  %v825 = vsel %vm697, %v483, %v761
  %v826 = vsel %vm698, %v488, %v762
  %v827 = vsel %vm699, %v493, %v763
  %v828 = vsel %vm700, %v498, %v764
  %v829 = vsel %vm701, %v503, %v765
  %v830 = vsel %vm702, %v508, %v766
  %v831 = vsel %vm703, %v513, %v767
  %v832 = vsel %vm704, %v518, %v768
  %v833 = vsel %vm705, %v523, %v769
  %v834 = vsel %vm706, %v528, %v770
  %v835 = vsel %vm707, %v533, %v771
  %v836 = vsel %vm708, %v538, %v772
  %v837 = vsel %vm709, %v543, %v773
  %v838 = vsel %vm710, %v548, %v774
  %v839 = vsel %vm711, %v553, %v775
  %v840 = vsel %vm712, %v558, %v776
  %v841 = vsel %vm713, %v563, %v777
  %v842 = vsel %vm714, %v568, %v778
  %v843 = vsel %vm715, %v573, %v779
  %v844 = vsel %vm716, %v578, %v780
  %v845 = vsel %vm717, %v583, %v781
  %v846 = vsel %vm718, %v588, %v782
  %v847 = vsel %vm719, %v593, %v783
  %v848 = vsel %vm720, %v598, %v784
  %v849 = vsel %vm721, %v603, %v785
  %v850 = vsel %vm722, %v608, %v786
  %v851 = vsel %vm723, %v613, %v787
  %v852 = vsel %vm724, %v618, %v788
  %v853 = vsel %vm725, %v623, %v789
  %v854 = vsel %vm726, %v628, %v790
  %v855 = vsel %vm727, %v633, %v791
  %v856 = vsel %vm728, %v638, %v792
  %v857 = vsel %vm729, %v643, %v793
  %v858 = vsel %vm730, %v648, %v794
  %v859 = vsel %vm731, %v653, %v795
  %v860 = vsel %vm732, %v658, %v796
  %v861 = vsel %vm733, %v663, %v797
  %v862 = vsel %vm734, %v668, %v798
  %vm863 = vcmask 195584
  %864 = vst.msk [vmem:[%s3] sm:$0xff] %vm863, %v799
  %865 = vst.msk [vmem:[%s3 + $0x8] sm:$0xff] %vm863, %v800
  %866 = vst.msk [vmem:[%s3 + $0x10] sm:$0xff] %vm863, %v801
  %867 = vst.msk [vmem:[%s3 + $0x18] sm:$0xff] %vm863, %v802
  %868 = vst.msk [vmem:[%s3 + $0x20] sm:$0xff] %vm863, %v803
  %869 = vst.msk [vmem:[%s3 + $0x28] sm:$0xff] %vm863, %v804
  %870 = vst.msk [vmem:[%s3 + $0x30] sm:$0xff] %vm863, %v805
  %871 = vst.msk [vmem:[%s3 + $0x38] sm:$0xff] %vm863, %v806
  %872 = vst.msk [vmem:[%s3 + $0x40] sm:$0xff] %vm863, %v807
  %873 = vst.msk [vmem:[%s3 + $0x48] sm:$0xff] %vm863, %v808
  %874 = vst.msk [vmem:[%s3 + $0x50] sm:$0xff] %vm863, %v809
  %875 = vst.msk [vmem:[%s3 + $0x58] sm:$0xff] %vm863, %v810
  %876 = vst.msk [vmem:[%s3 + $0x60] sm:$0xff] %vm863, %v811
  %877 = vst.msk [vmem:[%s3 + $0x68] sm:$0xff] %vm863, %v812
  %878 = vst.msk [vmem:[%s3 + $0x70] sm:$0xff] %vm863, %v813
  %879 = vst.msk [vmem:[%s3 + $0x78] sm:$0xff] %vm863, %v814
  %880 = vst.msk [vmem:[%s3 + $0x80] sm:$0xff] %vm863, %v815
  %881 = vst.msk [vmem:[%s3 + $0x88] sm:$0xff] %vm863, %v816
  %882 = vst.msk [vmem:[%s3 + $0x90] sm:$0xff] %vm863, %v817
  %883 = vst.msk [vmem:[%s3 + $0x98] sm:$0xff] %vm863, %v818
  %884 = vst.msk [vmem:[%s3 + $0xa0] sm:$0xff] %vm863, %v819
  %885 = vst.msk [vmem:[%s3 + $0xa8] sm:$0xff] %vm863, %v820
  %886 = vst.msk [vmem:[%s3 + $0xb0] sm:$0xff] %vm863, %v821
  %887 = vst.msk [vmem:[%s3 + $0xb8] sm:$0xff] %vm863, %v822
  %888 = vst.msk [vmem:[%s3 + $0xc0] sm:$0xff] %vm863, %v823
  %889 = vst.msk [vmem:[%s3 + $0xc8] sm:$0xff] %vm863, %v824
  %890 = vst.msk [vmem:[%s3 + $0xd0] sm:$0xff] %vm863, %v825
  %891 = vst.msk [vmem:[%s3 + $0xd8] sm:$0xff] %vm863, %v826
  %892 = vst.msk [vmem:[%s3 + $0xe0] sm:$0xff] %vm863, %v827
  %893 = vst.msk [vmem:[%s3 + $0xe8] sm:$0xff] %vm863, %v828
  %894 = vst.msk [vmem:[%s3 + $0xf0] sm:$0xff] %vm863, %v829
  %895 = vst.msk [vmem:[%s3 + $0xf8] sm:$0xff] %vm863, %v830
  %896 = vst.msk [vmem:[%s3 + $0x100] sm:$0xff] %vm863, %v831
  %897 = vst.msk [vmem:[%s3 + $0x108] sm:$0xff] %vm863, %v832
  %898 = vst.msk [vmem:[%s3 + $0x110] sm:$0xff] %vm863, %v833
  %899 = vst.msk [vmem:[%s3 + $0x118] sm:$0xff] %vm863, %v834
  %900 = vst.msk [vmem:[%s3 + $0x120] sm:$0xff] %vm863, %v835
  %901 = vst.msk [vmem:[%s3 + $0x128] sm:$0xff] %vm863, %v836
  %902 = vst.msk [vmem:[%s3 + $0x130] sm:$0xff] %vm863, %v837
  %903 = vst.msk [vmem:[%s3 + $0x138] sm:$0xff] %vm863, %v838
  %904 = vst.msk [vmem:[%s3 + $0x140] sm:$0xff] %vm863, %v839
  %905 = vst.msk [vmem:[%s3 + $0x148] sm:$0xff] %vm863, %v840
  %906 = vst.msk [vmem:[%s3 + $0x150] sm:$0xff] %vm863, %v841
  %907 = vst.msk [vmem:[%s3 + $0x158] sm:$0xff] %vm863, %v842
  %908 = vst.msk [vmem:[%s3 + $0x160] sm:$0xff] %vm863, %v843
  %909 = vst.msk [vmem:[%s3 + $0x168] sm:$0xff] %vm863, %v844
  %910 = vst.msk [vmem:[%s3 + $0x170] sm:$0xff] %vm863, %v845
  %911 = vst.msk [vmem:[%s3 + $0x178] sm:$0xff] %vm863, %v846
  %912 = vst.msk [vmem:[%s3 + $0x180] sm:$0xff] %vm863, %v847
  %913 = vst.msk [vmem:[%s3 + $0x188] sm:$0xff] %vm863, %v848
  %914 = vst.msk [vmem:[%s3 + $0x190] sm:$0xff] %vm863, %v849
  %915 = vst.msk [vmem:[%s3 + $0x198] sm:$0xff] %vm863, %v850
  %916 = vst.msk [vmem:[%s3 + $0x1a0] sm:$0xff] %vm863, %v851
  %917 = vst.msk [vmem:[%s3 + $0x1a8] sm:$0xff] %vm863, %v852
  %918 = vst.msk [vmem:[%s3 + $0x1b0] sm:$0xff] %vm863, %v853
  %919 = vst.msk [vmem:[%s3 + $0x1b8] sm:$0xff] %vm863, %v854
  %920 = vst.msk [vmem:[%s3 + $0x1c0] sm:$0xff] %vm863, %v855
  %921 = vst.msk [vmem:[%s3 + $0x1c8] sm:$0xff] %vm863, %v856
  %922 = vst.msk [vmem:[%s3 + $0x1d0] sm:$0xff] %vm863, %v857
  %923 = vst.msk [vmem:[%s3 + $0x1d8] sm:$0xff] %vm863, %v858
  %924 = vst.msk [vmem:[%s3 + $0x1e0] sm:$0xff] %vm863, %v859
  %925 = vst.msk [vmem:[%s3 + $0x1e8] sm:$0xff] %vm863, %v860
  %926 = vst.msk [vmem:[%s3 + $0x1f0] sm:$0xff] %vm863, %v861
  %927 = vst.msk [vmem:[%s3 + $0x1f8] sm:$0xff] %vm863, %v862
  // Predicated region
  $region14: #{_lambda_.12} parent=0 // pred_check
    _
  $region15: #{_lambda_.12} parent=0 // pred_check_branch
    %929 = sbr.rel (0) target = $region17
  $region16: #{_lambda_.12} parent=0 // pred_region
    _
  $region17: #{_lambda_.12} parent=0 // pred_fallthru
    _
  // Predicated region
  $region18: #{_lambda_.12} parent=0 // pred_check
    _
  $region19: #{_lambda_.12} parent=0 // pred_check_branch
    %931 = sbr.rel (0) target = $region21
  $region20: #{_lambda_.12} parent=0 // pred_region
    _
  $region21: #{_lambda_.12} parent=0 // pred_fallthru
    _

// kernel: _lambda_.13
$region0: #{_lambda_.13}
  #allocation0 [shape = 'u32[]', space=smem, size = 0x4, offset = 0x4, fixed_abs, tag = 'smem constant byte address 0x4 - core index']
  #allocation1 [shape = 'u32[144,128]{1,0:T(1,128)}', space=vmem, size = 0x12000, scoped, tag = 'internal scratch']
  %s0 = inlined_call_operand.vmem [shape: f32[512,216], index: 0, kind: input, shape index: {}]
  %s1 = inlined_call_operand.vmem [shape: f32[216,24], index: 1, kind: input, shape index: {}]
  %s2 = inlined_call_operand.vmem [shape: f32[1,24], index: 2, kind: input, shape index: {}]
  %s3 = inlined_call_operand.vmem [shape: f32[512,24], index: 3, kind: output, shape index: {}]
  %s4 = sld [smem:[#allocation0]]
  $region22: #{_lambda_.13} parent=0
    _
  %s6 = ssub.s32 1, %s4
  %s7 = scalar_select 0, %s6, %s4
  // Predicated region
  $region2: #{_lambda_.13} parent=0 // pred_check
    _
  $region3: #{_lambda_.13} parent=0 // pred_check_branch
    %9 = sbr.rel (0) target = $region5
  $region4: #{_lambda_.13} parent=0 // pred_region
    _
  $region5: #{_lambda_.13} parent=0 // pred_fallthru
    _
  // Predicated region
  $region6: #{_lambda_.13} parent=0 // pred_check
    _
  $region7: #{_lambda_.13} parent=0 // pred_check_branch
    %11 = sbr.rel (0) target = $region9
  $region8: #{_lambda_.13} parent=0 // pred_region
    _
  $region9: #{_lambda_.13} parent=0 // pred_fallthru
    _
  // Predicated region
  $region10: #{_lambda_.13} parent=0 // pred_check
    _
  $region11: #{_lambda_.13} parent=0 // pred_check_branch
    %13 = sbr.rel (0) target = $region13
  $region12: #{_lambda_.13} parent=0 // pred_region
    _
  $region13: #{_lambda_.13} parent=0 // pred_fallthru
    _
  %v14 = vld [vmem:[%s0] sm:$0xff]
  %v15 = vld [vmem:[%s0 + $0x8] sm:$0xff]
  %v16 = vld [vmem:[%s0 + $0x10] sm:$0xff]
  %v17 = vld [vmem:[%s0 + $0x18] sm:$0xff]
  %v18 = vld [vmem:[%s0 + $0x20] sm:$0xff]
  %v19 = vld [vmem:[%s0 + $0x28] sm:$0xff]
  %v20 = vld [vmem:[%s0 + $0x30] sm:$0xff]
  %v21 = vld [vmem:[%s0 + $0x38] sm:$0xff]
  %v22 = vld [vmem:[%s0 + $0x40] sm:$0xff]
  %v23 = vld [vmem:[%s0 + $0x48] sm:$0xff]
  %v24 = vld [vmem:[%s0 + $0x50] sm:$0xff]
  %v25 = vld [vmem:[%s0 + $0x58] sm:$0xff]
  %v26 = vld [vmem:[%s0 + $0x60] sm:$0xff]
  %v27 = vld [vmem:[%s0 + $0x68] sm:$0xff]
  %v28 = vld [vmem:[%s0 + $0x70] sm:$0xff]
  %v29 = vld [vmem:[%s0 + $0x78] sm:$0xff]
  %v30 = vld [vmem:[%s0 + $0x80] sm:$0xff]
  %v31 = vld [vmem:[%s0 + $0x88] sm:$0xff]
  %v32 = vld [vmem:[%s0 + $0x90] sm:$0xff]
  %v33 = vld [vmem:[%s0 + $0x98] sm:$0xff]
  %v34 = vld [vmem:[%s0 + $0xa0] sm:$0xff]
  %v35 = vld [vmem:[%s0 + $0xa8] sm:$0xff]
  %v36 = vld [vmem:[%s0 + $0xb0] sm:$0xff]
  %v37 = vld [vmem:[%s0 + $0xb8] sm:$0xff]
  %v38 = vld [vmem:[%s0 + $0xc0] sm:$0xff]
  %v39 = vld [vmem:[%s0 + $0xc8] sm:$0xff]
  %v40 = vld [vmem:[%s0 + $0xd0] sm:$0xff]
  %v41 = vld [vmem:[%s0 + $0xd8] sm:$0xff]
  %v42 = vld [vmem:[%s0 + $0xe0] sm:$0xff]
  %v43 = vld [vmem:[%s0 + $0xe8] sm:$0xff]
  %v44 = vld [vmem:[%s0 + $0xf0] sm:$0xff]
  %v45 = vld [vmem:[%s0 + $0xf8] sm:$0xff]
  %v46 = vld [vmem:[%s0 + $0x100] sm:$0xff]
  %v47 = vld [vmem:[%s0 + $0x108] sm:$0xff]
  %v48 = vld [vmem:[%s0 + $0x110] sm:$0xff]
  %v49 = vld [vmem:[%s0 + $0x118] sm:$0xff]
  %v50 = vld [vmem:[%s0 + $0x120] sm:$0xff]
  %v51 = vld [vmem:[%s0 + $0x128] sm:$0xff]
  %v52 = vld [vmem:[%s0 + $0x130] sm:$0xff]
  %v53 = vld [vmem:[%s0 + $0x138] sm:$0xff]
  %v54 = vld [vmem:[%s0 + $0x140] sm:$0xff]
  %v55 = vld [vmem:[%s0 + $0x148] sm:$0xff]
  %v56 = vld [vmem:[%s0 + $0x150] sm:$0xff]
  %v57 = vld [vmem:[%s0 + $0x158] sm:$0xff]
  %v58 = vld [vmem:[%s0 + $0x160] sm:$0xff]
  %v59 = vld [vmem:[%s0 + $0x168] sm:$0xff]
  %v60 = vld [vmem:[%s0 + $0x170] sm:$0xff]
  %v61 = vld [vmem:[%s0 + $0x178] sm:$0xff]
  %v62 = vld [vmem:[%s0 + $0x180] sm:$0xff]
  %v63 = vld [vmem:[%s0 + $0x188] sm:$0xff]
  %v64 = vld [vmem:[%s0 + $0x190] sm:$0xff]
  %v65 = vld [vmem:[%s0 + $0x198] sm:$0xff]
  %v66 = vld [vmem:[%s0 + $0x1a0] sm:$0xff]
  %v67 = vld [vmem:[%s0 + $0x1a8] sm:$0xff]
  %v68 = vld [vmem:[%s0 + $0x1b0] sm:$0xff]
  %v69 = vld [vmem:[%s0 + $0x1b8] sm:$0xff]
  %v70 = vld [vmem:[%s0 + $0x1c0] sm:$0xff]
  %v71 = vld [vmem:[%s0 + $0x1c8] sm:$0xff]
  %v72 = vld [vmem:[%s0 + $0x1d0] sm:$0xff]
  %v73 = vld [vmem:[%s0 + $0x1d8] sm:$0xff]
  %v74 = vld [vmem:[%s0 + $0x1e0] sm:$0xff]
  %v75 = vld [vmem:[%s0 + $0x1e8] sm:$0xff]
  %v76 = vld [vmem:[%s0 + $0x1f0] sm:$0xff]
  %v77 = vld [vmem:[%s0 + $0x1f8] sm:$0xff]
  %v78 = vld [vmem:[%s0 + $0x200] sm:$0xff]
  %v79 = vld [vmem:[%s0 + $0x208] sm:$0xff]
  %v80 = vld [vmem:[%s0 + $0x210] sm:$0xff]
  %v81 = vld [vmem:[%s0 + $0x218] sm:$0xff]
  %v82 = vld [vmem:[%s0 + $0x220] sm:$0xff]
  %v83 = vld [vmem:[%s0 + $0x228] sm:$0xff]
  %v84 = vld [vmem:[%s0 + $0x230] sm:$0xff]
  %v85 = vld [vmem:[%s0 + $0x238] sm:$0xff]
  %v86 = vld [vmem:[%s0 + $0x240] sm:$0xff]
  %v87 = vld [vmem:[%s0 + $0x248] sm:$0xff]
  %v88 = vld [vmem:[%s0 + $0x250] sm:$0xff]
  %v89 = vld [vmem:[%s0 + $0x258] sm:$0xff]
  %v90 = vld [vmem:[%s0 + $0x260] sm:$0xff]
  %v91 = vld [vmem:[%s0 + $0x268] sm:$0xff]
  %v92 = vld [vmem:[%s0 + $0x270] sm:$0xff]
  %v93 = vld [vmem:[%s0 + $0x278] sm:$0xff]
  %v94 = vld [vmem:[%s0 + $0x280] sm:$0xff]
  %v95 = vld [vmem:[%s0 + $0x288] sm:$0xff]
  %v96 = vld [vmem:[%s0 + $0x290] sm:$0xff]
  %v97 = vld [vmem:[%s0 + $0x298] sm:$0xff]
  %v98 = vld [vmem:[%s0 + $0x2a0] sm:$0xff]
  %v99 = vld [vmem:[%s0 + $0x2a8] sm:$0xff]
  %v100 = vld [vmem:[%s0 + $0x2b0] sm:$0xff]
  %v101 = vld [vmem:[%s0 + $0x2b8] sm:$0xff]
  %v102 = vld [vmem:[%s0 + $0x2c0] sm:$0xff]
  %v103 = vld [vmem:[%s0 + $0x2c8] sm:$0xff]
  %v104 = vld [vmem:[%s0 + $0x2d0] sm:$0xff]
  %v105 = vld [vmem:[%s0 + $0x2d8] sm:$0xff]
  %v106 = vld [vmem:[%s0 + $0x2e0] sm:$0xff]
  %v107 = vld [vmem:[%s0 + $0x2e8] sm:$0xff]
  %v108 = vld [vmem:[%s0 + $0x2f0] sm:$0xff]
  %v109 = vld [vmem:[%s0 + $0x2f8] sm:$0xff]
  %v110 = vld [vmem:[%s0 + $0x300] sm:$0xff]
  %v111 = vld [vmem:[%s0 + $0x308] sm:$0xff]
  %v112 = vld [vmem:[%s0 + $0x310] sm:$0xff]
  %v113 = vld [vmem:[%s0 + $0x318] sm:$0xff]
  %v114 = vld [vmem:[%s0 + $0x320] sm:$0xff]
  %v115 = vld [vmem:[%s0 + $0x328] sm:$0xff]
  %v116 = vld [vmem:[%s0 + $0x330] sm:$0xff]
  %v117 = vld [vmem:[%s0 + $0x338] sm:$0xff]
  %v118 = vld [vmem:[%s0 + $0x340] sm:$0xff]
  %v119 = vld [vmem:[%s0 + $0x348] sm:$0xff]
  %v120 = vld [vmem:[%s0 + $0x350] sm:$0xff]
  %v121 = vld [vmem:[%s0 + $0x358] sm:$0xff]
  %v122 = vld [vmem:[%s0 + $0x360] sm:$0xff]
  %v123 = vld [vmem:[%s0 + $0x368] sm:$0xff]
  %v124 = vld [vmem:[%s0 + $0x370] sm:$0xff]
  %v125 = vld [vmem:[%s0 + $0x378] sm:$0xff]
  %v126 = vld [vmem:[%s0 + $0x380] sm:$0xff]
  %v127 = vld [vmem:[%s0 + $0x388] sm:$0xff]
  %v128 = vld [vmem:[%s0 + $0x390] sm:$0xff]
  %v129 = vld [vmem:[%s0 + $0x398] sm:$0xff]
  %v130 = vld [vmem:[%s0 + $0x3a0] sm:$0xff]
  %v131 = vld [vmem:[%s0 + $0x3a8] sm:$0xff]
  %v132 = vld [vmem:[%s0 + $0x3b0] sm:$0xff]
  %v133 = vld [vmem:[%s0 + $0x3b8] sm:$0xff]
  %v134 = vld [vmem:[%s0 + $0x3c0] sm:$0xff]
  %v135 = vld [vmem:[%s0 + $0x3c8] sm:$0xff]
  %v136 = vld [vmem:[%s0 + $0x3d0] sm:$0xff]
  %v137 = vld [vmem:[%s0 + $0x3d8] sm:$0xff]
  %v138 = vld [vmem:[%s0 + $0x3e0] sm:$0xff]
  %v139 = vld [vmem:[%s0 + $0x3e8] sm:$0xff]
  %v140 = vld [vmem:[%s0 + $0x3f0] sm:$0xff]
  %v141 = vld [vmem:[%s0 + $0x3f8] sm:$0xff]
  %v142 = vld [vmem:[%s1] sm:$0xff]
  %v143 = vld [vmem:[%s1 + $0x8] sm:$0xff]
  %v144 = vld [vmem:[%s1 + $0x10] sm:$0xff]
  %v145 = vld [vmem:[%s1 + $0x18] sm:$0xff]
  %v146 = vld [vmem:[%s1 + $0x20] sm:$0xff]
  %v147 = vld [vmem:[%s1 + $0x28] sm:$0xff]
  %v148 = vld [vmem:[%s1 + $0x30] sm:$0xff]
  %v149 = vld [vmem:[%s1 + $0x38] sm:$0xff]
  %v150 = vld [vmem:[%s1 + $0x40] sm:$0xff]
  %v151 = vld [vmem:[%s1 + $0x48] sm:$0xff]
  %v152 = vld [vmem:[%s1 + $0x50] sm:$0xff]
  %v153 = vld [vmem:[%s1 + $0x58] sm:$0xff]
  %v154 = vld [vmem:[%s1 + $0x60] sm:$0xff]
  %v155 = vld [vmem:[%s1 + $0x68] sm:$0xff]
  %v156 = vld [vmem:[%s1 + $0x70] sm:$0xff]
  %v157 = vld [vmem:[%s1 + $0x78] sm:$0xff]
  %v158 = vld [vmem:[%s1 + $0x80] sm:$0xff]
  %v159 = vld [vmem:[%s1 + $0x88] sm:$0xff]
  %v160 = vld [vmem:[%s1 + $0x90] sm:$0xff]
  %v161 = vld [vmem:[%s1 + $0x98] sm:$0xff]
  %v162 = vld [vmem:[%s1 + $0xa0] sm:$0xff]
  %v163 = vld [vmem:[%s1 + $0xa8] sm:$0xff]
  %v164 = vld [vmem:[%s1 + $0xb0] sm:$0xff]
  %v165 = vld [vmem:[%s1 + $0xb8] sm:$0xff]
  %v166 = vld [vmem:[%s1 + $0xc0] sm:$0xff]
  %v167 = vld [vmem:[%s1 + $0xc8] sm:$0xff]
  %v168 = vld [vmem:[%s1 + $0xd0] sm:$0xff]
  %v169 = vld [vmem:[%s2] sm:$0x1]
  %v171 = vlaneseq
  %v172 = vshrl.u32 %v171, 7
  %v173 = vsub.s32 0, %v172
  %v174 = vrot.slane %v169, %v173
  %vm176 = vcmask 719872
  %v178 = vsel %vm176, %v15, 0
  %v181 = vsel %vm176, %v17, 0
  %v184 = vsel %vm176, %v19, 0
  %v187 = vsel %vm176, %v21, 0
  %v190 = vsel %vm176, %v23, 0
  %v193 = vsel %vm176, %v25, 0
  %v196 = vsel %vm176, %v27, 0
  %v199 = vsel %vm176, %v29, 0
  %v202 = vsel %vm176, %v31, 0
  %v205 = vsel %vm176, %v33, 0
  %v208 = vsel %vm176, %v35, 0
  %v211 = vsel %vm176, %v37, 0
  %v214 = vsel %vm176, %v39, 0
  %v217 = vsel %vm176, %v41, 0
  %v220 = vsel %vm176, %v43, 0
  %v223 = vsel %vm176, %v45, 0
  %v226 = vsel %vm176, %v47, 0
  %v229 = vsel %vm176, %v49, 0
  %v232 = vsel %vm176, %v51, 0
  %v235 = vsel %vm176, %v53, 0
  %v238 = vsel %vm176, %v55, 0
  %v241 = vsel %vm176, %v57, 0
  %v244 = vsel %vm176, %v59, 0
  %v247 = vsel %vm176, %v61, 0
  %v250 = vsel %vm176, %v63, 0
  %v253 = vsel %vm176, %v65, 0
  %v256 = vsel %vm176, %v67, 0
  %v259 = vsel %vm176, %v69, 0
  %v262 = vsel %vm176, %v71, 0
  %v265 = vsel %vm176, %v73, 0
  %v268 = vsel %vm176, %v75, 0
  %v271 = vsel %vm176, %v77, 0
  %v274 = vsel %vm176, %v79, 0
  %v277 = vsel %vm176, %v81, 0
  %v280 = vsel %vm176, %v83, 0
  %v283 = vsel %vm176, %v85, 0
  %v286 = vsel %vm176, %v87, 0
  %v289 = vsel %vm176, %v89, 0
  %v292 = vsel %vm176, %v91, 0
  %v295 = vsel %vm176, %v93, 0
  %v298 = vsel %vm176, %v95, 0
  %v301 = vsel %vm176, %v97, 0
  %v304 = vsel %vm176, %v99, 0
  %v307 = vsel %vm176, %v101, 0
  %v310 = vsel %vm176, %v103, 0
  %v313 = vsel %vm176, %v105, 0
  %v316 = vsel %vm176, %v107, 0
  %v319 = vsel %vm176, %v109, 0
  %v322 = vsel %vm176, %v111, 0
  %v325 = vsel %vm176, %v113, 0
  %v328 = vsel %vm176, %v115, 0
  %v331 = vsel %vm176, %v117, 0
  %v334 = vsel %vm176, %v119, 0
  %v337 = vsel %vm176, %v121, 0
  %v340 = vsel %vm176, %v123, 0
  %v343 = vsel %vm176, %v125, 0
  %v346 = vsel %vm176, %v127, 0
  %v349 = vsel %vm176, %v129, 0
  %v352 = vsel %vm176, %v131, 0
  %v355 = vsel %vm176, %v133, 0
  %v358 = vsel %vm176, %v135, 0
  %v361 = vsel %vm176, %v137, 0
  %v364 = vsel %vm176, %v139, 0
  %v367 = vsel %vm176, %v141, 0
  %369 = vmatprep.subr.mxu0 0.0
  %370 = vmatpush1.msra.mxu0 %v142
  %371 = vmatprep.subr.mxu0 0.0
  %372 = vmatpush1.msra.mxu0 %v143
  %373 = vmatprep.subr.mxu0 0.0
  %374 = vmatpush1.msra.mxu0 %v144
  %375 = vmatprep.subr.mxu0 0.0
  %376 = vmatpush1.msra.mxu0 %v145
  %377 = vmatprep.subr.mxu0 0.0
  %378 = vmatpush1.msra.mxu0 %v146
  %379 = vmatprep.subr.mxu0 0.0
  %380 = vmatpush1.msra.mxu0 %v147
  %381 = vmatprep.subr.mxu0 0.0
  %382 = vmatpush1.msra.mxu0 %v148
  %383 = vmatprep.subr.mxu0 0.0
  %384 = vmatpush1.msra.mxu0 %v149
  %385 = vmatprep.subr.mxu0 0.0
  %386 = vmatpush1.msra.mxu0 %v150
  %387 = vmatprep.subr.mxu0 0.0
  %388 = vmatpush1.msra.mxu0 %v151
  %389 = vmatprep.subr.mxu0 0.0
  %390 = vmatpush1.msra.mxu0 %v152
  %391 = vmatprep.subr.mxu0 0.0
  %392 = vmatpush1.msra.mxu0 %v153
  %393 = vmatprep.subr.mxu0 0.0
  %394 = vmatpush1.msra.mxu0 %v154
  %395 = vmatprep.subr.mxu0 0.0
  %396 = vmatpush1.msra.mxu0 %v155
  %397 = vmatprep.subr.mxu0 0.0
  %398 = vmatpush1.msra.mxu0 %v156
  %399 = vmatprep.subr.mxu0 0.0
  %400 = vmatpush1.msra.mxu0 %v157
  %401 = vmatprep.subr.mxu0 0.0
  %402 = vmatpush1.msra.mxu0 %v158
  %403 = vmatprep.subr.mxu0 0.0
  %404 = vmatpush1.msra.mxu0 %v159
  %405 = vmatprep.subr.mxu0 0.0
  %406 = vmatpush1.msra.mxu0 %v160
  %407 = vmatprep.subr.mxu0 0.0
  %408 = vmatpush1.msra.mxu0 %v161
  %409 = vmatprep.subr.mxu0 0.0
  %410 = vmatpush1.msra.mxu0 %v162
  %411 = vmatprep.subr.mxu0 0.0
  %412 = vmatpush1.msra.mxu0 %v163
  %413 = vmatprep.subr.mxu0 0.0
  %414 = vmatpush1.msra.mxu0 %v164
  %415 = vmatprep.subr.mxu0 0.0
  %416 = vmatpush1.msra.mxu0 %v165
  %417 = vmatprep.subr.mxu0 0.0
  %418 = vmatpush1.msra.mxu0 %v166
  %419 = vmatprep.subr.mxu0 0.0
  %420 = vmatpush1.msra.mxu0 %v167
  %421 = vmatprep.subr.mxu0 0.0
  %422 = vmatpush1.msra.mxu0 %v168
  %423 = vmatprep.subr.mxu0 0.0
  %424 = vmatpush1.msra.mxu0 0.0
  %425 = vmatprep.subr.mxu0 0.0
  %426 = vmatpush1.msra.mxu0 0.0
  %427 = vmatprep.subr.mxu0 0.0
  %428 = vmatpush1.msra.mxu0 0.0
  %429 = vmatprep.subr.mxu0 0.0
  %430 = vmatpush1.msra.mxu0 0.0
  %431 = vmatprep.subr.mxu0 0.0
  %432 = vmatpush1.msra.mxu0 0.0
  %433 = vmatprep.mubr.f32.mxu0 %v178
  %434 = vmatmul.mubr.f32.gmra.mrb[0].mxu0 %v14
  %v435 = vpop.f32.mrb[0].mxu0
  %v436 = vadd.f32 %v174, %v435
  %v437 = vpop.f32.mrb[0].mxu0
  %438 = vmatprep.mubr.f32.mxu0 %v181
  %439 = vmatmul.mubr.f32.gmra.mrb[0].mxu0 %v16
  %v440 = vpop.f32.mrb[0].mxu0
  %v441 = vadd.f32 %v174, %v440
  %v442 = vpop.f32.mrb[0].mxu0
  %443 = vmatprep.mubr.f32.mxu0 %v184
  %444 = vmatmul.mubr.f32.gmra.mrb[0].mxu0 %v18
  %v445 = vpop.f32.mrb[0].mxu0
  %v446 = vadd.f32 %v174, %v445
  %v447 = vpop.f32.mrb[0].mxu0
  %448 = vmatprep.mubr.f32.mxu0 %v187
  %449 = vmatmul.mubr.f32.gmra.mrb[0].mxu0 %v20
  %v450 = vpop.f32.mrb[0].mxu0
  %v451 = vadd.f32 %v174, %v450
  %v452 = vpop.f32.mrb[0].mxu0
  %453 = vmatprep.mubr.f32.mxu0 %v190
  %454 = vmatmul.mubr.f32.gmra.mrb[0].mxu0 %v22
  %v455 = vpop.f32.mrb[0].mxu0
  %v456 = vadd.f32 %v174, %v455
  %v457 = vpop.f32.mrb[0].mxu0
  %458 = vmatprep.mubr.f32.mxu0 %v193
  %459 = vmatmul.mubr.f32.gmra.mrb[0].mxu0 %v24
  %v460 = vpop.f32.mrb[0].mxu0
  %v461 = vadd.f32 %v174, %v460
  %v462 = vpop.f32.mrb[0].mxu0
  %463 = vmatprep.mubr.f32.mxu0 %v196
  %464 = vmatmul.mubr.f32.gmra.mrb[0].mxu0 %v26
  %v465 = vpop.f32.mrb[0].mxu0
  %v466 = vadd.f32 %v174, %v465
  %v467 = vpop.f32.mrb[0].mxu0
  %468 = vmatprep.mubr.f32.mxu0 %v199
  %469 = vmatmul.mubr.f32.gmra.mrb[0].mxu0 %v28
  %v470 = vpop.f32.mrb[0].mxu0
  %v471 = vadd.f32 %v174, %v470
  %v472 = vpop.f32.mrb[0].mxu0
  %473 = vmatprep.mubr.f32.mxu0 %v202
  %474 = vmatmul.mubr.f32.gmra.mrb[0].mxu0 %v30
  %v475 = vpop.f32.mrb[0].mxu0
  %v476 = vadd.f32 %v174, %v475
  %v477 = vpop.f32.mrb[0].mxu0
  %478 = vmatprep.mubr.f32.mxu0 %v205
  %479 = vmatmul.mubr.f32.gmra.mrb[0].mxu0 %v32
  %v480 = vpop.f32.mrb[0].mxu0
  %v481 = vadd.f32 %v174, %v480
  %v482 = vpop.f32.mrb[0].mxu0
  %483 = vmatprep.mubr.f32.mxu0 %v208
  %484 = vmatmul.mubr.f32.gmra.mrb[0].mxu0 %v34
  %v485 = vpop.f32.mrb[0].mxu0
  %v486 = vadd.f32 %v174, %v485
  %v487 = vpop.f32.mrb[0].mxu0
  %488 = vmatprep.mubr.f32.mxu0 %v211
  %489 = vmatmul.mubr.f32.gmra.mrb[0].mxu0 %v36
  %v490 = vpop.f32.mrb[0].mxu0
  %v491 = vadd.f32 %v174, %v490
  %v492 = vpop.f32.mrb[0].mxu0
  %493 = vmatprep.mubr.f32.mxu0 %v214
  %494 = vmatmul.mubr.f32.gmra.mrb[0].mxu0 %v38
  %v495 = vpop.f32.mrb[0].mxu0
  %v496 = vadd.f32 %v174, %v495
  %v497 = vpop.f32.mrb[0].mxu0
  %498 = vmatprep.mubr.f32.mxu0 %v217
  %499 = vmatmul.mubr.f32.gmra.mrb[0].mxu0 %v40
  %v500 = vpop.f32.mrb[0].mxu0
  %v501 = vadd.f32 %v174, %v500
  %v502 = vpop.f32.mrb[0].mxu0
  %503 = vmatprep.mubr.f32.mxu0 %v220
  %504 = vmatmul.mubr.f32.gmra.mrb[0].mxu0 %v42
  %v505 = vpop.f32.mrb[0].mxu0
  %v506 = vadd.f32 %v174, %v505
  %v507 = vpop.f32.mrb[0].mxu0
  %508 = vmatprep.mubr.f32.mxu0 %v223
  %509 = vmatmul.mubr.f32.gmra.mrb[0].mxu0 %v44
  %v510 = vpop.f32.mrb[0].mxu0
  %v511 = vadd.f32 %v174, %v510
  %v512 = vpop.f32.mrb[0].mxu0
  %513 = vmatprep.mubr.f32.mxu0 %v226
  %514 = vmatmul.mubr.f32.gmra.mrb[0].mxu0 %v46
  %v515 = vpop.f32.mrb[0].mxu0
  %v516 = vadd.f32 %v174, %v515
  %v517 = vpop.f32.mrb[0].mxu0
  %518 = vmatprep.mubr.f32.mxu0 %v229
  %519 = vmatmul.mubr.f32.gmra.mrb[0].mxu0 %v48
  %v520 = vpop.f32.mrb[0].mxu0
  %v521 = vadd.f32 %v174, %v520
  %v522 = vpop.f32.mrb[0].mxu0
  %523 = vmatprep.mubr.f32.mxu0 %v232
  %524 = vmatmul.mubr.f32.gmra.mrb[0].mxu0 %v50
  %v525 = vpop.f32.mrb[0].mxu0
  %v526 = vadd.f32 %v174, %v525
  %v527 = vpop.f32.mrb[0].mxu0
  %528 = vmatprep.mubr.f32.mxu0 %v235
  %529 = vmatmul.mubr.f32.gmra.mrb[0].mxu0 %v52
  %v530 = vpop.f32.mrb[0].mxu0
  %v531 = vadd.f32 %v174, %v530
  %v532 = vpop.f32.mrb[0].mxu0
  %533 = vmatprep.mubr.f32.mxu0 %v238
  %534 = vmatmul.mubr.f32.gmra.mrb[0].mxu0 %v54
  %v535 = vpop.f32.mrb[0].mxu0
  %v536 = vadd.f32 %v174, %v535
  %v537 = vpop.f32.mrb[0].mxu0
  %538 = vmatprep.mubr.f32.mxu0 %v241
  %539 = vmatmul.mubr.f32.gmra.mrb[0].mxu0 %v56
  %v540 = vpop.f32.mrb[0].mxu0
  %v541 = vadd.f32 %v174, %v540
  %v542 = vpop.f32.mrb[0].mxu0
  %543 = vmatprep.mubr.f32.mxu0 %v244
  %544 = vmatmul.mubr.f32.gmra.mrb[0].mxu0 %v58
  %v545 = vpop.f32.mrb[0].mxu0
  %v546 = vadd.f32 %v174, %v545
  %v547 = vpop.f32.mrb[0].mxu0
  %548 = vmatprep.mubr.f32.mxu0 %v247
  %549 = vmatmul.mubr.f32.gmra.mrb[0].mxu0 %v60
  %v550 = vpop.f32.mrb[0].mxu0
  %v551 = vadd.f32 %v174, %v550
  %v552 = vpop.f32.mrb[0].mxu0
  %553 = vmatprep.mubr.f32.mxu0 %v250
  %554 = vmatmul.mubr.f32.gmra.mrb[0].mxu0 %v62
  %v555 = vpop.f32.mrb[0].mxu0
  %v556 = vadd.f32 %v174, %v555
  %v557 = vpop.f32.mrb[0].mxu0
  %558 = vmatprep.mubr.f32.mxu0 %v253
  %559 = vmatmul.mubr.f32.gmra.mrb[0].mxu0 %v64
  %v560 = vpop.f32.mrb[0].mxu0
  %v561 = vadd.f32 %v174, %v560
  %v562 = vpop.f32.mrb[0].mxu0
  %563 = vmatprep.mubr.f32.mxu0 %v256
  %564 = vmatmul.mubr.f32.gmra.mrb[0].mxu0 %v66
  %v565 = vpop.f32.mrb[0].mxu0
  %v566 = vadd.f32 %v174, %v565
  %v567 = vpop.f32.mrb[0].mxu0
  %568 = vmatprep.mubr.f32.mxu0 %v259
  %569 = vmatmul.mubr.f32.gmra.mrb[0].mxu0 %v68
  %v570 = vpop.f32.mrb[0].mxu0
  %v571 = vadd.f32 %v174, %v570
  %v572 = vpop.f32.mrb[0].mxu0
  %573 = vmatprep.mubr.f32.mxu0 %v262
  %574 = vmatmul.mubr.f32.gmra.mrb[0].mxu0 %v70
  %v575 = vpop.f32.mrb[0].mxu0
  %v576 = vadd.f32 %v174, %v575
  %v577 = vpop.f32.mrb[0].mxu0
  %578 = vmatprep.mubr.f32.mxu0 %v265
  %579 = vmatmul.mubr.f32.gmra.mrb[0].mxu0 %v72
  %v580 = vpop.f32.mrb[0].mxu0
  %v581 = vadd.f32 %v174, %v580
  %v582 = vpop.f32.mrb[0].mxu0
  %583 = vmatprep.mubr.f32.mxu0 %v268
  %584 = vmatmul.mubr.f32.gmra.mrb[0].mxu0 %v74
  %v585 = vpop.f32.mrb[0].mxu0
  %v586 = vadd.f32 %v174, %v585
  %v587 = vpop.f32.mrb[0].mxu0
  %588 = vmatprep.mubr.f32.mxu0 %v271
  %589 = vmatmul.mubr.f32.gmra.mrb[0].mxu0 %v76
  %v590 = vpop.f32.mrb[0].mxu0
  %v591 = vadd.f32 %v174, %v590
  %v592 = vpop.f32.mrb[0].mxu0
  %593 = vmatprep.mubr.f32.mxu0 %v274
  %594 = vmatmul.mubr.f32.gmra.mrb[0].mxu0 %v78
  %v595 = vpop.f32.mrb[0].mxu0
  %v596 = vadd.f32 %v174, %v595
  %v597 = vpop.f32.mrb[0].mxu0
  %598 = vmatprep.mubr.f32.mxu0 %v277
  %599 = vmatmul.mubr.f32.gmra.mrb[0].mxu0 %v80
  %v600 = vpop.f32.mrb[0].mxu0
  %v601 = vadd.f32 %v174, %v600
  %v602 = vpop.f32.mrb[0].mxu0
  %603 = vmatprep.mubr.f32.mxu0 %v280
  %604 = vmatmul.mubr.f32.gmra.mrb[0].mxu0 %v82
  %v605 = vpop.f32.mrb[0].mxu0
  %v606 = vadd.f32 %v174, %v605
  %v607 = vpop.f32.mrb[0].mxu0
  %608 = vmatprep.mubr.f32.mxu0 %v283
  %609 = vmatmul.mubr.f32.gmra.mrb[0].mxu0 %v84
  %v610 = vpop.f32.mrb[0].mxu0
  %v611 = vadd.f32 %v174, %v610
  %v612 = vpop.f32.mrb[0].mxu0
  %613 = vmatprep.mubr.f32.mxu0 %v286
  %614 = vmatmul.mubr.f32.gmra.mrb[0].mxu0 %v86
  %v615 = vpop.f32.mrb[0].mxu0
  %v616 = vadd.f32 %v174, %v615
  %v617 = vpop.f32.mrb[0].mxu0
  %618 = vmatprep.mubr.f32.mxu0 %v289
  %619 = vmatmul.mubr.f32.gmra.mrb[0].mxu0 %v88
  %v620 = vpop.f32.mrb[0].mxu0
  %v621 = vadd.f32 %v174, %v620
  %v622 = vpop.f32.mrb[0].mxu0
  %623 = vmatprep.mubr.f32.mxu0 %v292
  %624 = vmatmul.mubr.f32.gmra.mrb[0].mxu0 %v90
  %v625 = vpop.f32.mrb[0].mxu0
  %v626 = vadd.f32 %v174, %v625
  %v627 = vpop.f32.mrb[0].mxu0
  %628 = vmatprep.mubr.f32.mxu0 %v295
  %629 = vmatmul.mubr.f32.gmra.mrb[0].mxu0 %v92
  %v630 = vpop.f32.mrb[0].mxu0
  %v631 = vadd.f32 %v174, %v630
  %v632 = vpop.f32.mrb[0].mxu0
  %633 = vmatprep.mubr.f32.mxu0 %v298
  %634 = vmatmul.mubr.f32.gmra.mrb[0].mxu0 %v94
  %v635 = vpop.f32.mrb[0].mxu0
  %v636 = vadd.f32 %v174, %v635
  %v637 = vpop.f32.mrb[0].mxu0
  %638 = vmatprep.mubr.f32.mxu0 %v301
  %639 = vmatmul.mubr.f32.gmra.mrb[0].mxu0 %v96
  %v640 = vpop.f32.mrb[0].mxu0
  %v641 = vadd.f32 %v174, %v640
  %v642 = vpop.f32.mrb[0].mxu0
  %643 = vmatprep.mubr.f32.mxu0 %v304
  %644 = vmatmul.mubr.f32.gmra.mrb[0].mxu0 %v98
  %v645 = vpop.f32.mrb[0].mxu0
  %v646 = vadd.f32 %v174, %v645
  %v647 = vpop.f32.mrb[0].mxu0
  %648 = vmatprep.mubr.f32.mxu0 %v307
  %649 = vmatmul.mubr.f32.gmra.mrb[0].mxu0 %v100
  %v650 = vpop.f32.mrb[0].mxu0
  %v651 = vadd.f32 %v174, %v650
  %v652 = vpop.f32.mrb[0].mxu0
  %653 = vmatprep.mubr.f32.mxu0 %v310
  %654 = vmatmul.mubr.f32.gmra.mrb[0].mxu0 %v102
  %v655 = vpop.f32.mrb[0].mxu0
  %v656 = vadd.f32 %v174, %v655
  %v657 = vpop.f32.mrb[0].mxu0
  %658 = vmatprep.mubr.f32.mxu0 %v313
  %659 = vmatmul.mubr.f32.gmra.mrb[0].mxu0 %v104
  %v660 = vpop.f32.mrb[0].mxu0
  %v661 = vadd.f32 %v174, %v660
  %v662 = vpop.f32.mrb[0].mxu0
  %663 = vmatprep.mubr.f32.mxu0 %v316
  %664 = vmatmul.mubr.f32.gmra.mrb[0].mxu0 %v106
  %v665 = vpop.f32.mrb[0].mxu0
  %v666 = vadd.f32 %v174, %v665
  %v667 = vpop.f32.mrb[0].mxu0
  %668 = vmatprep.mubr.f32.mxu0 %v319
  %669 = vmatmul.mubr.f32.gmra.mrb[0].mxu0 %v108
  %v670 = vpop.f32.mrb[0].mxu0
  %v671 = vadd.f32 %v174, %v670
  %v672 = vpop.f32.mrb[0].mxu0
  %673 = vmatprep.mubr.f32.mxu0 %v322
  %674 = vmatmul.mubr.f32.gmra.mrb[0].mxu0 %v110
  %v675 = vpop.f32.mrb[0].mxu0
  %v676 = vadd.f32 %v174, %v675
  %v677 = vpop.f32.mrb[0].mxu0
  %678 = vmatprep.mubr.f32.mxu0 %v325
  %679 = vmatmul.mubr.f32.gmra.mrb[0].mxu0 %v112
  %v680 = vpop.f32.mrb[0].mxu0
  %v681 = vadd.f32 %v174, %v680
  %v682 = vpop.f32.mrb[0].mxu0
  %683 = vmatprep.mubr.f32.mxu0 %v328
  %684 = vmatmul.mubr.f32.gmra.mrb[0].mxu0 %v114
  %v685 = vpop.f32.mrb[0].mxu0
  %v686 = vadd.f32 %v174, %v685
  %v687 = vpop.f32.mrb[0].mxu0
  %688 = vmatprep.mubr.f32.mxu0 %v331
  %689 = vmatmul.mubr.f32.gmra.mrb[0].mxu0 %v116
  %v690 = vpop.f32.mrb[0].mxu0
  %v691 = vadd.f32 %v174, %v690
  %v692 = vpop.f32.mrb[0].mxu0
  %693 = vmatprep.mubr.f32.mxu0 %v334
  %694 = vmatmul.mubr.f32.gmra.mrb[0].mxu0 %v118
  %v695 = vpop.f32.mrb[0].mxu0
  %v696 = vadd.f32 %v174, %v695
  %v697 = vpop.f32.mrb[0].mxu0
  %698 = vmatprep.mubr.f32.mxu0 %v337
  %699 = vmatmul.mubr.f32.gmra.mrb[0].mxu0 %v120
  %v700 = vpop.f32.mrb[0].mxu0
  %v701 = vadd.f32 %v174, %v700
  %v702 = vpop.f32.mrb[0].mxu0
  %703 = vmatprep.mubr.f32.mxu0 %v340
  %704 = vmatmul.mubr.f32.gmra.mrb[0].mxu0 %v122
  %v705 = vpop.f32.mrb[0].mxu0
  %v706 = vadd.f32 %v174, %v705
  %v707 = vpop.f32.mrb[0].mxu0
  %708 = vmatprep.mubr.f32.mxu0 %v343
  %709 = vmatmul.mubr.f32.gmra.mrb[0].mxu0 %v124
  %v710 = vpop.f32.mrb[0].mxu0
  %v711 = vadd.f32 %v174, %v710
  %v712 = vpop.f32.mrb[0].mxu0
  %713 = vmatprep.mubr.f32.mxu0 %v346
  %714 = vmatmul.mubr.f32.gmra.mrb[0].mxu0 %v126
  %v715 = vpop.f32.mrb[0].mxu0
  %v716 = vadd.f32 %v174, %v715
  %v717 = vpop.f32.mrb[0].mxu0
  %718 = vmatprep.mubr.f32.mxu0 %v349
  %719 = vmatmul.mubr.f32.gmra.mrb[0].mxu0 %v128
  %v720 = vpop.f32.mrb[0].mxu0
  %v721 = vadd.f32 %v174, %v720
  %v722 = vpop.f32.mrb[0].mxu0
  %723 = vmatprep.mubr.f32.mxu0 %v352
  %724 = vmatmul.mubr.f32.gmra.mrb[0].mxu0 %v130
  %v725 = vpop.f32.mrb[0].mxu0
  %v726 = vadd.f32 %v174, %v725
  %v727 = vpop.f32.mrb[0].mxu0
  %728 = vmatprep.mubr.f32.mxu0 %v355
  %729 = vmatmul.mubr.f32.gmra.mrb[0].mxu0 %v132
  %v730 = vpop.f32.mrb[0].mxu0
  %v731 = vadd.f32 %v174, %v730
  %v732 = vpop.f32.mrb[0].mxu0
  %733 = vmatprep.mubr.f32.mxu0 %v358
  %734 = vmatmul.mubr.f32.gmra.mrb[0].mxu0 %v134
  %v735 = vpop.f32.mrb[0].mxu0
  %v736 = vadd.f32 %v174, %v735
  %v737 = vpop.f32.mrb[0].mxu0
  %738 = vmatprep.mubr.f32.mxu0 %v361
  %739 = vmatmul.mubr.f32.gmra.mrb[0].mxu0 %v136
  %v740 = vpop.f32.mrb[0].mxu0
  %v741 = vadd.f32 %v174, %v740
  %v742 = vpop.f32.mrb[0].mxu0
  %743 = vmatprep.mubr.f32.mxu0 %v364
  %744 = vmatmul.mubr.f32.gmra.mrb[0].mxu0 %v138
  %v745 = vpop.f32.mrb[0].mxu0
  %v746 = vadd.f32 %v174, %v745
  %v747 = vpop.f32.mrb[0].mxu0
  %748 = vmatprep.mubr.f32.mxu0 %v367
  %749 = vmatmul.mubr.f32.gmra.mrb[0].mxu0 %v140
  %v750 = vpop.f32.mrb[0].mxu0
  %v751 = vadd.f32 %v174, %v750
  %v752 = vpop.f32.mrb[0].mxu0
  %753 = vdwg.mxu0
  %vm754 = vcmp.ge.f32.partialorder %v436, 0.0
  %vm755 = vcmp.ge.f32.partialorder %v441, 0.0
  %vm756 = vcmp.ge.f32.partialorder %v446, 0.0
  %vm757 = vcmp.ge.f32.partialorder %v451, 0.0
  %vm758 = vcmp.ge.f32.partialorder %v456, 0.0
  %vm759 = vcmp.ge.f32.partialorder %v461, 0.0
  %vm760 = vcmp.ge.f32.partialorder %v466, 0.0
  %vm761 = vcmp.ge.f32.partialorder %v471, 0.0
  %vm762 = vcmp.ge.f32.partialorder %v476, 0.0
  %vm763 = vcmp.ge.f32.partialorder %v481, 0.0
  %vm764 = vcmp.ge.f32.partialorder %v486, 0.0
  %vm765 = vcmp.ge.f32.partialorder %v491, 0.0
  %vm766 = vcmp.ge.f32.partialorder %v496, 0.0
  %vm767 = vcmp.ge.f32.partialorder %v501, 0.0
  %vm768 = vcmp.ge.f32.partialorder %v506, 0.0
  %vm769 = vcmp.ge.f32.partialorder %v511, 0.0
  %vm770 = vcmp.ge.f32.partialorder %v516, 0.0
  %vm771 = vcmp.ge.f32.partialorder %v521, 0.0
  %vm772 = vcmp.ge.f32.partialorder %v526, 0.0
  %vm773 = vcmp.ge.f32.partialorder %v531, 0.0
  %vm774 = vcmp.ge.f32.partialorder %v536, 0.0
  %vm775 = vcmp.ge.f32.partialorder %v541, 0.0
  %vm776 = vcmp.ge.f32.partialorder %v546, 0.0
  %vm777 = vcmp.ge.f32.partialorder %v551, 0.0
  %vm778 = vcmp.ge.f32.partialorder %v556, 0.0
  %vm779 = vcmp.ge.f32.partialorder %v561, 0.0
  %vm780 = vcmp.ge.f32.partialorder %v566, 0.0
  %vm781 = vcmp.ge.f32.partialorder %v571, 0.0
  %vm782 = vcmp.ge.f32.partialorder %v576, 0.0
  %vm783 = vcmp.ge.f32.partialorder %v581, 0.0
  %vm784 = vcmp.ge.f32.partialorder %v586, 0.0
  %vm785 = vcmp.ge.f32.partialorder %v591, 0.0
  %vm786 = vcmp.ge.f32.partialorder %v596, 0.0
  %vm787 = vcmp.ge.f32.partialorder %v601, 0.0
  %vm788 = vcmp.ge.f32.partialorder %v606, 0.0
  %vm789 = vcmp.ge.f32.partialorder %v611, 0.0
  %vm790 = vcmp.ge.f32.partialorder %v616, 0.0
  %vm791 = vcmp.ge.f32.partialorder %v621, 0.0
  %vm792 = vcmp.ge.f32.partialorder %v626, 0.0
  %vm793 = vcmp.ge.f32.partialorder %v631, 0.0
  %vm794 = vcmp.ge.f32.partialorder %v636, 0.0
  %vm795 = vcmp.ge.f32.partialorder %v641, 0.0
  %vm796 = vcmp.ge.f32.partialorder %v646, 0.0
  %vm797 = vcmp.ge.f32.partialorder %v651, 0.0
  %vm798 = vcmp.ge.f32.partialorder %v656, 0.0
  %vm799 = vcmp.ge.f32.partialorder %v661, 0.0
  %vm800 = vcmp.ge.f32.partialorder %v666, 0.0
  %vm801 = vcmp.ge.f32.partialorder %v671, 0.0
  %vm802 = vcmp.ge.f32.partialorder %v676, 0.0
  %vm803 = vcmp.ge.f32.partialorder %v681, 0.0
  %vm804 = vcmp.ge.f32.partialorder %v686, 0.0
  %vm805 = vcmp.ge.f32.partialorder %v691, 0.0
  %vm806 = vcmp.ge.f32.partialorder %v696, 0.0
  %vm807 = vcmp.ge.f32.partialorder %v701, 0.0
  %vm808 = vcmp.ge.f32.partialorder %v706, 0.0
  %vm809 = vcmp.ge.f32.partialorder %v711, 0.0
  %vm810 = vcmp.ge.f32.partialorder %v716, 0.0
  %vm811 = vcmp.ge.f32.partialorder %v721, 0.0
  %vm812 = vcmp.ge.f32.partialorder %v726, 0.0
  %vm813 = vcmp.ge.f32.partialorder %v731, 0.0
  %vm814 = vcmp.ge.f32.partialorder %v736, 0.0
  %vm815 = vcmp.ge.f32.partialorder %v741, 0.0
  %vm816 = vcmp.ge.f32.partialorder %v746, 0.0
  %vm817 = vcmp.ge.f32.partialorder %v751, 0.0
  %v818 = vmul.f32 %v436, 0.1
  %v819 = vmul.f32 %v441, 0.1
  %v820 = vmul.f32 %v446, 0.1
  %v821 = vmul.f32 %v451, 0.1
  %v822 = vmul.f32 %v456, 0.1
  %v823 = vmul.f32 %v461, 0.1
  %v824 = vmul.f32 %v466, 0.1
  %v825 = vmul.f32 %v471, 0.1
  %v826 = vmul.f32 %v476, 0.1
  %v827 = vmul.f32 %v481, 0.1
  %v828 = vmul.f32 %v486, 0.1
  %v829 = vmul.f32 %v491, 0.1
  %v830 = vmul.f32 %v496, 0.1
  %v831 = vmul.f32 %v501, 0.1
  %v832 = vmul.f32 %v506, 0.1
  %v833 = vmul.f32 %v511, 0.1
  %v834 = vmul.f32 %v516, 0.1
  %v835 = vmul.f32 %v521, 0.1
  %v836 = vmul.f32 %v526, 0.1
  %v837 = vmul.f32 %v531, 0.1
  %v838 = vmul.f32 %v536, 0.1
  %v839 = vmul.f32 %v541, 0.1
  %v840 = vmul.f32 %v546, 0.1
  %v841 = vmul.f32 %v551, 0.1
  %v842 = vmul.f32 %v556, 0.1
  %v843 = vmul.f32 %v561, 0.1
  %v844 = vmul.f32 %v566, 0.1
  %v845 = vmul.f32 %v571, 0.1
  %v846 = vmul.f32 %v576, 0.1
  %v847 = vmul.f32 %v581, 0.1
  %v848 = vmul.f32 %v586, 0.1
  %v849 = vmul.f32 %v591, 0.1
  %v850 = vmul.f32 %v596, 0.1
  %v851 = vmul.f32 %v601, 0.1
  %v852 = vmul.f32 %v606, 0.1
  %v853 = vmul.f32 %v611, 0.1
  %v854 = vmul.f32 %v616, 0.1
  %v855 = vmul.f32 %v621, 0.1
  %v856 = vmul.f32 %v626, 0.1
  %v857 = vmul.f32 %v631, 0.1
  %v858 = vmul.f32 %v636, 0.1
  %v859 = vmul.f32 %v641, 0.1
  %v860 = vmul.f32 %v646, 0.1
  %v861 = vmul.f32 %v651, 0.1
  %v862 = vmul.f32 %v656, 0.1
  %v863 = vmul.f32 %v661, 0.1
  %v864 = vmul.f32 %v666, 0.1
  %v865 = vmul.f32 %v671, 0.1
  %v866 = vmul.f32 %v676, 0.1
  %v867 = vmul.f32 %v681, 0.1
  %v868 = vmul.f32 %v686, 0.1
  %v869 = vmul.f32 %v691, 0.1
  %v870 = vmul.f32 %v696, 0.1
  %v871 = vmul.f32 %v701, 0.1
  %v872 = vmul.f32 %v706, 0.1
  %v873 = vmul.f32 %v711, 0.1
  %v874 = vmul.f32 %v716, 0.1
  %v875 = vmul.f32 %v721, 0.1
  %v876 = vmul.f32 %v726, 0.1
  %v877 = vmul.f32 %v731, 0.1
  %v878 = vmul.f32 %v736, 0.1
  %v879 = vmul.f32 %v741, 0.1
  %v880 = vmul.f32 %v746, 0.1
  %v881 = vmul.f32 %v751, 0.1
  %v882 = vsel %vm754, %v436, %v818
  %v883 = vsel %vm755, %v441, %v819
  %v884 = vsel %vm756, %v446, %v820
  %v885 = vsel %vm757, %v451, %v821
  %v886 = vsel %vm758, %v456, %v822
  %v887 = vsel %vm759, %v461, %v823
  %v888 = vsel %vm760, %v466, %v824
  %v889 = vsel %vm761, %v471, %v825
  %v890 = vsel %vm762, %v476, %v826
  %v891 = vsel %vm763, %v481, %v827
  %v892 = vsel %vm764, %v486, %v828
  %v893 = vsel %vm765, %v491, %v829
  %v894 = vsel %vm766, %v496, %v830
  %v895 = vsel %vm767, %v501, %v831
  %v896 = vsel %vm768, %v506, %v832
  %v897 = vsel %vm769, %v511, %v833
  %v898 = vsel %vm770, %v516, %v834
  %v899 = vsel %vm771, %v521, %v835
  %v900 = vsel %vm772, %v526, %v836
  %v901 = vsel %vm773, %v531, %v837
  %v902 = vsel %vm774, %v536, %v838
  %v903 = vsel %vm775, %v541, %v839
  %v904 = vsel %vm776, %v546, %v840
  %v905 = vsel %vm777, %v551, %v841
  %v906 = vsel %vm778, %v556, %v842
  %v907 = vsel %vm779, %v561, %v843
  %v908 = vsel %vm780, %v566, %v844
  %v909 = vsel %vm781, %v571, %v845
  %v910 = vsel %vm782, %v576, %v846
  %v911 = vsel %vm783, %v581, %v847
  %v912 = vsel %vm784, %v586, %v848
  %v913 = vsel %vm785, %v591, %v849
  %v914 = vsel %vm786, %v596, %v850
  %v915 = vsel %vm787, %v601, %v851
  %v916 = vsel %vm788, %v606, %v852
  %v917 = vsel %vm789, %v611, %v853
  %v918 = vsel %vm790, %v616, %v854
  %v919 = vsel %vm791, %v621, %v855
  %v920 = vsel %vm792, %v626, %v856
  %v921 = vsel %vm793, %v631, %v857
  %v922 = vsel %vm794, %v636, %v858
  %v923 = vsel %vm795, %v641, %v859
  %v924 = vsel %vm796, %v646, %v860
  %v925 = vsel %vm797, %v651, %v861
  %v926 = vsel %vm798, %v656, %v862
  %v927 = vsel %vm799, %v661, %v863
  %v928 = vsel %vm800, %v666, %v864
  %v929 = vsel %vm801, %v671, %v865
  %v930 = vsel %vm802, %v676, %v866
  %v931 = vsel %vm803, %v681, %v867
  %v932 = vsel %vm804, %v686, %v868
  %v933 = vsel %vm805, %v691, %v869
  %v934 = vsel %vm806, %v696, %v870
  %v935 = vsel %vm807, %v701, %v871
  %v936 = vsel %vm808, %v706, %v872
  %v937 = vsel %vm809, %v711, %v873
  %v938 = vsel %vm810, %v716, %v874
  %v939 = vsel %vm811, %v721, %v875
  %v940 = vsel %vm812, %v726, %v876
  %v941 = vsel %vm813, %v731, %v877
  %v942 = vsel %vm814, %v736, %v878
  %v943 = vsel %vm815, %v741, %v879
  %v944 = vsel %vm816, %v746, %v880
  %v945 = vsel %vm817, %v751, %v881
  %vm946 = vcmask 195584
  %947 = vst.msk [vmem:[%s3] sm:$0xff] %vm946, %v882
  %948 = vst.msk [vmem:[%s3 + $0x8] sm:$0xff] %vm946, %v883
  %949 = vst.msk [vmem:[%s3 + $0x10] sm:$0xff] %vm946, %v884
  %950 = vst.msk [vmem:[%s3 + $0x18] sm:$0xff] %vm946, %v885
  %951 = vst.msk [vmem:[%s3 + $0x20] sm:$0xff] %vm946, %v886
  %952 = vst.msk [vmem:[%s3 + $0x28] sm:$0xff] %vm946, %v887
  %953 = vst.msk [vmem:[%s3 + $0x30] sm:$0xff] %vm946, %v888
  %954 = vst.msk [vmem:[%s3 + $0x38] sm:$0xff] %vm946, %v889
  %955 = vst.msk [vmem:[%s3 + $0x40] sm:$0xff] %vm946, %v890
  %956 = vst.msk [vmem:[%s3 + $0x48] sm:$0xff] %vm946, %v891
  %957 = vst.msk [vmem:[%s3 + $0x50] sm:$0xff] %vm946, %v892
  %958 = vst.msk [vmem:[%s3 + $0x58] sm:$0xff] %vm946, %v893
  %959 = vst.msk [vmem:[%s3 + $0x60] sm:$0xff] %vm946, %v894
  %960 = vst.msk [vmem:[%s3 + $0x68] sm:$0xff] %vm946, %v895
  %961 = vst.msk [vmem:[%s3 + $0x70] sm:$0xff] %vm946, %v896
  %962 = vst.msk [vmem:[%s3 + $0x78] sm:$0xff] %vm946, %v897
  %963 = vst.msk [vmem:[%s3 + $0x80] sm:$0xff] %vm946, %v898
  %964 = vst.msk [vmem:[%s3 + $0x88] sm:$0xff] %vm946, %v899
  %965 = vst.msk [vmem:[%s3 + $0x90] sm:$0xff] %vm946, %v900
  %966 = vst.msk [vmem:[%s3 + $0x98] sm:$0xff] %vm946, %v901
  %967 = vst.msk [vmem:[%s3 + $0xa0] sm:$0xff] %vm946, %v902
  %968 = vst.msk [vmem:[%s3 + $0xa8] sm:$0xff] %vm946, %v903
  %969 = vst.msk [vmem:[%s3 + $0xb0] sm:$0xff] %vm946, %v904
  %970 = vst.msk [vmem:[%s3 + $0xb8] sm:$0xff] %vm946, %v905
  %971 = vst.msk [vmem:[%s3 + $0xc0] sm:$0xff] %vm946, %v906
  %972 = vst.msk [vmem:[%s3 + $0xc8] sm:$0xff] %vm946, %v907
  %973 = vst.msk [vmem:[%s3 + $0xd0] sm:$0xff] %vm946, %v908
  %974 = vst.msk [vmem:[%s3 + $0xd8] sm:$0xff] %vm946, %v909
  %975 = vst.msk [vmem:[%s3 + $0xe0] sm:$0xff] %vm946, %v910
  %976 = vst.msk [vmem:[%s3 + $0xe8] sm:$0xff] %vm946, %v911
  %977 = vst.msk [vmem:[%s3 + $0xf0] sm:$0xff] %vm946, %v912
  %978 = vst.msk [vmem:[%s3 + $0xf8] sm:$0xff] %vm946, %v913
  %979 = vst.msk [vmem:[%s3 + $0x100] sm:$0xff] %vm946, %v914
  %980 = vst.msk [vmem:[%s3 + $0x108] sm:$0xff] %vm946, %v915
  %981 = vst.msk [vmem:[%s3 + $0x110] sm:$0xff] %vm946, %v916
  %982 = vst.msk [vmem:[%s3 + $0x118] sm:$0xff] %vm946, %v917
  %983 = vst.msk [vmem:[%s3 + $0x120] sm:$0xff] %vm946, %v918
  %984 = vst.msk [vmem:[%s3 + $0x128] sm:$0xff] %vm946, %v919
  %985 = vst.msk [vmem:[%s3 + $0x130] sm:$0xff] %vm946, %v920
  %986 = vst.msk [vmem:[%s3 + $0x138] sm:$0xff] %vm946, %v921
  %987 = vst.msk [vmem:[%s3 + $0x140] sm:$0xff] %vm946, %v922
  %988 = vst.msk [vmem:[%s3 + $0x148] sm:$0xff] %vm946, %v923
  %989 = vst.msk [vmem:[%s3 + $0x150] sm:$0xff] %vm946, %v924
  %990 = vst.msk [vmem:[%s3 + $0x158] sm:$0xff] %vm946, %v925
  %991 = vst.msk [vmem:[%s3 + $0x160] sm:$0xff] %vm946, %v926
  %992 = vst.msk [vmem:[%s3 + $0x168] sm:$0xff] %vm946, %v927
  %993 = vst.msk [vmem:[%s3 + $0x170] sm:$0xff] %vm946, %v928
  %994 = vst.msk [vmem:[%s3 + $0x178] sm:$0xff] %vm946, %v929
  %995 = vst.msk [vmem:[%s3 + $0x180] sm:$0xff] %vm946, %v930
  %996 = vst.msk [vmem:[%s3 + $0x188] sm:$0xff] %vm946, %v931
  %997 = vst.msk [vmem:[%s3 + $0x190] sm:$0xff] %vm946, %v932
  %998 = vst.msk [vmem:[%s3 + $0x198] sm:$0xff] %vm946, %v933
  %999 = vst.msk [vmem:[%s3 + $0x1a0] sm:$0xff] %vm946, %v934
  %1000 = vst.msk [vmem:[%s3 + $0x1a8] sm:$0xff] %vm946, %v935
  %1001 = vst.msk [vmem:[%s3 + $0x1b0] sm:$0xff] %vm946, %v936
  %1002 = vst.msk [vmem:[%s3 + $0x1b8] sm:$0xff] %vm946, %v937
  %1003 = vst.msk [vmem:[%s3 + $0x1c0] sm:$0xff] %vm946, %v938
  %1004 = vst.msk [vmem:[%s3 + $0x1c8] sm:$0xff] %vm946, %v939
  %1005 = vst.msk [vmem:[%s3 + $0x1d0] sm:$0xff] %vm946, %v940
  %1006 = vst.msk [vmem:[%s3 + $0x1d8] sm:$0xff] %vm946, %v941
  %1007 = vst.msk [vmem:[%s3 + $0x1e0] sm:$0xff] %vm946, %v942
  %1008 = vst.msk [vmem:[%s3 + $0x1e8] sm:$0xff] %vm946, %v943
  %1009 = vst.msk [vmem:[%s3 + $0x1f0] sm:$0xff] %vm946, %v944
  %1010 = vst.msk [vmem:[%s3 + $0x1f8] sm:$0xff] %vm946, %v945
  // Predicated region
  $region14: #{_lambda_.13} parent=0 // pred_check
    _
  $region15: #{_lambda_.13} parent=0 // pred_check_branch
    %1012 = sbr.rel (0) target = $region17
  $region16: #{_lambda_.13} parent=0 // pred_region
    _
  $region17: #{_lambda_.13} parent=0 // pred_fallthru
    _
  // Predicated region
  $region18: #{_lambda_.13} parent=0 // pred_check
    _
  $region19: #{_lambda_.13} parent=0 // pred_check_branch
    %1014 = sbr.rel (0) target = $region21
  $region20: #{_lambda_.13} parent=0 // pred_region
    _
  $region21: #{_lambda_.13} parent=0 // pred_fallthru
    _

// kernel: _lambda_.16
$region0: #{_lambda_.16}
  #allocation0 [shape = 'u32[]', space=smem, size = 0x4, offset = 0x4, fixed_abs, tag = 'smem constant byte address 0x4 - core index']
  #allocation1 [shape = 'u32[144,128]{1,0:T(1,128)}', space=vmem, size = 0x12000, scoped, tag = 'internal scratch']
  %s0 = inlined_call_operand.vmem [shape: f32[128,216], index: 0, kind: input, shape index: {}]
  %s1 = inlined_call_operand.vmem [shape: f32[216,48], index: 1, kind: input, shape index: {}]
  %s2 = inlined_call_operand.vmem [shape: f32[1,48], index: 2, kind: input, shape index: {}]
  %s3 = inlined_call_operand.vmem [shape: f32[128,48], index: 3, kind: output, shape index: {}]
  %s4 = sld [smem:[#allocation0]]
  $region22: #{_lambda_.16} parent=0
    _
  %s6 = ssub.s32 1, %s4
  %s7 = scalar_select 0, %s6, %s4
  // Predicated region
  $region2: #{_lambda_.16} parent=0 // pred_check
    _
  $region3: #{_lambda_.16} parent=0 // pred_check_branch
    %9 = sbr.rel (0) target = $region5
  $region4: #{_lambda_.16} parent=0 // pred_region
    _
  $region5: #{_lambda_.16} parent=0 // pred_fallthru
    _
  // Predicated region
  $region6: #{_lambda_.16} parent=0 // pred_check
    _
  $region7: #{_lambda_.16} parent=0 // pred_check_branch
    %11 = sbr.rel (0) target = $region9
  $region8: #{_lambda_.16} parent=0 // pred_region
    _
  $region9: #{_lambda_.16} parent=0 // pred_fallthru
    _
  // Predicated region
  $region10: #{_lambda_.16} parent=0 // pred_check
    _
  $region11: #{_lambda_.16} parent=0 // pred_check_branch
    %13 = sbr.rel (0) target = $region13
  $region12: #{_lambda_.16} parent=0 // pred_region
    _
  $region13: #{_lambda_.16} parent=0 // pred_fallthru
    _
  %v14 = vld [vmem:[%s0] sm:$0xff]
  %v15 = vld [vmem:[%s0 + $0x8] sm:$0xff]
  %v16 = vld [vmem:[%s0 + $0x10] sm:$0xff]
  %v17 = vld [vmem:[%s0 + $0x18] sm:$0xff]
  %v18 = vld [vmem:[%s0 + $0x20] sm:$0xff]
  %v19 = vld [vmem:[%s0 + $0x28] sm:$0xff]
  %v20 = vld [vmem:[%s0 + $0x30] sm:$0xff]
  %v21 = vld [vmem:[%s0 + $0x38] sm:$0xff]
  %v22 = vld [vmem:[%s0 + $0x40] sm:$0xff]
  %v23 = vld [vmem:[%s0 + $0x48] sm:$0xff]
  %v24 = vld [vmem:[%s0 + $0x50] sm:$0xff]
  %v25 = vld [vmem:[%s0 + $0x58] sm:$0xff]
  %v26 = vld [vmem:[%s0 + $0x60] sm:$0xff]
  %v27 = vld [vmem:[%s0 + $0x68] sm:$0xff]
  %v28 = vld [vmem:[%s0 + $0x70] sm:$0xff]
  %v29 = vld [vmem:[%s0 + $0x78] sm:$0xff]
  %v30 = vld [vmem:[%s0 + $0x80] sm:$0xff]
  %v31 = vld [vmem:[%s0 + $0x88] sm:$0xff]
  %v32 = vld [vmem:[%s0 + $0x90] sm:$0xff]
  %v33 = vld [vmem:[%s0 + $0x98] sm:$0xff]
  %v34 = vld [vmem:[%s0 + $0xa0] sm:$0xff]
  %v35 = vld [vmem:[%s0 + $0xa8] sm:$0xff]
  %v36 = vld [vmem:[%s0 + $0xb0] sm:$0xff]
  %v37 = vld [vmem:[%s0 + $0xb8] sm:$0xff]
  %v38 = vld [vmem:[%s0 + $0xc0] sm:$0xff]
  %v39 = vld [vmem:[%s0 + $0xc8] sm:$0xff]
  %v40 = vld [vmem:[%s0 + $0xd0] sm:$0xff]
  %v41 = vld [vmem:[%s0 + $0xd8] sm:$0xff]
  %v42 = vld [vmem:[%s0 + $0xe0] sm:$0xff]
  %v43 = vld [vmem:[%s0 + $0xe8] sm:$0xff]
  %v44 = vld [vmem:[%s0 + $0xf0] sm:$0xff]
  %v45 = vld [vmem:[%s0 + $0xf8] sm:$0xff]
  %v46 = vld [vmem:[%s1] sm:$0xff]
  %v47 = vld [vmem:[%s1 + $0x8] sm:$0xff]
  %v48 = vld [vmem:[%s1 + $0x10] sm:$0xff]
  %v49 = vld [vmem:[%s1 + $0x18] sm:$0xff]
  %v50 = vld [vmem:[%s1 + $0x20] sm:$0xff]
  %v51 = vld [vmem:[%s1 + $0x28] sm:$0xff]
  %v52 = vld [vmem:[%s1 + $0x30] sm:$0xff]
  %v53 = vld [vmem:[%s1 + $0x38] sm:$0xff]
  %v54 = vld [vmem:[%s1 + $0x40] sm:$0xff]
  %v55 = vld [vmem:[%s1 + $0x48] sm:$0xff]
  %v56 = vld [vmem:[%s1 + $0x50] sm:$0xff]
  %v57 = vld [vmem:[%s1 + $0x58] sm:$0xff]
  %v58 = vld [vmem:[%s1 + $0x60] sm:$0xff]
  %v59 = vld [vmem:[%s1 + $0x68] sm:$0xff]
  %v60 = vld [vmem:[%s1 + $0x70] sm:$0xff]
  %v61 = vld [vmem:[%s1 + $0x78] sm:$0xff]
  %v62 = vld [vmem:[%s1 + $0x80] sm:$0xff]
  %v63 = vld [vmem:[%s1 + $0x88] sm:$0xff]
  %v64 = vld [vmem:[%s1 + $0x90] sm:$0xff]
  %v65 = vld [vmem:[%s1 + $0x98] sm:$0xff]
  %v66 = vld [vmem:[%s1 + $0xa0] sm:$0xff]
  %v67 = vld [vmem:[%s1 + $0xa8] sm:$0xff]
  %v68 = vld [vmem:[%s1 + $0xb0] sm:$0xff]
  %v69 = vld [vmem:[%s1 + $0xb8] sm:$0xff]
  %v70 = vld [vmem:[%s1 + $0xc0] sm:$0xff]
  %v71 = vld [vmem:[%s1 + $0xc8] sm:$0xff]
  %v72 = vld [vmem:[%s1 + $0xd0] sm:$0xff]
  %v73 = vld [vmem:[%s2] sm:$0x1]
  %v75 = vlaneseq
  %v76 = vshrl.u32 %v75, 7
  %v77 = vsub.s32 0, %v76
  %v78 = vrot.slane %v73, %v77
  %vm80 = vcmask 719872
  %v82 = vsel %vm80, %v15, 0
  %v85 = vsel %vm80, %v17, 0
  %v88 = vsel %vm80, %v19, 0
  %v91 = vsel %vm80, %v21, 0
  %v94 = vsel %vm80, %v23, 0
  %v97 = vsel %vm80, %v25, 0
  %v100 = vsel %vm80, %v27, 0
  %v103 = vsel %vm80, %v29, 0
  %v106 = vsel %vm80, %v31, 0
  %v109 = vsel %vm80, %v33, 0
  %v112 = vsel %vm80, %v35, 0
  %v115 = vsel %vm80, %v37, 0
  %v118 = vsel %vm80, %v39, 0
  %v121 = vsel %vm80, %v41, 0
  %v124 = vsel %vm80, %v43, 0
  %v127 = vsel %vm80, %v45, 0
  %129 = vmatprep.subr.mxu0 0.0
  %130 = vmatpush1.msra.mxu0 %v46
  %131 = vmatprep.subr.mxu0 0.0
  %132 = vmatpush1.msra.mxu0 %v47
  %133 = vmatprep.subr.mxu0 0.0
  %134 = vmatpush1.msra.mxu0 %v48
  %135 = vmatprep.subr.mxu0 0.0
  %136 = vmatpush1.msra.mxu0 %v49
  %137 = vmatprep.subr.mxu0 0.0
  %138 = vmatpush1.msra.mxu0 %v50
  %139 = vmatprep.subr.mxu0 0.0
  %140 = vmatpush1.msra.mxu0 %v51
  %141 = vmatprep.subr.mxu0 0.0
  %142 = vmatpush1.msra.mxu0 %v52
  %143 = vmatprep.subr.mxu0 0.0
  %144 = vmatpush1.msra.mxu0 %v53
  %145 = vmatprep.subr.mxu0 0.0
  %146 = vmatpush1.msra.mxu0 %v54
  %147 = vmatprep.subr.mxu0 0.0
  %148 = vmatpush1.msra.mxu0 %v55
  %149 = vmatprep.subr.mxu0 0.0
  %150 = vmatpush1.msra.mxu0 %v56
  %151 = vmatprep.subr.mxu0 0.0
  %152 = vmatpush1.msra.mxu0 %v57
  %153 = vmatprep.subr.mxu0 0.0
  %154 = vmatpush1.msra.mxu0 %v58
  %155 = vmatprep.subr.mxu0 0.0
  %156 = vmatpush1.msra.mxu0 %v59
  %157 = vmatprep.subr.mxu0 0.0
  %158 = vmatpush1.msra.mxu0 %v60
  %159 = vmatprep.subr.mxu0 0.0
  %160 = vmatpush1.msra.mxu0 %v61
  %161 = vmatprep.subr.mxu0 0.0
  %162 = vmatpush1.msra.mxu0 %v62
  %163 = vmatprep.subr.mxu0 0.0
  %164 = vmatpush1.msra.mxu0 %v63
  %165 = vmatprep.subr.mxu0 0.0
  %166 = vmatpush1.msra.mxu0 %v64
  %167 = vmatprep.subr.mxu0 0.0
  %168 = vmatpush1.msra.mxu0 %v65
  %169 = vmatprep.subr.mxu0 0.0
  %170 = vmatpush1.msra.mxu0 %v66
  %171 = vmatprep.subr.mxu0 0.0
  %172 = vmatpush1.msra.mxu0 %v67
  %173 = vmatprep.subr.mxu0 0.0
  %174 = vmatpush1.msra.mxu0 %v68
  %175 = vmatprep.subr.mxu0 0.0
  %176 = vmatpush1.msra.mxu0 %v69
  %177 = vmatprep.subr.mxu0 0.0
  %178 = vmatpush1.msra.mxu0 %v70
  %179 = vmatprep.subr.mxu0 0.0
  %180 = vmatpush1.msra.mxu0 %v71
  %181 = vmatprep.subr.mxu0 0.0
  %182 = vmatpush1.msra.mxu0 %v72
  %183 = vmatprep.subr.mxu0 0.0
  %184 = vmatpush1.msra.mxu0 0.0
  %185 = vmatprep.subr.mxu0 0.0
  %186 = vmatpush1.msra.mxu0 0.0
  %187 = vmatprep.subr.mxu0 0.0
  %188 = vmatpush1.msra.mxu0 0.0
  %189 = vmatprep.subr.mxu0 0.0
  %190 = vmatpush1.msra.mxu0 0.0
  %191 = vmatprep.subr.mxu0 0.0
  %192 = vmatpush1.msra.mxu0 0.0
  %193 = vmatprep.mubr.f32.mxu0 %v82
  %194 = vmatmul.mubr.f32.gmra.mrb[0].mxu0 %v14
  %v195 = vpop.f32.mrb[0].mxu0
  %v196 = vadd.f32 %v78, %v195
  %v197 = vpop.f32.mrb[0].mxu0
  %198 = vmatprep.mubr.f32.mxu0 %v85
  %199 = vmatmul.mubr.f32.gmra.mrb[0].mxu0 %v16
  %v200 = vpop.f32.mrb[0].mxu0
  %v201 = vadd.f32 %v78, %v200
  %v202 = vpop.f32.mrb[0].mxu0
  %203 = vmatprep.mubr.f32.mxu0 %v88
  %204 = vmatmul.mubr.f32.gmra.mrb[0].mxu0 %v18
  %v205 = vpop.f32.mrb[0].mxu0
  %v206 = vadd.f32 %v78, %v205
  %v207 = vpop.f32.mrb[0].mxu0
  %208 = vmatprep.mubr.f32.mxu0 %v91
  %209 = vmatmul.mubr.f32.gmra.mrb[0].mxu0 %v20
  %v210 = vpop.f32.mrb[0].mxu0
  %v211 = vadd.f32 %v78, %v210
  %v212 = vpop.f32.mrb[0].mxu0
  %213 = vmatprep.mubr.f32.mxu0 %v94
  %214 = vmatmul.mubr.f32.gmra.mrb[0].mxu0 %v22
  %v215 = vpop.f32.mrb[0].mxu0
  %v216 = vadd.f32 %v78, %v215
  %v217 = vpop.f32.mrb[0].mxu0
  %218 = vmatprep.mubr.f32.mxu0 %v97
  %219 = vmatmul.mubr.f32.gmra.mrb[0].mxu0 %v24
  %v220 = vpop.f32.mrb[0].mxu0
  %v221 = vadd.f32 %v78, %v220
  %v222 = vpop.f32.mrb[0].mxu0
  %223 = vmatprep.mubr.f32.mxu0 %v100
  %224 = vmatmul.mubr.f32.gmra.mrb[0].mxu0 %v26
  %v225 = vpop.f32.mrb[0].mxu0
  %v226 = vadd.f32 %v78, %v225
  %v227 = vpop.f32.mrb[0].mxu0
  %228 = vmatprep.mubr.f32.mxu0 %v103
  %229 = vmatmul.mubr.f32.gmra.mrb[0].mxu0 %v28
  %v230 = vpop.f32.mrb[0].mxu0
  %v231 = vadd.f32 %v78, %v230
  %v232 = vpop.f32.mrb[0].mxu0
  %233 = vmatprep.mubr.f32.mxu0 %v106
  %234 = vmatmul.mubr.f32.gmra.mrb[0].mxu0 %v30
  %v235 = vpop.f32.mrb[0].mxu0
  %v236 = vadd.f32 %v78, %v235
  %v237 = vpop.f32.mrb[0].mxu0
  %238 = vmatprep.mubr.f32.mxu0 %v109
  %239 = vmatmul.mubr.f32.gmra.mrb[0].mxu0 %v32
  %v240 = vpop.f32.mrb[0].mxu0
  %v241 = vadd.f32 %v78, %v240
  %v242 = vpop.f32.mrb[0].mxu0
  %243 = vmatprep.mubr.f32.mxu0 %v112
  %244 = vmatmul.mubr.f32.gmra.mrb[0].mxu0 %v34
  %v245 = vpop.f32.mrb[0].mxu0
  %v246 = vadd.f32 %v78, %v245
  %v247 = vpop.f32.mrb[0].mxu0
  %248 = vmatprep.mubr.f32.mxu0 %v115
  %249 = vmatmul.mubr.f32.gmra.mrb[0].mxu0 %v36
  %v250 = vpop.f32.mrb[0].mxu0
  %v251 = vadd.f32 %v78, %v250
  %v252 = vpop.f32.mrb[0].mxu0
  %253 = vmatprep.mubr.f32.mxu0 %v118
  %254 = vmatmul.mubr.f32.gmra.mrb[0].mxu0 %v38
  %v255 = vpop.f32.mrb[0].mxu0
  %v256 = vadd.f32 %v78, %v255
  %v257 = vpop.f32.mrb[0].mxu0
  %258 = vmatprep.mubr.f32.mxu0 %v121
  %259 = vmatmul.mubr.f32.gmra.mrb[0].mxu0 %v40
  %v260 = vpop.f32.mrb[0].mxu0
  %v261 = vadd.f32 %v78, %v260
  %v262 = vpop.f32.mrb[0].mxu0
  %263 = vmatprep.mubr.f32.mxu0 %v124
  %264 = vmatmul.mubr.f32.gmra.mrb[0].mxu0 %v42
  %v265 = vpop.f32.mrb[0].mxu0
  %v266 = vadd.f32 %v78, %v265
  %v267 = vpop.f32.mrb[0].mxu0
  %268 = vmatprep.mubr.f32.mxu0 %v127
  %269 = vmatmul.mubr.f32.gmra.mrb[0].mxu0 %v44
  %v270 = vpop.f32.mrb[0].mxu0
  %v271 = vadd.f32 %v78, %v270
  %v272 = vpop.f32.mrb[0].mxu0
  %273 = vdwg.mxu0
  %vm274 = vcmp.ge.f32.partialorder %v196, 0.0
  %vm275 = vcmp.ge.f32.partialorder %v201, 0.0
  %vm276 = vcmp.ge.f32.partialorder %v206, 0.0
  %vm277 = vcmp.ge.f32.partialorder %v211, 0.0
  %vm278 = vcmp.ge.f32.partialorder %v216, 0.0
  %vm279 = vcmp.ge.f32.partialorder %v221, 0.0
  %vm280 = vcmp.ge.f32.partialorder %v226, 0.0
  %vm281 = vcmp.ge.f32.partialorder %v231, 0.0
  %vm282 = vcmp.ge.f32.partialorder %v236, 0.0
  %vm283 = vcmp.ge.f32.partialorder %v241, 0.0
  %vm284 = vcmp.ge.f32.partialorder %v246, 0.0
  %vm285 = vcmp.ge.f32.partialorder %v251, 0.0
  %vm286 = vcmp.ge.f32.partialorder %v256, 0.0
  %vm287 = vcmp.ge.f32.partialorder %v261, 0.0
  %vm288 = vcmp.ge.f32.partialorder %v266, 0.0
  %vm289 = vcmp.ge.f32.partialorder %v271, 0.0
  %v290 = vmul.f32 %v196, 0.1
  %v291 = vmul.f32 %v201, 0.1
  %v292 = vmul.f32 %v206, 0.1
  %v293 = vmul.f32 %v211, 0.1
  %v294 = vmul.f32 %v216, 0.1
  %v295 = vmul.f32 %v221, 0.1
  %v296 = vmul.f32 %v226, 0.1
  %v297 = vmul.f32 %v231, 0.1
  %v298 = vmul.f32 %v236, 0.1
  %v299 = vmul.f32 %v241, 0.1
  %v300 = vmul.f32 %v246, 0.1
  %v301 = vmul.f32 %v251, 0.1
  %v302 = vmul.f32 %v256, 0.1
  %v303 = vmul.f32 %v261, 0.1
  %v304 = vmul.f32 %v266, 0.1
  %v305 = vmul.f32 %v271, 0.1
  %v306 = vsel %vm274, %v196, %v290
  %v307 = vsel %vm275, %v201, %v291
  %v308 = vsel %vm276, %v206, %v292
  %v309 = vsel %vm277, %v211, %v293
  %v310 = vsel %vm278, %v216, %v294
  %v311 = vsel %vm279, %v221, %v295
  %v312 = vsel %vm280, %v226, %v296
  %v313 = vsel %vm281, %v231, %v297
  %v314 = vsel %vm282, %v236, %v298
  %v315 = vsel %vm283, %v241, %v299
  %v316 = vsel %vm284, %v246, %v300
  %v317 = vsel %vm285, %v251, %v301
  %v318 = vsel %vm286, %v256, %v302
  %v319 = vsel %vm287, %v261, %v303
  %v320 = vsel %vm288, %v266, %v304
  %v321 = vsel %vm289, %v271, %v305
  %vm322 = vcmask 392192
  %323 = vst.msk [vmem:[%s3] sm:$0xff] %vm322, %v306
  %324 = vst.msk [vmem:[%s3 + $0x8] sm:$0xff] %vm322, %v307
  %325 = vst.msk [vmem:[%s3 + $0x10] sm:$0xff] %vm322, %v308
  %326 = vst.msk [vmem:[%s3 + $0x18] sm:$0xff] %vm322, %v309
  %327 = vst.msk [vmem:[%s3 + $0x20] sm:$0xff] %vm322, %v310
  %328 = vst.msk [vmem:[%s3 + $0x28] sm:$0xff] %vm322, %v311
  %329 = vst.msk [vmem:[%s3 + $0x30] sm:$0xff] %vm322, %v312
  %330 = vst.msk [vmem:[%s3 + $0x38] sm:$0xff] %vm322, %v313
  %331 = vst.msk [vmem:[%s3 + $0x40] sm:$0xff] %vm322, %v314
  %332 = vst.msk [vmem:[%s3 + $0x48] sm:$0xff] %vm322, %v315
  %333 = vst.msk [vmem:[%s3 + $0x50] sm:$0xff] %vm322, %v316
  %334 = vst.msk [vmem:[%s3 + $0x58] sm:$0xff] %vm322, %v317
  %335 = vst.msk [vmem:[%s3 + $0x60] sm:$0xff] %vm322, %v318
  %336 = vst.msk [vmem:[%s3 + $0x68] sm:$0xff] %vm322, %v319
  %337 = vst.msk [vmem:[%s3 + $0x70] sm:$0xff] %vm322, %v320
  %338 = vst.msk [vmem:[%s3 + $0x78] sm:$0xff] %vm322, %v321
  // Predicated region
  $region14: #{_lambda_.16} parent=0 // pred_check
    _
  $region15: #{_lambda_.16} parent=0 // pred_check_branch
    %340 = sbr.rel (0) target = $region17
  $region16: #{_lambda_.16} parent=0 // pred_region
    _
  $region17: #{_lambda_.16} parent=0 // pred_fallthru
    _
  // Predicated region
  $region18: #{_lambda_.16} parent=0 // pred_check
    _
  $region19: #{_lambda_.16} parent=0 // pred_check_branch
    %342 = sbr.rel (0) target = $region21
  $region20: #{_lambda_.16} parent=0 // pred_region
    _
  $region21: #{_lambda_.16} parent=0 // pred_fallthru
    _

// kernel: _lambda_.17
$region0: #{_lambda_.17}
  #allocation0 [shape = 'u32[]', space=smem, size = 0x4, offset = 0x4, fixed_abs, tag = 'smem constant byte address 0x4 - core index']
  #allocation1 [shape = 'u32[144,128]{1,0:T(1,128)}', space=vmem, size = 0x12000, scoped, tag = 'internal scratch']
  %s0 = inlined_call_operand.vmem [shape: f32[128,432], index: 0, kind: input, shape index: {}]
  %s1 = inlined_call_operand.vmem [shape: f32[432,48], index: 1, kind: input, shape index: {}]
  %s2 = inlined_call_operand.vmem [shape: f32[1,48], index: 2, kind: input, shape index: {}]
  %s3 = inlined_call_operand.vmem [shape: f32[128,48], index: 3, kind: output, shape index: {}]
  %s4 = sld [smem:[#allocation0]]
  $region22: #{_lambda_.17} parent=0
    _
  %s6 = ssub.s32 1, %s4
  %s7 = scalar_select 0, %s6, %s4
  // Predicated region
  $region2: #{_lambda_.17} parent=0 // pred_check
    _
  $region3: #{_lambda_.17} parent=0 // pred_check_branch
    %9 = sbr.rel (0) target = $region5
  $region4: #{_lambda_.17} parent=0 // pred_region
    _
  $region5: #{_lambda_.17} parent=0 // pred_fallthru
    _
  // Predicated region
  $region6: #{_lambda_.17} parent=0 // pred_check
    _
  $region7: #{_lambda_.17} parent=0 // pred_check_branch
    %11 = sbr.rel (0) target = $region9
  $region8: #{_lambda_.17} parent=0 // pred_region
    _
  $region9: #{_lambda_.17} parent=0 // pred_fallthru
    _
  // Predicated region
  $region10: #{_lambda_.17} parent=0 // pred_check
    _
  $region11: #{_lambda_.17} parent=0 // pred_check_branch
    %13 = sbr.rel (0) target = $region13
  $region12: #{_lambda_.17} parent=0 // pred_region
    _
  $region13: #{_lambda_.17} parent=0 // pred_fallthru
    _
  %v14 = vld [vmem:[%s0] sm:$0xff]
  %v15 = vld [vmem:[%s0 + $0x8] sm:$0xff]
  %v16 = vld [vmem:[%s0 + $0x10] sm:$0xff]
  %v17 = vld [vmem:[%s0 + $0x18] sm:$0xff]
  %v18 = vld [vmem:[%s0 + $0x20] sm:$0xff]
  %v19 = vld [vmem:[%s0 + $0x28] sm:$0xff]
  %v20 = vld [vmem:[%s0 + $0x30] sm:$0xff]
  %v21 = vld [vmem:[%s0 + $0x38] sm:$0xff]
  %v22 = vld [vmem:[%s0 + $0x40] sm:$0xff]
  %v23 = vld [vmem:[%s0 + $0x48] sm:$0xff]
  %v24 = vld [vmem:[%s0 + $0x50] sm:$0xff]
  %v25 = vld [vmem:[%s0 + $0x58] sm:$0xff]
  %v26 = vld [vmem:[%s0 + $0x60] sm:$0xff]
  %v27 = vld [vmem:[%s0 + $0x68] sm:$0xff]
  %v28 = vld [vmem:[%s0 + $0x70] sm:$0xff]
  %v29 = vld [vmem:[%s0 + $0x78] sm:$0xff]
  %v30 = vld [vmem:[%s0 + $0x80] sm:$0xff]
  %v31 = vld [vmem:[%s0 + $0x88] sm:$0xff]
  %v32 = vld [vmem:[%s0 + $0x90] sm:$0xff]
  %v33 = vld [vmem:[%s0 + $0x98] sm:$0xff]
  %v34 = vld [vmem:[%s0 + $0xa0] sm:$0xff]
  %v35 = vld [vmem:[%s0 + $0xa8] sm:$0xff]
  %v36 = vld [vmem:[%s0 + $0xb0] sm:$0xff]
  %v37 = vld [vmem:[%s0 + $0xb8] sm:$0xff]
  %v38 = vld [vmem:[%s0 + $0xc0] sm:$0xff]
  %v39 = vld [vmem:[%s0 + $0xc8] sm:$0xff]
  %v40 = vld [vmem:[%s0 + $0xd0] sm:$0xff]
  %v41 = vld [vmem:[%s0 + $0xd8] sm:$0xff]
  %v42 = vld [vmem:[%s0 + $0xe0] sm:$0xff]
  %v43 = vld [vmem:[%s0 + $0xe8] sm:$0xff]
  %v44 = vld [vmem:[%s0 + $0xf0] sm:$0xff]
  %v45 = vld [vmem:[%s0 + $0xf8] sm:$0xff]
  %v46 = vld [vmem:[%s0 + $0x100] sm:$0xff]
  %v47 = vld [vmem:[%s0 + $0x108] sm:$0xff]
  %v48 = vld [vmem:[%s0 + $0x110] sm:$0xff]
  %v49 = vld [vmem:[%s0 + $0x118] sm:$0xff]
  %v50 = vld [vmem:[%s0 + $0x120] sm:$0xff]
  %v51 = vld [vmem:[%s0 + $0x128] sm:$0xff]
  %v52 = vld [vmem:[%s0 + $0x130] sm:$0xff]
  %v53 = vld [vmem:[%s0 + $0x138] sm:$0xff]
  %v54 = vld [vmem:[%s0 + $0x140] sm:$0xff]
  %v55 = vld [vmem:[%s0 + $0x148] sm:$0xff]
  %v56 = vld [vmem:[%s0 + $0x150] sm:$0xff]
  %v57 = vld [vmem:[%s0 + $0x158] sm:$0xff]
  %v58 = vld [vmem:[%s0 + $0x160] sm:$0xff]
  %v59 = vld [vmem:[%s0 + $0x168] sm:$0xff]
  %v60 = vld [vmem:[%s0 + $0x170] sm:$0xff]
  %v61 = vld [vmem:[%s0 + $0x178] sm:$0xff]
  %v62 = vld [vmem:[%s0 + $0x180] sm:$0xff]
  %v63 = vld [vmem:[%s0 + $0x188] sm:$0xff]
  %v64 = vld [vmem:[%s0 + $0x190] sm:$0xff]
  %v65 = vld [vmem:[%s0 + $0x198] sm:$0xff]
  %v66 = vld [vmem:[%s0 + $0x1a0] sm:$0xff]
  %v67 = vld [vmem:[%s0 + $0x1a8] sm:$0xff]
  %v68 = vld [vmem:[%s0 + $0x1b0] sm:$0xff]
  %v69 = vld [vmem:[%s0 + $0x1b8] sm:$0xff]
  %v70 = vld [vmem:[%s0 + $0x1c0] sm:$0xff]
  %v71 = vld [vmem:[%s0 + $0x1c8] sm:$0xff]
  %v72 = vld [vmem:[%s0 + $0x1d0] sm:$0xff]
  %v73 = vld [vmem:[%s0 + $0x1d8] sm:$0xff]
  %v74 = vld [vmem:[%s0 + $0x1e0] sm:$0xff]
  %v75 = vld [vmem:[%s0 + $0x1e8] sm:$0xff]
  %v76 = vld [vmem:[%s0 + $0x1f0] sm:$0xff]
  %v77 = vld [vmem:[%s0 + $0x1f8] sm:$0xff]
  %v78 = vld [vmem:[%s1] sm:$0xff]
  %v79 = vld [vmem:[%s1 + $0x8] sm:$0xff]
  %v80 = vld [vmem:[%s1 + $0x10] sm:$0xff]
  %v81 = vld [vmem:[%s1 + $0x18] sm:$0xff]
  %v82 = vld [vmem:[%s1 + $0x20] sm:$0xff]
  %v83 = vld [vmem:[%s1 + $0x28] sm:$0xff]
  %v84 = vld [vmem:[%s1 + $0x30] sm:$0xff]
  %v85 = vld [vmem:[%s1 + $0x38] sm:$0xff]
  %v86 = vld [vmem:[%s1 + $0x40] sm:$0xff]
  %v87 = vld [vmem:[%s1 + $0x48] sm:$0xff]
  %v88 = vld [vmem:[%s1 + $0x50] sm:$0xff]
  %v89 = vld [vmem:[%s1 + $0x58] sm:$0xff]
  %v90 = vld [vmem:[%s1 + $0x60] sm:$0xff]
  %v91 = vld [vmem:[%s1 + $0x68] sm:$0xff]
  %v92 = vld [vmem:[%s1 + $0x70] sm:$0xff]
  %v93 = vld [vmem:[%s1 + $0x78] sm:$0xff]
  %v94 = vld [vmem:[%s1 + $0x80] sm:$0xff]
  %v95 = vld [vmem:[%s1 + $0x88] sm:$0xff]
  %v96 = vld [vmem:[%s1 + $0x90] sm:$0xff]
  %v97 = vld [vmem:[%s1 + $0x98] sm:$0xff]
  %v98 = vld [vmem:[%s1 + $0xa0] sm:$0xff]
  %v99 = vld [vmem:[%s1 + $0xa8] sm:$0xff]
  %v100 = vld [vmem:[%s1 + $0xb0] sm:$0xff]
  %v101 = vld [vmem:[%s1 + $0xb8] sm:$0xff]
  %v102 = vld [vmem:[%s1 + $0xc0] sm:$0xff]
  %v103 = vld [vmem:[%s1 + $0xc8] sm:$0xff]
  %v104 = vld [vmem:[%s1 + $0xd0] sm:$0xff]
  %v105 = vld [vmem:[%s1 + $0xd8] sm:$0xff]
  %v106 = vld [vmem:[%s1 + $0xe0] sm:$0xff]
  %v107 = vld [vmem:[%s1 + $0xe8] sm:$0xff]
  %v108 = vld [vmem:[%s1 + $0xf0] sm:$0xff]
  %v109 = vld [vmem:[%s1 + $0xf8] sm:$0xff]
  %v110 = vld [vmem:[%s1 + $0x100] sm:$0xff]
  %v111 = vld [vmem:[%s1 + $0x108] sm:$0xff]
  %v112 = vld [vmem:[%s1 + $0x110] sm:$0xff]
  %v113 = vld [vmem:[%s1 + $0x118] sm:$0xff]
  %v114 = vld [vmem:[%s1 + $0x120] sm:$0xff]
  %v115 = vld [vmem:[%s1 + $0x128] sm:$0xff]
  %v116 = vld [vmem:[%s1 + $0x130] sm:$0xff]
  %v117 = vld [vmem:[%s1 + $0x138] sm:$0xff]
  %v118 = vld [vmem:[%s1 + $0x140] sm:$0xff]
  %v119 = vld [vmem:[%s1 + $0x148] sm:$0xff]
  %v120 = vld [vmem:[%s1 + $0x150] sm:$0xff]
  %v121 = vld [vmem:[%s1 + $0x158] sm:$0xff]
  %v122 = vld [vmem:[%s1 + $0x160] sm:$0xff]
  %v123 = vld [vmem:[%s1 + $0x168] sm:$0xff]
  %v124 = vld [vmem:[%s1 + $0x170] sm:$0xff]
  %v125 = vld [vmem:[%s1 + $0x178] sm:$0xff]
  %v126 = vld [vmem:[%s1 + $0x180] sm:$0xff]
  %v127 = vld [vmem:[%s1 + $0x188] sm:$0xff]
  %v128 = vld [vmem:[%s1 + $0x190] sm:$0xff]
  %v129 = vld [vmem:[%s1 + $0x198] sm:$0xff]
  %v130 = vld [vmem:[%s1 + $0x1a0] sm:$0xff]
  %v131 = vld [vmem:[%s1 + $0x1a8] sm:$0xff]
  %v132 = vld [vmem:[%s2] sm:$0x1]
  %v134 = vlaneseq
  %v135 = vshrl.u32 %v134, 7
  %v136 = vsub.s32 0, %v135
  %v137 = vrot.slane %v132, %v136
  %vm139 = vcmask 392192
  %v141 = vsel %vm139, %v17, 0
  %v144 = vsel %vm139, %v21, 0
  %v147 = vsel %vm139, %v25, 0
  %v150 = vsel %vm139, %v29, 0
  %v153 = vsel %vm139, %v33, 0
  %v156 = vsel %vm139, %v37, 0
  %v159 = vsel %vm139, %v41, 0
  %v162 = vsel %vm139, %v45, 0
  %v165 = vsel %vm139, %v49, 0
  %v168 = vsel %vm139, %v53, 0
  %v171 = vsel %vm139, %v57, 0
  %v174 = vsel %vm139, %v61, 0
  %v177 = vsel %vm139, %v65, 0
  %v180 = vsel %vm139, %v69, 0
  %v183 = vsel %vm139, %v73, 0
  %v186 = vsel %vm139, %v77, 0
  %188 = vmatprep.subr.mxu0 0.0
  %189 = vmatpush1.msra.mxu0 %v78
  %190 = vmatprep.subr.mxu0 0.0
  %191 = vmatpush1.msra.mxu0 %v79
  %192 = vmatprep.subr.mxu0 0.0
  %193 = vmatpush1.msra.mxu0 %v80
  %194 = vmatprep.subr.mxu0 0.0
  %195 = vmatpush1.msra.mxu0 %v81
  %196 = vmatprep.subr.mxu0 0.0
  %197 = vmatpush1.msra.mxu0 %v82
  %198 = vmatprep.subr.mxu0 0.0
  %199 = vmatpush1.msra.mxu0 %v83
  %200 = vmatprep.subr.mxu0 0.0
  %201 = vmatpush1.msra.mxu0 %v84
  %202 = vmatprep.subr.mxu0 0.0
  %203 = vmatpush1.msra.mxu0 %v85
  %204 = vmatprep.subr.mxu0 0.0
  %205 = vmatpush1.msra.mxu0 %v86
  %206 = vmatprep.subr.mxu0 0.0
  %207 = vmatpush1.msra.mxu0 %v87
  %208 = vmatprep.subr.mxu0 0.0
  %209 = vmatpush1.msra.mxu0 %v88
  %210 = vmatprep.subr.mxu0 0.0
  %211 = vmatpush1.msra.mxu0 %v89
  %212 = vmatprep.subr.mxu0 0.0
  %213 = vmatpush1.msra.mxu0 %v90
  %214 = vmatprep.subr.mxu0 0.0
  %215 = vmatpush1.msra.mxu0 %v91
  %216 = vmatprep.subr.mxu0 0.0
  %217 = vmatpush1.msra.mxu0 %v92
  %218 = vmatprep.subr.mxu0 0.0
  %219 = vmatpush1.msra.mxu0 %v93
  %220 = vmatprep.subr.mxu0 0.0
  %221 = vmatpush1.msra.mxu0 %v94
  %222 = vmatprep.subr.mxu0 0.0
  %223 = vmatpush1.msra.mxu0 %v95
  %224 = vmatprep.subr.mxu0 0.0
  %225 = vmatpush1.msra.mxu0 %v96
  %226 = vmatprep.subr.mxu0 0.0
  %227 = vmatpush1.msra.mxu0 %v97
  %228 = vmatprep.subr.mxu0 0.0
  %229 = vmatpush1.msra.mxu0 %v98
  %230 = vmatprep.subr.mxu0 0.0
  %231 = vmatpush1.msra.mxu0 %v99
  %232 = vmatprep.subr.mxu0 0.0
  %233 = vmatpush1.msra.mxu0 %v100
  %234 = vmatprep.subr.mxu0 0.0
  %235 = vmatpush1.msra.mxu0 %v101
  %236 = vmatprep.subr.mxu0 0.0
  %237 = vmatpush1.msra.mxu0 %v102
  %238 = vmatprep.subr.mxu0 0.0
  %239 = vmatpush1.msra.mxu0 %v103
  %240 = vmatprep.subr.mxu0 0.0
  %241 = vmatpush1.msra.mxu0 %v104
  %242 = vmatprep.subr.mxu0 0.0
  %243 = vmatpush1.msra.mxu0 %v105
  %244 = vmatprep.subr.mxu0 0.0
  %245 = vmatpush1.msra.mxu0 %v106
  %246 = vmatprep.subr.mxu0 0.0
  %247 = vmatpush1.msra.mxu0 %v107
  %248 = vmatprep.subr.mxu0 0.0
  %249 = vmatpush1.msra.mxu0 %v108
  %250 = vmatprep.subr.mxu0 0.0
  %251 = vmatpush1.msra.mxu0 %v109
  %252 = vmatprep.mubr.f32.mxu0 %v15
  %253 = vmatmul.mubr.f32.gmra.mrb[0].mxu0 %v14
  %v254 = vpop.f32.mrb[0].mxu0
  %v255 = vadd.f32 %v137, %v254
  %v256 = vpop.f32.mrb[0].mxu0
  %257 = vmatprep.mubr.f32.mxu0 %v19
  %258 = vmatmul.mubr.f32.gmra.mrb[0].mxu0 %v18
  %v259 = vpop.f32.mrb[0].mxu0
  %v260 = vadd.f32 %v137, %v259
  %v261 = vpop.f32.mrb[0].mxu0
  %262 = vmatprep.mubr.f32.mxu0 %v23
  %263 = vmatmul.mubr.f32.gmra.mrb[0].mxu0 %v22
  %v264 = vpop.f32.mrb[0].mxu0
  %v265 = vadd.f32 %v137, %v264
  %v266 = vpop.f32.mrb[0].mxu0
  %267 = vmatprep.mubr.f32.mxu0 %v27
  %268 = vmatmul.mubr.f32.gmra.mrb[0].mxu0 %v26
  %v269 = vpop.f32.mrb[0].mxu0
  %v270 = vadd.f32 %v137, %v269
  %v271 = vpop.f32.mrb[0].mxu0
  %272 = vmatprep.mubr.f32.mxu0 %v31
  %273 = vmatmul.mubr.f32.gmra.mrb[0].mxu0 %v30
  %v274 = vpop.f32.mrb[0].mxu0
  %v275 = vadd.f32 %v137, %v274
  %v276 = vpop.f32.mrb[0].mxu0
  %277 = vmatprep.mubr.f32.mxu0 %v35
  %278 = vmatmul.mubr.f32.gmra.mrb[0].mxu0 %v34
  %v279 = vpop.f32.mrb[0].mxu0
  %v280 = vadd.f32 %v137, %v279
  %v281 = vpop.f32.mrb[0].mxu0
  %282 = vmatprep.mubr.f32.mxu0 %v39
  %283 = vmatmul.mubr.f32.gmra.mrb[0].mxu0 %v38
  %v284 = vpop.f32.mrb[0].mxu0
  %v285 = vadd.f32 %v137, %v284
  %v286 = vpop.f32.mrb[0].mxu0
  %287 = vmatprep.mubr.f32.mxu0 %v43
  %288 = vmatmul.mubr.f32.gmra.mrb[0].mxu0 %v42
  %v289 = vpop.f32.mrb[0].mxu0
  %v290 = vadd.f32 %v137, %v289
  %v291 = vpop.f32.mrb[0].mxu0
  %292 = vmatprep.mubr.f32.mxu0 %v47
  %293 = vmatmul.mubr.f32.gmra.mrb[0].mxu0 %v46
  %v294 = vpop.f32.mrb[0].mxu0
  %v295 = vadd.f32 %v137, %v294
  %v296 = vpop.f32.mrb[0].mxu0
  %297 = vmatprep.mubr.f32.mxu0 %v51
  %298 = vmatmul.mubr.f32.gmra.mrb[0].mxu0 %v50
  %v299 = vpop.f32.mrb[0].mxu0
  %v300 = vadd.f32 %v137, %v299
  %v301 = vpop.f32.mrb[0].mxu0
  %302 = vmatprep.mubr.f32.mxu0 %v55
  %303 = vmatmul.mubr.f32.gmra.mrb[0].mxu0 %v54
  %v304 = vpop.f32.mrb[0].mxu0
  %v305 = vadd.f32 %v137, %v304
  %v306 = vpop.f32.mrb[0].mxu0
  %307 = vmatprep.mubr.f32.mxu0 %v59
  %308 = vmatmul.mubr.f32.gmra.mrb[0].mxu0 %v58
  %v309 = vpop.f32.mrb[0].mxu0
  %v310 = vadd.f32 %v137, %v309
  %v311 = vpop.f32.mrb[0].mxu0
  %312 = vmatprep.mubr.f32.mxu0 %v63
  %313 = vmatmul.mubr.f32.gmra.mrb[0].mxu0 %v62
  %v314 = vpop.f32.mrb[0].mxu0
  %v315 = vadd.f32 %v137, %v314
  %v316 = vpop.f32.mrb[0].mxu0
  %317 = vmatprep.mubr.f32.mxu0 %v67
  %318 = vmatmul.mubr.f32.gmra.mrb[0].mxu0 %v66
  %v319 = vpop.f32.mrb[0].mxu0
  %v320 = vadd.f32 %v137, %v319
  %v321 = vpop.f32.mrb[0].mxu0
  %322 = vmatprep.mubr.f32.mxu0 %v71
  %323 = vmatmul.mubr.f32.gmra.mrb[0].mxu0 %v70
  %v324 = vpop.f32.mrb[0].mxu0
  %v325 = vadd.f32 %v137, %v324
  %v326 = vpop.f32.mrb[0].mxu0
  %327 = vmatprep.mubr.f32.mxu0 %v75
  %328 = vmatmul.mubr.f32.gmra.mrb[0].mxu0 %v74
  %v329 = vpop.f32.mrb[0].mxu0
  %v330 = vadd.f32 %v137, %v329
  %v331 = vpop.f32.mrb[0].mxu0
  %332 = vdwg.mxu0
  %333 = vmatprep.subr.mxu0 0.0
  %334 = vmatpush1.msra.mxu0 %v110
  %335 = vmatprep.subr.mxu0 0.0
  %336 = vmatpush1.msra.mxu0 %v111
  %337 = vmatprep.subr.mxu0 0.0
  %338 = vmatpush1.msra.mxu0 %v112
  %339 = vmatprep.subr.mxu0 0.0
  %340 = vmatpush1.msra.mxu0 %v113
  %341 = vmatprep.subr.mxu0 0.0
  %342 = vmatpush1.msra.mxu0 %v114
  %343 = vmatprep.subr.mxu0 0.0
  %344 = vmatpush1.msra.mxu0 %v115
  %345 = vmatprep.subr.mxu0 0.0
  %346 = vmatpush1.msra.mxu0 %v116
  %347 = vmatprep.subr.mxu0 0.0
  %348 = vmatpush1.msra.mxu0 %v117
  %349 = vmatprep.subr.mxu0 0.0
  %350 = vmatpush1.msra.mxu0 %v118
  %351 = vmatprep.subr.mxu0 0.0
  %352 = vmatpush1.msra.mxu0 %v119
  %353 = vmatprep.subr.mxu0 0.0
  %354 = vmatpush1.msra.mxu0 %v120
  %355 = vmatprep.subr.mxu0 0.0
  %356 = vmatpush1.msra.mxu0 %v121
  %357 = vmatprep.subr.mxu0 0.0
  %358 = vmatpush1.msra.mxu0 %v122
  %359 = vmatprep.subr.mxu0 0.0
  %360 = vmatpush1.msra.mxu0 %v123
  %361 = vmatprep.subr.mxu0 0.0
  %362 = vmatpush1.msra.mxu0 %v124
  %363 = vmatprep.subr.mxu0 0.0
  %364 = vmatpush1.msra.mxu0 %v125
  %365 = vmatprep.subr.mxu0 0.0
  %366 = vmatpush1.msra.mxu0 %v126
  %367 = vmatprep.subr.mxu0 0.0
  %368 = vmatpush1.msra.mxu0 %v127
  %369 = vmatprep.subr.mxu0 0.0
  %370 = vmatpush1.msra.mxu0 %v128
  %371 = vmatprep.subr.mxu0 0.0
  %372 = vmatpush1.msra.mxu0 %v129
  %373 = vmatprep.subr.mxu0 0.0
  %374 = vmatpush1.msra.mxu0 %v130
  %375 = vmatprep.subr.mxu0 0.0
  %376 = vmatpush1.msra.mxu0 %v131
  %377 = vmatprep.subr.mxu0 0.0
  %378 = vmatpush1.msra.mxu0 0.0
  %379 = vmatprep.subr.mxu0 0.0
  %380 = vmatpush1.msra.mxu0 0.0
  %381 = vmatprep.subr.mxu0 0.0
  %382 = vmatpush1.msra.mxu0 0.0
  %383 = vmatprep.subr.mxu0 0.0
  %384 = vmatpush1.msra.mxu0 0.0
  %385 = vmatprep.subr.mxu0 0.0
  %386 = vmatpush1.msra.mxu0 0.0
  %387 = vmatprep.subr.mxu0 0.0
  %388 = vmatpush1.msra.mxu0 0.0
  %389 = vmatprep.subr.mxu0 0.0
  %390 = vmatpush1.msra.mxu0 0.0
  %391 = vmatprep.subr.mxu0 0.0
  %392 = vmatpush1.msra.mxu0 0.0
  %393 = vmatprep.subr.mxu0 0.0
  %394 = vmatpush1.msra.mxu0 0.0
  %395 = vmatprep.subr.mxu0 0.0
  %396 = vmatpush1.msra.mxu0 0.0
  %397 = vmatprep.mubr.f32.mxu0 %v141
  %398 = vmatmul.mubr.f32.gmra.mrb[0].mxu0 %v16
  %v399 = vpop.f32.mrb[0].mxu0
  %v400 = vadd.f32 %v255, %v399
  %v401 = vpop.f32.mrb[0].mxu0
  %402 = vmatprep.mubr.f32.mxu0 %v144
  %403 = vmatmul.mubr.f32.gmra.mrb[0].mxu0 %v20
  %v404 = vpop.f32.mrb[0].mxu0
  %v405 = vadd.f32 %v260, %v404
  %v406 = vpop.f32.mrb[0].mxu0
  %407 = vmatprep.mubr.f32.mxu0 %v147
  %408 = vmatmul.mubr.f32.gmra.mrb[0].mxu0 %v24
  %v409 = vpop.f32.mrb[0].mxu0
  %v410 = vadd.f32 %v265, %v409
  %v411 = vpop.f32.mrb[0].mxu0
  %412 = vmatprep.mubr.f32.mxu0 %v150
  %413 = vmatmul.mubr.f32.gmra.mrb[0].mxu0 %v28
  %v414 = vpop.f32.mrb[0].mxu0
  %v415 = vadd.f32 %v270, %v414
  %v416 = vpop.f32.mrb[0].mxu0
  %417 = vmatprep.mubr.f32.mxu0 %v153
  %418 = vmatmul.mubr.f32.gmra.mrb[0].mxu0 %v32
  %v419 = vpop.f32.mrb[0].mxu0
  %v420 = vadd.f32 %v275, %v419
  %v421 = vpop.f32.mrb[0].mxu0
  %422 = vmatprep.mubr.f32.mxu0 %v156
  %423 = vmatmul.mubr.f32.gmra.mrb[0].mxu0 %v36
  %v424 = vpop.f32.mrb[0].mxu0
  %v425 = vadd.f32 %v280, %v424
  %v426 = vpop.f32.mrb[0].mxu0
  %427 = vmatprep.mubr.f32.mxu0 %v159
  %428 = vmatmul.mubr.f32.gmra.mrb[0].mxu0 %v40
  %v429 = vpop.f32.mrb[0].mxu0
  %v430 = vadd.f32 %v285, %v429
  %v431 = vpop.f32.mrb[0].mxu0
  %432 = vmatprep.mubr.f32.mxu0 %v162
  %433 = vmatmul.mubr.f32.gmra.mrb[0].mxu0 %v44
  %v434 = vpop.f32.mrb[0].mxu0
  %v435 = vadd.f32 %v290, %v434
  %v436 = vpop.f32.mrb[0].mxu0
  %437 = vmatprep.mubr.f32.mxu0 %v165
  %438 = vmatmul.mubr.f32.gmra.mrb[0].mxu0 %v48
  %v439 = vpop.f32.mrb[0].mxu0
  %v440 = vadd.f32 %v295, %v439
  %v441 = vpop.f32.mrb[0].mxu0
  %442 = vmatprep.mubr.f32.mxu0 %v168
  %443 = vmatmul.mubr.f32.gmra.mrb[0].mxu0 %v52
  %v444 = vpop.f32.mrb[0].mxu0
  %v445 = vadd.f32 %v300, %v444
  %v446 = vpop.f32.mrb[0].mxu0
  %447 = vmatprep.mubr.f32.mxu0 %v171
  %448 = vmatmul.mubr.f32.gmra.mrb[0].mxu0 %v56
  %v449 = vpop.f32.mrb[0].mxu0
  %v450 = vadd.f32 %v305, %v449
  %v451 = vpop.f32.mrb[0].mxu0
  %452 = vmatprep.mubr.f32.mxu0 %v174
  %453 = vmatmul.mubr.f32.gmra.mrb[0].mxu0 %v60
  %v454 = vpop.f32.mrb[0].mxu0
  %v455 = vadd.f32 %v310, %v454
  %v456 = vpop.f32.mrb[0].mxu0
  %457 = vmatprep.mubr.f32.mxu0 %v177
  %458 = vmatmul.mubr.f32.gmra.mrb[0].mxu0 %v64
  %v459 = vpop.f32.mrb[0].mxu0
  %v460 = vadd.f32 %v315, %v459
  %v461 = vpop.f32.mrb[0].mxu0
  %462 = vmatprep.mubr.f32.mxu0 %v180
  %463 = vmatmul.mubr.f32.gmra.mrb[0].mxu0 %v68
  %v464 = vpop.f32.mrb[0].mxu0
  %v465 = vadd.f32 %v320, %v464
  %v466 = vpop.f32.mrb[0].mxu0
  %467 = vmatprep.mubr.f32.mxu0 %v183
  %468 = vmatmul.mubr.f32.gmra.mrb[0].mxu0 %v72
  %v469 = vpop.f32.mrb[0].mxu0
  %v470 = vadd.f32 %v325, %v469
  %v471 = vpop.f32.mrb[0].mxu0
  %472 = vmatprep.mubr.f32.mxu0 %v186
  %473 = vmatmul.mubr.f32.gmra.mrb[0].mxu0 %v76
  %v474 = vpop.f32.mrb[0].mxu0
  %v475 = vadd.f32 %v330, %v474
  %v476 = vpop.f32.mrb[0].mxu0
  %477 = vdwg.mxu0
  %vm478 = vcmp.ge.f32.partialorder %v400, 0.0
  %vm479 = vcmp.ge.f32.partialorder %v405, 0.0
  %vm480 = vcmp.ge.f32.partialorder %v410, 0.0
  %vm481 = vcmp.ge.f32.partialorder %v415, 0.0
  %vm482 = vcmp.ge.f32.partialorder %v420, 0.0
  %vm483 = vcmp.ge.f32.partialorder %v425, 0.0
  %vm484 = vcmp.ge.f32.partialorder %v430, 0.0
  %vm485 = vcmp.ge.f32.partialorder %v435, 0.0
  %vm486 = vcmp.ge.f32.partialorder %v440, 0.0
  %vm487 = vcmp.ge.f32.partialorder %v445, 0.0
  %vm488 = vcmp.ge.f32.partialorder %v450, 0.0
  %vm489 = vcmp.ge.f32.partialorder %v455, 0.0
  %vm490 = vcmp.ge.f32.partialorder %v460, 0.0
  %vm491 = vcmp.ge.f32.partialorder %v465, 0.0
  %vm492 = vcmp.ge.f32.partialorder %v470, 0.0
  %vm493 = vcmp.ge.f32.partialorder %v475, 0.0
  %v494 = vmul.f32 %v400, 0.1
  %v495 = vmul.f32 %v405, 0.1
  %v496 = vmul.f32 %v410, 0.1
  %v497 = vmul.f32 %v415, 0.1
  %v498 = vmul.f32 %v420, 0.1
  %v499 = vmul.f32 %v425, 0.1
  %v500 = vmul.f32 %v430, 0.1
  %v501 = vmul.f32 %v435, 0.1
  %v502 = vmul.f32 %v440, 0.1
  %v503 = vmul.f32 %v445, 0.1
  %v504 = vmul.f32 %v450, 0.1
  %v505 = vmul.f32 %v455, 0.1
  %v506 = vmul.f32 %v460, 0.1
  %v507 = vmul.f32 %v465, 0.1
  %v508 = vmul.f32 %v470, 0.1
  %v509 = vmul.f32 %v475, 0.1
  %v510 = vsel %vm478, %v400, %v494
  %v511 = vsel %vm479, %v405, %v495
  %v512 = vsel %vm480, %v410, %v496
  %v513 = vsel %vm481, %v415, %v497
  %v514 = vsel %vm482, %v420, %v498
  %v515 = vsel %vm483, %v425, %v499
  %v516 = vsel %vm484, %v430, %v500
  %v517 = vsel %vm485, %v435, %v501
  %v518 = vsel %vm486, %v440, %v502
  %v519 = vsel %vm487, %v445, %v503
  %v520 = vsel %vm488, %v450, %v504
  %v521 = vsel %vm489, %v455, %v505
  %v522 = vsel %vm490, %v460, %v506
  %v523 = vsel %vm491, %v465, %v507
  %v524 = vsel %vm492, %v470, %v508
  %v525 = vsel %vm493, %v475, %v509
  %526 = vst.msk [vmem:[%s3] sm:$0xff] %vm139, %v510
  %527 = vst.msk [vmem:[%s3 + $0x8] sm:$0xff] %vm139, %v511
  %528 = vst.msk [vmem:[%s3 + $0x10] sm:$0xff] %vm139, %v512
  %529 = vst.msk [vmem:[%s3 + $0x18] sm:$0xff] %vm139, %v513
  %530 = vst.msk [vmem:[%s3 + $0x20] sm:$0xff] %vm139, %v514
  %531 = vst.msk [vmem:[%s3 + $0x28] sm:$0xff] %vm139, %v515
  %532 = vst.msk [vmem:[%s3 + $0x30] sm:$0xff] %vm139, %v516
  %533 = vst.msk [vmem:[%s3 + $0x38] sm:$0xff] %vm139, %v517
  %534 = vst.msk [vmem:[%s3 + $0x40] sm:$0xff] %vm139, %v518
  %535 = vst.msk [vmem:[%s3 + $0x48] sm:$0xff] %vm139, %v519
  %536 = vst.msk [vmem:[%s3 + $0x50] sm:$0xff] %vm139, %v520
  %537 = vst.msk [vmem:[%s3 + $0x58] sm:$0xff] %vm139, %v521
  %538 = vst.msk [vmem:[%s3 + $0x60] sm:$0xff] %vm139, %v522
  %539 = vst.msk [vmem:[%s3 + $0x68] sm:$0xff] %vm139, %v523
  %540 = vst.msk [vmem:[%s3 + $0x70] sm:$0xff] %vm139, %v524
  %541 = vst.msk [vmem:[%s3 + $0x78] sm:$0xff] %vm139, %v525
  // Predicated region
  $region14: #{_lambda_.17} parent=0 // pred_check
    _
  $region15: #{_lambda_.17} parent=0 // pred_check_branch
    %543 = sbr.rel (0) target = $region17
  $region16: #{_lambda_.17} parent=0 // pred_region
    _
  $region17: #{_lambda_.17} parent=0 // pred_fallthru
    _
  // Predicated region
  $region18: #{_lambda_.17} parent=0 // pred_check
    _
  $region19: #{_lambda_.17} parent=0 // pred_check_branch
    %545 = sbr.rel (0) target = $region21
  $region20: #{_lambda_.17} parent=0 // pred_region
    _
  $region21: #{_lambda_.17} parent=0 // pred_fallthru
    _

// kernel: _lambda_.20
$region0: #{_lambda_.20}
  #allocation0 [shape = 'u32[]', space=smem, size = 0x4, offset = 0x4, fixed_abs, tag = 'smem constant byte address 0x4 - core index']
  #allocation1 [shape = 'u32[144,128]{1,0:T(1,128)}', space=vmem, size = 0x12000, scoped, tag = 'internal scratch']
  %s0 = inlined_call_operand.vmem [shape: f32[32,432], index: 0, kind: input, shape index: {}]
  %s1 = inlined_call_operand.vmem [shape: f32[432,96], index: 1, kind: input, shape index: {}]
  %s2 = inlined_call_operand.vmem [shape: f32[1,96], index: 2, kind: input, shape index: {}]
  %s3 = inlined_call_operand.vmem [shape: f32[32,96], index: 3, kind: output, shape index: {}]
  %s4 = sld [smem:[#allocation0]]
  $region22: #{_lambda_.20} parent=0
    _
  %s6 = ssub.s32 1, %s4
  %s7 = scalar_select 0, %s6, %s4
  // Predicated region
  $region2: #{_lambda_.20} parent=0 // pred_check
    _
  $region3: #{_lambda_.20} parent=0 // pred_check_branch
    %9 = sbr.rel (0) target = $region5
  $region4: #{_lambda_.20} parent=0 // pred_region
    _
  $region5: #{_lambda_.20} parent=0 // pred_fallthru
    _
  // Predicated region
  $region6: #{_lambda_.20} parent=0 // pred_check
    _
  $region7: #{_lambda_.20} parent=0 // pred_check_branch
    %11 = sbr.rel (0) target = $region9
  $region8: #{_lambda_.20} parent=0 // pred_region
    _
  $region9: #{_lambda_.20} parent=0 // pred_fallthru
    _
  // Predicated region
  $region10: #{_lambda_.20} parent=0 // pred_check
    _
  $region11: #{_lambda_.20} parent=0 // pred_check_branch
    %13 = sbr.rel (0) target = $region13
  $region12: #{_lambda_.20} parent=0 // pred_region
    _
  $region13: #{_lambda_.20} parent=0 // pred_fallthru
    _
  %v14 = vld [vmem:[%s0] sm:$0xff]
  %v15 = vld [vmem:[%s0 + $0x8] sm:$0xff]
  %v16 = vld [vmem:[%s0 + $0x10] sm:$0xff]
  %v17 = vld [vmem:[%s0 + $0x18] sm:$0xff]
  %v18 = vld [vmem:[%s0 + $0x20] sm:$0xff]
  %v19 = vld [vmem:[%s0 + $0x28] sm:$0xff]
  %v20 = vld [vmem:[%s0 + $0x30] sm:$0xff]
  %v21 = vld [vmem:[%s0 + $0x38] sm:$0xff]
  %v22 = vld [vmem:[%s0 + $0x40] sm:$0xff]
  %v23 = vld [vmem:[%s0 + $0x48] sm:$0xff]
  %v24 = vld [vmem:[%s0 + $0x50] sm:$0xff]
  %v25 = vld [vmem:[%s0 + $0x58] sm:$0xff]
  %v26 = vld [vmem:[%s0 + $0x60] sm:$0xff]
  %v27 = vld [vmem:[%s0 + $0x68] sm:$0xff]
  %v28 = vld [vmem:[%s0 + $0x70] sm:$0xff]
  %v29 = vld [vmem:[%s0 + $0x78] sm:$0xff]
  %v30 = vld [vmem:[%s1] sm:$0xff]
  %v31 = vld [vmem:[%s1 + $0x8] sm:$0xff]
  %v32 = vld [vmem:[%s1 + $0x10] sm:$0xff]
  %v33 = vld [vmem:[%s1 + $0x18] sm:$0xff]
  %v34 = vld [vmem:[%s1 + $0x20] sm:$0xff]
  %v35 = vld [vmem:[%s1 + $0x28] sm:$0xff]
  %v36 = vld [vmem:[%s1 + $0x30] sm:$0xff]
  %v37 = vld [vmem:[%s1 + $0x38] sm:$0xff]
  %v38 = vld [vmem:[%s1 + $0x40] sm:$0xff]
  %v39 = vld [vmem:[%s1 + $0x48] sm:$0xff]
  %v40 = vld [vmem:[%s1 + $0x50] sm:$0xff]
  %v41 = vld [vmem:[%s1 + $0x58] sm:$0xff]
  %v42 = vld [vmem:[%s1 + $0x60] sm:$0xff]
  %v43 = vld [vmem:[%s1 + $0x68] sm:$0xff]
  %v44 = vld [vmem:[%s1 + $0x70] sm:$0xff]
  %v45 = vld [vmem:[%s1 + $0x78] sm:$0xff]
  %v46 = vld [vmem:[%s1 + $0x80] sm:$0xff]
  %v47 = vld [vmem:[%s1 + $0x88] sm:$0xff]
  %v48 = vld [vmem:[%s1 + $0x90] sm:$0xff]
  %v49 = vld [vmem:[%s1 + $0x98] sm:$0xff]
  %v50 = vld [vmem:[%s1 + $0xa0] sm:$0xff]
  %v51 = vld [vmem:[%s1 + $0xa8] sm:$0xff]
  %v52 = vld [vmem:[%s1 + $0xb0] sm:$0xff]
  %v53 = vld [vmem:[%s1 + $0xb8] sm:$0xff]
  %v54 = vld [vmem:[%s1 + $0xc0] sm:$0xff]
  %v55 = vld [vmem:[%s1 + $0xc8] sm:$0xff]
  %v56 = vld [vmem:[%s1 + $0xd0] sm:$0xff]
  %v57 = vld [vmem:[%s1 + $0xd8] sm:$0xff]
  %v58 = vld [vmem:[%s1 + $0xe0] sm:$0xff]
  %v59 = vld [vmem:[%s1 + $0xe8] sm:$0xff]
  %v60 = vld [vmem:[%s1 + $0xf0] sm:$0xff]
  %v61 = vld [vmem:[%s1 + $0xf8] sm:$0xff]
  %v62 = vld [vmem:[%s1 + $0x100] sm:$0xff]
  %v63 = vld [vmem:[%s1 + $0x108] sm:$0xff]
  %v64 = vld [vmem:[%s1 + $0x110] sm:$0xff]
  %v65 = vld [vmem:[%s1 + $0x118] sm:$0xff]
  %v66 = vld [vmem:[%s1 + $0x120] sm:$0xff]
  %v67 = vld [vmem:[%s1 + $0x128] sm:$0xff]
  %v68 = vld [vmem:[%s1 + $0x130] sm:$0xff]
  %v69 = vld [vmem:[%s1 + $0x138] sm:$0xff]
  %v70 = vld [vmem:[%s1 + $0x140] sm:$0xff]
  %v71 = vld [vmem:[%s1 + $0x148] sm:$0xff]
  %v72 = vld [vmem:[%s1 + $0x150] sm:$0xff]
  %v73 = vld [vmem:[%s1 + $0x158] sm:$0xff]
  %v74 = vld [vmem:[%s1 + $0x160] sm:$0xff]
  %v75 = vld [vmem:[%s1 + $0x168] sm:$0xff]
  %v76 = vld [vmem:[%s1 + $0x170] sm:$0xff]
  %v77 = vld [vmem:[%s1 + $0x178] sm:$0xff]
  %v78 = vld [vmem:[%s1 + $0x180] sm:$0xff]
  %v79 = vld [vmem:[%s1 + $0x188] sm:$0xff]
  %v80 = vld [vmem:[%s1 + $0x190] sm:$0xff]
  %v81 = vld [vmem:[%s1 + $0x198] sm:$0xff]
  %v82 = vld [vmem:[%s1 + $0x1a0] sm:$0xff]
  %v83 = vld [vmem:[%s1 + $0x1a8] sm:$0xff]
  %v84 = vld [vmem:[%s2] sm:$0x1]
  %v86 = vlaneseq
  %v87 = vshrl.u32 %v86, 7
  %v88 = vsub.s32 0, %v87
  %v89 = vrot.slane %v84, %v88
  %vm91 = vcmask 392192
  %v93 = vsel %vm91, %v17, 0
  %v96 = vsel %vm91, %v21, 0
  %v99 = vsel %vm91, %v25, 0
  %v102 = vsel %vm91, %v29, 0
  %104 = vmatprep.subr.mxu0 0.0
  %105 = vmatpush1.msra.mxu0 %v30
  %106 = vmatprep.subr.mxu0 0.0
  %107 = vmatpush1.msra.mxu0 %v31
  %108 = vmatprep.subr.mxu0 0.0
  %109 = vmatpush1.msra.mxu0 %v32
  %110 = vmatprep.subr.mxu0 0.0
  %111 = vmatpush1.msra.mxu0 %v33
  %112 = vmatprep.subr.mxu0 0.0
  %113 = vmatpush1.msra.mxu0 %v34
  %114 = vmatprep.subr.mxu0 0.0
  %115 = vmatpush1.msra.mxu0 %v35
  %116 = vmatprep.subr.mxu0 0.0
  %117 = vmatpush1.msra.mxu0 %v36
  %118 = vmatprep.subr.mxu0 0.0
  %119 = vmatpush1.msra.mxu0 %v37
  %120 = vmatprep.subr.mxu0 0.0
  %121 = vmatpush1.msra.mxu0 %v38
  %122 = vmatprep.subr.mxu0 0.0
  %123 = vmatpush1.msra.mxu0 %v39
  %124 = vmatprep.subr.mxu0 0.0
  %125 = vmatpush1.msra.mxu0 %v40
  %126 = vmatprep.subr.mxu0 0.0
  %127 = vmatpush1.msra.mxu0 %v41
  %128 = vmatprep.subr.mxu0 0.0
  %129 = vmatpush1.msra.mxu0 %v42
  %130 = vmatprep.subr.mxu0 0.0
  %131 = vmatpush1.msra.mxu0 %v43
  %132 = vmatprep.subr.mxu0 0.0
  %133 = vmatpush1.msra.mxu0 %v44
  %134 = vmatprep.subr.mxu0 0.0
  %135 = vmatpush1.msra.mxu0 %v45
  %136 = vmatprep.subr.mxu0 0.0
  %137 = vmatpush1.msra.mxu0 %v46
  %138 = vmatprep.subr.mxu0 0.0
  %139 = vmatpush1.msra.mxu0 %v47
  %140 = vmatprep.subr.mxu0 0.0
  %141 = vmatpush1.msra.mxu0 %v48
  %142 = vmatprep.subr.mxu0 0.0
  %143 = vmatpush1.msra.mxu0 %v49
  %144 = vmatprep.subr.mxu0 0.0
  %145 = vmatpush1.msra.mxu0 %v50
  %146 = vmatprep.subr.mxu0 0.0
  %147 = vmatpush1.msra.mxu0 %v51
  %148 = vmatprep.subr.mxu0 0.0
  %149 = vmatpush1.msra.mxu0 %v52
  %150 = vmatprep.subr.mxu0 0.0
  %151 = vmatpush1.msra.mxu0 %v53
  %152 = vmatprep.subr.mxu0 0.0
  %153 = vmatpush1.msra.mxu0 %v54
  %154 = vmatprep.subr.mxu0 0.0
  %155 = vmatpush1.msra.mxu0 %v55
  %156 = vmatprep.subr.mxu0 0.0
  %157 = vmatpush1.msra.mxu0 %v56
  %158 = vmatprep.subr.mxu0 0.0
  %159 = vmatpush1.msra.mxu0 %v57
  %160 = vmatprep.subr.mxu0 0.0
  %161 = vmatpush1.msra.mxu0 %v58
  %162 = vmatprep.subr.mxu0 0.0
  %163 = vmatpush1.msra.mxu0 %v59
  %164 = vmatprep.subr.mxu0 0.0
  %165 = vmatpush1.msra.mxu0 %v60
  %166 = vmatprep.subr.mxu0 0.0
  %167 = vmatpush1.msra.mxu0 %v61
  %168 = vmatprep.mubr.f32.mxu0 %v15
  %169 = vmatmul.mubr.f32.gmra.mrb[0].mxu0 %v14
  %v170 = vpop.f32.mrb[0].mxu0
  %v171 = vadd.f32 %v89, %v170
  %v172 = vpop.f32.mrb[0].mxu0
  %173 = vmatprep.mubr.f32.mxu0 %v19
  %174 = vmatmul.mubr.f32.gmra.mrb[0].mxu0 %v18
  %v175 = vpop.f32.mrb[0].mxu0
  %v176 = vadd.f32 %v89, %v175
  %v177 = vpop.f32.mrb[0].mxu0
  %178 = vmatprep.mubr.f32.mxu0 %v23
  %179 = vmatmul.mubr.f32.gmra.mrb[0].mxu0 %v22
  %v180 = vpop.f32.mrb[0].mxu0
  %v181 = vadd.f32 %v89, %v180
  %v182 = vpop.f32.mrb[0].mxu0
  %183 = vmatprep.mubr.f32.mxu0 %v27
  %184 = vmatmul.mubr.f32.gmra.mrb[0].mxu0 %v26
  %v185 = vpop.f32.mrb[0].mxu0
  %v186 = vadd.f32 %v89, %v185
  %v187 = vpop.f32.mrb[0].mxu0
  %188 = vdwg.mxu0
  %189 = vmatprep.subr.mxu0 0.0
  %190 = vmatpush1.msra.mxu0 %v62
  %191 = vmatprep.subr.mxu0 0.0
  %192 = vmatpush1.msra.mxu0 %v63
  %193 = vmatprep.subr.mxu0 0.0
  %194 = vmatpush1.msra.mxu0 %v64
  %195 = vmatprep.subr.mxu0 0.0
  %196 = vmatpush1.msra.mxu0 %v65
  %197 = vmatprep.subr.mxu0 0.0
  %198 = vmatpush1.msra.mxu0 %v66
  %199 = vmatprep.subr.mxu0 0.0
  %200 = vmatpush1.msra.mxu0 %v67
  %201 = vmatprep.subr.mxu0 0.0
  %202 = vmatpush1.msra.mxu0 %v68
  %203 = vmatprep.subr.mxu0 0.0
  %204 = vmatpush1.msra.mxu0 %v69
  %205 = vmatprep.subr.mxu0 0.0
  %206 = vmatpush1.msra.mxu0 %v70
  %207 = vmatprep.subr.mxu0 0.0
  %208 = vmatpush1.msra.mxu0 %v71
  %209 = vmatprep.subr.mxu0 0.0
  %210 = vmatpush1.msra.mxu0 %v72
  %211 = vmatprep.subr.mxu0 0.0
  %212 = vmatpush1.msra.mxu0 %v73
  %213 = vmatprep.subr.mxu0 0.0
  %214 = vmatpush1.msra.mxu0 %v74
  %215 = vmatprep.subr.mxu0 0.0
  %216 = vmatpush1.msra.mxu0 %v75
  %217 = vmatprep.subr.mxu0 0.0
  %218 = vmatpush1.msra.mxu0 %v76
  %219 = vmatprep.subr.mxu0 0.0
  %220 = vmatpush1.msra.mxu0 %v77
  %221 = vmatprep.subr.mxu0 0.0
  %222 = vmatpush1.msra.mxu0 %v78
  %223 = vmatprep.subr.mxu0 0.0
  %224 = vmatpush1.msra.mxu0 %v79
  %225 = vmatprep.subr.mxu0 0.0
  %226 = vmatpush1.msra.mxu0 %v80
  %227 = vmatprep.subr.mxu0 0.0
  %228 = vmatpush1.msra.mxu0 %v81
  %229 = vmatprep.subr.mxu0 0.0
  %230 = vmatpush1.msra.mxu0 %v82
  %231 = vmatprep.subr.mxu0 0.0
  %232 = vmatpush1.msra.mxu0 %v83
  %233 = vmatprep.subr.mxu0 0.0
  %234 = vmatpush1.msra.mxu0 0.0
  %235 = vmatprep.subr.mxu0 0.0
  %236 = vmatpush1.msra.mxu0 0.0
  %237 = vmatprep.subr.mxu0 0.0
  %238 = vmatpush1.msra.mxu0 0.0
  %239 = vmatprep.subr.mxu0 0.0
  %240 = vmatpush1.msra.mxu0 0.0
  %241 = vmatprep.subr.mxu0 0.0
  %242 = vmatpush1.msra.mxu0 0.0
  %243 = vmatprep.subr.mxu0 0.0
  %244 = vmatpush1.msra.mxu0 0.0
  %245 = vmatprep.subr.mxu0 0.0
  %246 = vmatpush1.msra.mxu0 0.0
  %247 = vmatprep.subr.mxu0 0.0
  %248 = vmatpush1.msra.mxu0 0.0
  %249 = vmatprep.subr.mxu0 0.0
  %250 = vmatpush1.msra.mxu0 0.0
  %251 = vmatprep.subr.mxu0 0.0
  %252 = vmatpush1.msra.mxu0 0.0
  %253 = vmatprep.mubr.f32.mxu0 %v93
  %254 = vmatmul.mubr.f32.gmra.mrb[0].mxu0 %v16
  %v255 = vpop.f32.mrb[0].mxu0
  %v256 = vadd.f32 %v171, %v255
  %v257 = vpop.f32.mrb[0].mxu0
  %258 = vmatprep.mubr.f32.mxu0 %v96
  %259 = vmatmul.mubr.f32.gmra.mrb[0].mxu0 %v20
  %v260 = vpop.f32.mrb[0].mxu0
  %v261 = vadd.f32 %v176, %v260
  %v262 = vpop.f32.mrb[0].mxu0
  %263 = vmatprep.mubr.f32.mxu0 %v99
  %264 = vmatmul.mubr.f32.gmra.mrb[0].mxu0 %v24
  %v265 = vpop.f32.mrb[0].mxu0
  %v266 = vadd.f32 %v181, %v265
  %v267 = vpop.f32.mrb[0].mxu0
  %268 = vmatprep.mubr.f32.mxu0 %v102
  %269 = vmatmul.mubr.f32.gmra.mrb[0].mxu0 %v28
  %v270 = vpop.f32.mrb[0].mxu0
  %v271 = vadd.f32 %v186, %v270
  %v272 = vpop.f32.mrb[0].mxu0
  %273 = vdwg.mxu0
  %vm274 = vcmp.ge.f32.partialorder %v256, 0.0
  %vm275 = vcmp.ge.f32.partialorder %v261, 0.0
  %vm276 = vcmp.ge.f32.partialorder %v266, 0.0
  %vm277 = vcmp.ge.f32.partialorder %v271, 0.0
  %v278 = vmul.f32 %v256, 0.1
  %v279 = vmul.f32 %v261, 0.1
  %v280 = vmul.f32 %v266, 0.1
  %v281 = vmul.f32 %v271, 0.1
  %v282 = vsel %vm274, %v256, %v278
  %v283 = vsel %vm275, %v261, %v279
  %v284 = vsel %vm276, %v266, %v280
  %v285 = vsel %vm277, %v271, %v281
  %vm286 = vcmask 785408
  %287 = vst.msk [vmem:[%s3] sm:$0xff] %vm286, %v282
  %288 = vst.msk [vmem:[%s3 + $0x8] sm:$0xff] %vm286, %v283
  %289 = vst.msk [vmem:[%s3 + $0x10] sm:$0xff] %vm286, %v284
  %290 = vst.msk [vmem:[%s3 + $0x18] sm:$0xff] %vm286, %v285
  // Predicated region
  $region14: #{_lambda_.20} parent=0 // pred_check
    _
  $region15: #{_lambda_.20} parent=0 // pred_check_branch
    %292 = sbr.rel (0) target = $region17
  $region16: #{_lambda_.20} parent=0 // pred_region
    _
  $region17: #{_lambda_.20} parent=0 // pred_fallthru
    _
  // Predicated region
  $region18: #{_lambda_.20} parent=0 // pred_check
    _
  $region19: #{_lambda_.20} parent=0 // pred_check_branch
    %294 = sbr.rel (0) target = $region21
  $region20: #{_lambda_.20} parent=0 // pred_region
    _
  $region21: #{_lambda_.20} parent=0 // pred_fallthru
    _

// kernel: _lambda_.21
$region0: #{_lambda_.21}
  #allocation0 [shape = 'u32[]', space=smem, size = 0x4, offset = 0x4, fixed_abs, tag = 'smem constant byte address 0x4 - core index']
  #allocation1 [shape = 'u32[144,128]{1,0:T(1,128)}', space=vmem, size = 0x12000, scoped, tag = 'internal scratch']
  %s0 = inlined_call_operand.vmem [shape: f32[32,864], index: 0, kind: input, shape index: {}]
  %s1 = inlined_call_operand.vmem [shape: f32[864,96], index: 1, kind: input, shape index: {}]
  %s2 = inlined_call_operand.vmem [shape: f32[1,96], index: 2, kind: input, shape index: {}]
  %s3 = inlined_call_operand.vmem [shape: f32[32,96], index: 3, kind: output, shape index: {}]
  %s4 = sld [smem:[#allocation0]]
  $region22: #{_lambda_.21} parent=0
    _
  %s6 = ssub.s32 1, %s4
  %s7 = scalar_select 0, %s6, %s4
  // Predicated region
  $region2: #{_lambda_.21} parent=0 // pred_check
    _
  $region3: #{_lambda_.21} parent=0 // pred_check_branch
    %9 = sbr.rel (0) target = $region5
  $region4: #{_lambda_.21} parent=0 // pred_region
    _
  $region5: #{_lambda_.21} parent=0 // pred_fallthru
    _
  // Predicated region
  $region6: #{_lambda_.21} parent=0 // pred_check
    _
  $region7: #{_lambda_.21} parent=0 // pred_check_branch
    %11 = sbr.rel (0) target = $region9
  $region8: #{_lambda_.21} parent=0 // pred_region
    _
  $region9: #{_lambda_.21} parent=0 // pred_fallthru
    _
  // Predicated region
  $region10: #{_lambda_.21} parent=0 // pred_check
    _
  $region11: #{_lambda_.21} parent=0 // pred_check_branch
    %13 = sbr.rel (0) target = $region13
  $region12: #{_lambda_.21} parent=0 // pred_region
    _
  $region13: #{_lambda_.21} parent=0 // pred_fallthru
    _
  %v14 = vld [vmem:[%s0] sm:$0xff]
  %v15 = vld [vmem:[%s0 + $0x8] sm:$0xff]
  %v16 = vld [vmem:[%s0 + $0x10] sm:$0xff]
  %v17 = vld [vmem:[%s0 + $0x18] sm:$0xff]
  %v18 = vld [vmem:[%s0 + $0x20] sm:$0xff]
  %v19 = vld [vmem:[%s0 + $0x28] sm:$0xff]
  %v20 = vld [vmem:[%s0 + $0x30] sm:$0xff]
  %v21 = vld [vmem:[%s0 + $0x38] sm:$0xff]
  %v22 = vld [vmem:[%s0 + $0x40] sm:$0xff]
  %v23 = vld [vmem:[%s0 + $0x48] sm:$0xff]
  %v24 = vld [vmem:[%s0 + $0x50] sm:$0xff]
  %v25 = vld [vmem:[%s0 + $0x58] sm:$0xff]
  %v26 = vld [vmem:[%s0 + $0x60] sm:$0xff]
  %v27 = vld [vmem:[%s0 + $0x68] sm:$0xff]
  %v28 = vld [vmem:[%s0 + $0x70] sm:$0xff]
  %v29 = vld [vmem:[%s0 + $0x78] sm:$0xff]
  %v30 = vld [vmem:[%s0 + $0x80] sm:$0xff]
  %v31 = vld [vmem:[%s0 + $0x88] sm:$0xff]
  %v32 = vld [vmem:[%s0 + $0x90] sm:$0xff]
  %v33 = vld [vmem:[%s0 + $0x98] sm:$0xff]
  %v34 = vld [vmem:[%s0 + $0xa0] sm:$0xff]
  %v35 = vld [vmem:[%s0 + $0xa8] sm:$0xff]
  %v36 = vld [vmem:[%s0 + $0xb0] sm:$0xff]
  %v37 = vld [vmem:[%s0 + $0xb8] sm:$0xff]
  %v38 = vld [vmem:[%s0 + $0xc0] sm:$0xff]
  %v39 = vld [vmem:[%s0 + $0xc8] sm:$0xff]
  %v40 = vld [vmem:[%s0 + $0xd0] sm:$0xff]
  %v41 = vld [vmem:[%s0 + $0xd8] sm:$0xff]
  %v42 = vld [vmem:[%s1] sm:$0xff]
  %v43 = vld [vmem:[%s1 + $0x8] sm:$0xff]
  %v44 = vld [vmem:[%s1 + $0x10] sm:$0xff]
  %v45 = vld [vmem:[%s1 + $0x18] sm:$0xff]
  %v46 = vld [vmem:[%s1 + $0x20] sm:$0xff]
  %v47 = vld [vmem:[%s1 + $0x28] sm:$0xff]
  %v48 = vld [vmem:[%s1 + $0x30] sm:$0xff]
  %v49 = vld [vmem:[%s1 + $0x38] sm:$0xff]
  %v50 = vld [vmem:[%s1 + $0x40] sm:$0xff]
  %v51 = vld [vmem:[%s1 + $0x48] sm:$0xff]
  %v52 = vld [vmem:[%s1 + $0x50] sm:$0xff]
  %v53 = vld [vmem:[%s1 + $0x58] sm:$0xff]
  %v54 = vld [vmem:[%s1 + $0x60] sm:$0xff]
  %v55 = vld [vmem:[%s1 + $0x68] sm:$0xff]
  %v56 = vld [vmem:[%s1 + $0x70] sm:$0xff]
  %v57 = vld [vmem:[%s1 + $0x78] sm:$0xff]
  %v58 = vld [vmem:[%s1 + $0x80] sm:$0xff]
  %v59 = vld [vmem:[%s1 + $0x88] sm:$0xff]
  %v60 = vld [vmem:[%s1 + $0x90] sm:$0xff]
  %v61 = vld [vmem:[%s1 + $0x98] sm:$0xff]
  %v62 = vld [vmem:[%s1 + $0xa0] sm:$0xff]
  %v63 = vld [vmem:[%s1 + $0xa8] sm:$0xff]
  %v64 = vld [vmem:[%s1 + $0xb0] sm:$0xff]
  %v65 = vld [vmem:[%s1 + $0xb8] sm:$0xff]
  %v66 = vld [vmem:[%s1 + $0xc0] sm:$0xff]
  %v67 = vld [vmem:[%s1 + $0xc8] sm:$0xff]
  %v68 = vld [vmem:[%s1 + $0xd0] sm:$0xff]
  %v69 = vld [vmem:[%s1 + $0xd8] sm:$0xff]
  %v70 = vld [vmem:[%s1 + $0xe0] sm:$0xff]
  %v71 = vld [vmem:[%s1 + $0xe8] sm:$0xff]
  %v72 = vld [vmem:[%s1 + $0xf0] sm:$0xff]
  %v73 = vld [vmem:[%s1 + $0xf8] sm:$0xff]
  %v74 = vld [vmem:[%s1 + $0x100] sm:$0xff]
  %v75 = vld [vmem:[%s1 + $0x108] sm:$0xff]
  %v76 = vld [vmem:[%s1 + $0x110] sm:$0xff]
  %v77 = vld [vmem:[%s1 + $0x118] sm:$0xff]
  %v78 = vld [vmem:[%s1 + $0x120] sm:$0xff]
  %v79 = vld [vmem:[%s1 + $0x128] sm:$0xff]
  %v80 = vld [vmem:[%s1 + $0x130] sm:$0xff]
  %v81 = vld [vmem:[%s1 + $0x138] sm:$0xff]
  %v82 = vld [vmem:[%s1 + $0x140] sm:$0xff]
  %v83 = vld [vmem:[%s1 + $0x148] sm:$0xff]
  %v84 = vld [vmem:[%s1 + $0x150] sm:$0xff]
  %v85 = vld [vmem:[%s1 + $0x158] sm:$0xff]
  %v86 = vld [vmem:[%s1 + $0x160] sm:$0xff]
  %v87 = vld [vmem:[%s1 + $0x168] sm:$0xff]
  %v88 = vld [vmem:[%s1 + $0x170] sm:$0xff]
  %v89 = vld [vmem:[%s1 + $0x178] sm:$0xff]
  %v90 = vld [vmem:[%s1 + $0x180] sm:$0xff]
  %v91 = vld [vmem:[%s1 + $0x188] sm:$0xff]
  %v92 = vld [vmem:[%s1 + $0x190] sm:$0xff]
  %v93 = vld [vmem:[%s1 + $0x198] sm:$0xff]
  %v94 = vld [vmem:[%s1 + $0x1a0] sm:$0xff]
  %v95 = vld [vmem:[%s1 + $0x1a8] sm:$0xff]
  %v96 = vld [vmem:[%s1 + $0x1b0] sm:$0xff]
  %v97 = vld [vmem:[%s1 + $0x1b8] sm:$0xff]
  %v98 = vld [vmem:[%s1 + $0x1c0] sm:$0xff]
  %v99 = vld [vmem:[%s1 + $0x1c8] sm:$0xff]
  %v100 = vld [vmem:[%s1 + $0x1d0] sm:$0xff]
  %v101 = vld [vmem:[%s1 + $0x1d8] sm:$0xff]
  %v102 = vld [vmem:[%s1 + $0x1e0] sm:$0xff]
  %v103 = vld [vmem:[%s1 + $0x1e8] sm:$0xff]
  %v104 = vld [vmem:[%s1 + $0x1f0] sm:$0xff]
  %v105 = vld [vmem:[%s1 + $0x1f8] sm:$0xff]
  %v106 = vld [vmem:[%s1 + $0x200] sm:$0xff]
  %v107 = vld [vmem:[%s1 + $0x208] sm:$0xff]
  %v108 = vld [vmem:[%s1 + $0x210] sm:$0xff]
  %v109 = vld [vmem:[%s1 + $0x218] sm:$0xff]
  %v110 = vld [vmem:[%s1 + $0x220] sm:$0xff]
  %v111 = vld [vmem:[%s1 + $0x228] sm:$0xff]
  %v112 = vld [vmem:[%s1 + $0x230] sm:$0xff]
  %v113 = vld [vmem:[%s1 + $0x238] sm:$0xff]
  %v114 = vld [vmem:[%s1 + $0x240] sm:$0xff]
  %v115 = vld [vmem:[%s1 + $0x248] sm:$0xff]
  %v116 = vld [vmem:[%s1 + $0x250] sm:$0xff]
  %v117 = vld [vmem:[%s1 + $0x258] sm:$0xff]
  %v118 = vld [vmem:[%s1 + $0x260] sm:$0xff]
  %v119 = vld [vmem:[%s1 + $0x268] sm:$0xff]
  %v120 = vld [vmem:[%s1 + $0x270] sm:$0xff]
  %v121 = vld [vmem:[%s1 + $0x278] sm:$0xff]
  %v122 = vld [vmem:[%s1 + $0x280] sm:$0xff]
  %v123 = vld [vmem:[%s1 + $0x288] sm:$0xff]
  %v124 = vld [vmem:[%s1 + $0x290] sm:$0xff]
  %v125 = vld [vmem:[%s1 + $0x298] sm:$0xff]
  %v126 = vld [vmem:[%s1 + $0x2a0] sm:$0xff]
  %v127 = vld [vmem:[%s1 + $0x2a8] sm:$0xff]
  %v128 = vld [vmem:[%s1 + $0x2b0] sm:$0xff]
  %v129 = vld [vmem:[%s1 + $0x2b8] sm:$0xff]
  %v130 = vld [vmem:[%s1 + $0x2c0] sm:$0xff]
  %v131 = vld [vmem:[%s1 + $0x2c8] sm:$0xff]
  %v132 = vld [vmem:[%s1 + $0x2d0] sm:$0xff]
  %v133 = vld [vmem:[%s1 + $0x2d8] sm:$0xff]
  %v134 = vld [vmem:[%s1 + $0x2e0] sm:$0xff]
  %v135 = vld [vmem:[%s1 + $0x2e8] sm:$0xff]
  %v136 = vld [vmem:[%s1 + $0x2f0] sm:$0xff]
  %v137 = vld [vmem:[%s1 + $0x2f8] sm:$0xff]
  %v138 = vld [vmem:[%s1 + $0x300] sm:$0xff]
  %v139 = vld [vmem:[%s1 + $0x308] sm:$0xff]
  %v140 = vld [vmem:[%s1 + $0x310] sm:$0xff]
  %v141 = vld [vmem:[%s1 + $0x318] sm:$0xff]
  %v142 = vld [vmem:[%s1 + $0x320] sm:$0xff]
  %v143 = vld [vmem:[%s1 + $0x328] sm:$0xff]
  %v144 = vld [vmem:[%s1 + $0x330] sm:$0xff]
  %v145 = vld [vmem:[%s1 + $0x338] sm:$0xff]
  %v146 = vld [vmem:[%s1 + $0x340] sm:$0xff]
  %v147 = vld [vmem:[%s1 + $0x348] sm:$0xff]
  %v148 = vld [vmem:[%s1 + $0x350] sm:$0xff]
  %v149 = vld [vmem:[%s1 + $0x358] sm:$0xff]
  %v150 = vld [vmem:[%s2] sm:$0x1]
  %v152 = vlaneseq
  %v153 = vshrl.u32 %v152, 7
  %v154 = vsub.s32 0, %v153
  %v155 = vrot.slane %v150, %v154
  %vm157 = vcmask 785408
  %v159 = vsel %vm157, %v20, 0
  %v162 = vsel %vm157, %v27, 0
  %v165 = vsel %vm157, %v34, 0
  %v168 = vsel %vm157, %v41, 0
  %170 = vmatprep.subr.mxu0 0.0
  %171 = vmatpush1.msra.mxu0 %v42
  %172 = vmatprep.subr.mxu0 0.0
  %173 = vmatpush1.msra.mxu0 %v43
  %174 = vmatprep.subr.mxu0 0.0
  %175 = vmatpush1.msra.mxu0 %v44
  %176 = vmatprep.subr.mxu0 0.0
  %177 = vmatpush1.msra.mxu0 %v45
  %178 = vmatprep.subr.mxu0 0.0
  %179 = vmatpush1.msra.mxu0 %v46
  %180 = vmatprep.subr.mxu0 0.0
  %181 = vmatpush1.msra.mxu0 %v47
  %182 = vmatprep.subr.mxu0 0.0
  %183 = vmatpush1.msra.mxu0 %v48
  %184 = vmatprep.subr.mxu0 0.0
  %185 = vmatpush1.msra.mxu0 %v49
  %186 = vmatprep.subr.mxu0 0.0
  %187 = vmatpush1.msra.mxu0 %v50
  %188 = vmatprep.subr.mxu0 0.0
  %189 = vmatpush1.msra.mxu0 %v51
  %190 = vmatprep.subr.mxu0 0.0
  %191 = vmatpush1.msra.mxu0 %v52
  %192 = vmatprep.subr.mxu0 0.0
  %193 = vmatpush1.msra.mxu0 %v53
  %194 = vmatprep.subr.mxu0 0.0
  %195 = vmatpush1.msra.mxu0 %v54
  %196 = vmatprep.subr.mxu0 0.0
  %197 = vmatpush1.msra.mxu0 %v55
  %198 = vmatprep.subr.mxu0 0.0
  %199 = vmatpush1.msra.mxu0 %v56
  %200 = vmatprep.subr.mxu0 0.0
  %201 = vmatpush1.msra.mxu0 %v57
  %202 = vmatprep.subr.mxu0 0.0
  %203 = vmatpush1.msra.mxu0 %v58
  %204 = vmatprep.subr.mxu0 0.0
  %205 = vmatpush1.msra.mxu0 %v59
  %206 = vmatprep.subr.mxu0 0.0
  %207 = vmatpush1.msra.mxu0 %v60
  %208 = vmatprep.subr.mxu0 0.0
  %209 = vmatpush1.msra.mxu0 %v61
  %210 = vmatprep.subr.mxu0 0.0
  %211 = vmatpush1.msra.mxu0 %v62
  %212 = vmatprep.subr.mxu0 0.0
  %213 = vmatpush1.msra.mxu0 %v63
  %214 = vmatprep.subr.mxu0 0.0
  %215 = vmatpush1.msra.mxu0 %v64
  %216 = vmatprep.subr.mxu0 0.0
  %217 = vmatpush1.msra.mxu0 %v65
  %218 = vmatprep.subr.mxu0 0.0
  %219 = vmatpush1.msra.mxu0 %v66
  %220 = vmatprep.subr.mxu0 0.0
  %221 = vmatpush1.msra.mxu0 %v67
  %222 = vmatprep.subr.mxu0 0.0
  %223 = vmatpush1.msra.mxu0 %v68
  %224 = vmatprep.subr.mxu0 0.0
  %225 = vmatpush1.msra.mxu0 %v69
  %226 = vmatprep.subr.mxu0 0.0
  %227 = vmatpush1.msra.mxu0 %v70
  %228 = vmatprep.subr.mxu0 0.0
  %229 = vmatpush1.msra.mxu0 %v71
  %230 = vmatprep.subr.mxu0 0.0
  %231 = vmatpush1.msra.mxu0 %v72
  %232 = vmatprep.subr.mxu0 0.0
  %233 = vmatpush1.msra.mxu0 %v73
  %234 = vmatprep.mubr.f32.mxu0 %v15
  %235 = vmatmul.mubr.f32.gmra.mrb[0].mxu0 %v14
  %v236 = vpop.f32.mrb[0].mxu0
  %v237 = vadd.f32 %v155, %v236
  %v238 = vpop.f32.mrb[0].mxu0
  %239 = vmatprep.mubr.f32.mxu0 %v22
  %240 = vmatmul.mubr.f32.gmra.mrb[0].mxu0 %v21
  %v241 = vpop.f32.mrb[0].mxu0
  %v242 = vadd.f32 %v155, %v241
  %v243 = vpop.f32.mrb[0].mxu0
  %244 = vmatprep.mubr.f32.mxu0 %v29
  %245 = vmatmul.mubr.f32.gmra.mrb[0].mxu0 %v28
  %v246 = vpop.f32.mrb[0].mxu0
  %v247 = vadd.f32 %v155, %v246
  %v248 = vpop.f32.mrb[0].mxu0
  %249 = vmatprep.mubr.f32.mxu0 %v36
  %250 = vmatmul.mubr.f32.gmra.mrb[0].mxu0 %v35
  %v251 = vpop.f32.mrb[0].mxu0
  %v252 = vadd.f32 %v155, %v251
  %v253 = vpop.f32.mrb[0].mxu0
  %254 = vdwg.mxu0
  %255 = vmatprep.subr.mxu0 0.0
  %256 = vmatpush1.msra.mxu0 %v74
  %257 = vmatprep.subr.mxu0 0.0
  %258 = vmatpush1.msra.mxu0 %v75
  %259 = vmatprep.subr.mxu0 0.0
  %260 = vmatpush1.msra.mxu0 %v76
  %261 = vmatprep.subr.mxu0 0.0
  %262 = vmatpush1.msra.mxu0 %v77
  %263 = vmatprep.subr.mxu0 0.0
  %264 = vmatpush1.msra.mxu0 %v78
  %265 = vmatprep.subr.mxu0 0.0
  %266 = vmatpush1.msra.mxu0 %v79
  %267 = vmatprep.subr.mxu0 0.0
  %268 = vmatpush1.msra.mxu0 %v80
  %269 = vmatprep.subr.mxu0 0.0
  %270 = vmatpush1.msra.mxu0 %v81
  %271 = vmatprep.subr.mxu0 0.0
  %272 = vmatpush1.msra.mxu0 %v82
  %273 = vmatprep.subr.mxu0 0.0
  %274 = vmatpush1.msra.mxu0 %v83
  %275 = vmatprep.subr.mxu0 0.0
  %276 = vmatpush1.msra.mxu0 %v84
  %277 = vmatprep.subr.mxu0 0.0
  %278 = vmatpush1.msra.mxu0 %v85
  %279 = vmatprep.subr.mxu0 0.0
  %280 = vmatpush1.msra.mxu0 %v86
  %281 = vmatprep.subr.mxu0 0.0
  %282 = vmatpush1.msra.mxu0 %v87
  %283 = vmatprep.subr.mxu0 0.0
  %284 = vmatpush1.msra.mxu0 %v88
  %285 = vmatprep.subr.mxu0 0.0
  %286 = vmatpush1.msra.mxu0 %v89
  %287 = vmatprep.subr.mxu0 0.0
  %288 = vmatpush1.msra.mxu0 %v90
  %289 = vmatprep.subr.mxu0 0.0
  %290 = vmatpush1.msra.mxu0 %v91
  %291 = vmatprep.subr.mxu0 0.0
  %292 = vmatpush1.msra.mxu0 %v92
  %293 = vmatprep.subr.mxu0 0.0
  %294 = vmatpush1.msra.mxu0 %v93
  %295 = vmatprep.subr.mxu0 0.0
  %296 = vmatpush1.msra.mxu0 %v94
  %297 = vmatprep.subr.mxu0 0.0
  %298 = vmatpush1.msra.mxu0 %v95
  %299 = vmatprep.subr.mxu0 0.0
  %300 = vmatpush1.msra.mxu0 %v96
  %301 = vmatprep.subr.mxu0 0.0
  %302 = vmatpush1.msra.mxu0 %v97
  %303 = vmatprep.subr.mxu0 0.0
  %304 = vmatpush1.msra.mxu0 %v98
  %305 = vmatprep.subr.mxu0 0.0
  %306 = vmatpush1.msra.mxu0 %v99
  %307 = vmatprep.subr.mxu0 0.0
  %308 = vmatpush1.msra.mxu0 %v100
  %309 = vmatprep.subr.mxu0 0.0
  %310 = vmatpush1.msra.mxu0 %v101
  %311 = vmatprep.subr.mxu0 0.0
  %312 = vmatpush1.msra.mxu0 %v102
  %313 = vmatprep.subr.mxu0 0.0
  %314 = vmatpush1.msra.mxu0 %v103
  %315 = vmatprep.subr.mxu0 0.0
  %316 = vmatpush1.msra.mxu0 %v104
  %317 = vmatprep.subr.mxu0 0.0
  %318 = vmatpush1.msra.mxu0 %v105
  %319 = vmatprep.mubr.f32.mxu0 %v17
  %320 = vmatmul.mubr.f32.gmra.mrb[0].mxu0 %v16
  %v321 = vpop.f32.mrb[0].mxu0
  %v322 = vadd.f32 %v237, %v321
  %v323 = vpop.f32.mrb[0].mxu0
  %324 = vmatprep.mubr.f32.mxu0 %v24
  %325 = vmatmul.mubr.f32.gmra.mrb[0].mxu0 %v23
  %v326 = vpop.f32.mrb[0].mxu0
  %v327 = vadd.f32 %v242, %v326
  %v328 = vpop.f32.mrb[0].mxu0
  %329 = vmatprep.mubr.f32.mxu0 %v31
  %330 = vmatmul.mubr.f32.gmra.mrb[0].mxu0 %v30
  %v331 = vpop.f32.mrb[0].mxu0
  %v332 = vadd.f32 %v247, %v331
  %v333 = vpop.f32.mrb[0].mxu0
  %334 = vmatprep.mubr.f32.mxu0 %v38
  %335 = vmatmul.mubr.f32.gmra.mrb[0].mxu0 %v37
  %v336 = vpop.f32.mrb[0].mxu0
  %v337 = vadd.f32 %v252, %v336
  %v338 = vpop.f32.mrb[0].mxu0
  %339 = vdwg.mxu0
  %340 = vmatprep.subr.mxu0 0.0
  %341 = vmatpush1.msra.mxu0 %v106
  %342 = vmatprep.subr.mxu0 0.0
  %343 = vmatpush1.msra.mxu0 %v107
  %344 = vmatprep.subr.mxu0 0.0
  %345 = vmatpush1.msra.mxu0 %v108
  %346 = vmatprep.subr.mxu0 0.0
  %347 = vmatpush1.msra.mxu0 %v109
  %348 = vmatprep.subr.mxu0 0.0
  %349 = vmatpush1.msra.mxu0 %v110
  %350 = vmatprep.subr.mxu0 0.0
  %351 = vmatpush1.msra.mxu0 %v111
  %352 = vmatprep.subr.mxu0 0.0
  %353 = vmatpush1.msra.mxu0 %v112
  %354 = vmatprep.subr.mxu0 0.0
  %355 = vmatpush1.msra.mxu0 %v113
  %356 = vmatprep.subr.mxu0 0.0
  %357 = vmatpush1.msra.mxu0 %v114
  %358 = vmatprep.subr.mxu0 0.0
  %359 = vmatpush1.msra.mxu0 %v115
  %360 = vmatprep.subr.mxu0 0.0
  %361 = vmatpush1.msra.mxu0 %v116
  %362 = vmatprep.subr.mxu0 0.0
  %363 = vmatpush1.msra.mxu0 %v117
  %364 = vmatprep.subr.mxu0 0.0
  %365 = vmatpush1.msra.mxu0 %v118
  %366 = vmatprep.subr.mxu0 0.0
  %367 = vmatpush1.msra.mxu0 %v119
  %368 = vmatprep.subr.mxu0 0.0
  %369 = vmatpush1.msra.mxu0 %v120
  %370 = vmatprep.subr.mxu0 0.0
  %371 = vmatpush1.msra.mxu0 %v121
  %372 = vmatprep.subr.mxu0 0.0
  %373 = vmatpush1.msra.mxu0 %v122
  %374 = vmatprep.subr.mxu0 0.0
  %375 = vmatpush1.msra.mxu0 %v123
  %376 = vmatprep.subr.mxu0 0.0
  %377 = vmatpush1.msra.mxu0 %v124
  %378 = vmatprep.subr.mxu0 0.0
  %379 = vmatpush1.msra.mxu0 %v125
  %380 = vmatprep.subr.mxu0 0.0
  %381 = vmatpush1.msra.mxu0 %v126
  %382 = vmatprep.subr.mxu0 0.0
  %383 = vmatpush1.msra.mxu0 %v127
  %384 = vmatprep.subr.mxu0 0.0
  %385 = vmatpush1.msra.mxu0 %v128
  %386 = vmatprep.subr.mxu0 0.0
  %387 = vmatpush1.msra.mxu0 %v129
  %388 = vmatprep.subr.mxu0 0.0
  %389 = vmatpush1.msra.mxu0 %v130
  %390 = vmatprep.subr.mxu0 0.0
  %391 = vmatpush1.msra.mxu0 %v131
  %392 = vmatprep.subr.mxu0 0.0
  %393 = vmatpush1.msra.mxu0 %v132
  %394 = vmatprep.subr.mxu0 0.0
  %395 = vmatpush1.msra.mxu0 %v133
  %396 = vmatprep.subr.mxu0 0.0
  %397 = vmatpush1.msra.mxu0 %v134
  %398 = vmatprep.subr.mxu0 0.0
  %399 = vmatpush1.msra.mxu0 %v135
  %400 = vmatprep.subr.mxu0 0.0
  %401 = vmatpush1.msra.mxu0 %v136
  %402 = vmatprep.subr.mxu0 0.0
  %403 = vmatpush1.msra.mxu0 %v137
  %404 = vmatprep.mubr.f32.mxu0 %v19
  %405 = vmatmul.mubr.f32.gmra.mrb[0].mxu0 %v18
  %v406 = vpop.f32.mrb[0].mxu0
  %v407 = vadd.f32 %v322, %v406
  %v408 = vpop.f32.mrb[0].mxu0
  %409 = vmatprep.mubr.f32.mxu0 %v26
  %410 = vmatmul.mubr.f32.gmra.mrb[0].mxu0 %v25
  %v411 = vpop.f32.mrb[0].mxu0
  %v412 = vadd.f32 %v327, %v411
  %v413 = vpop.f32.mrb[0].mxu0
  %414 = vmatprep.mubr.f32.mxu0 %v33
  %415 = vmatmul.mubr.f32.gmra.mrb[0].mxu0 %v32
  %v416 = vpop.f32.mrb[0].mxu0
  %v417 = vadd.f32 %v332, %v416
  %v418 = vpop.f32.mrb[0].mxu0
  %419 = vmatprep.mubr.f32.mxu0 %v40
  %420 = vmatmul.mubr.f32.gmra.mrb[0].mxu0 %v39
  %v421 = vpop.f32.mrb[0].mxu0
  %v422 = vadd.f32 %v337, %v421
  %v423 = vpop.f32.mrb[0].mxu0
  %424 = vdwg.mxu0
  %425 = vmatprep.subr.mxu0 0.0
  %426 = vmatpush1.msra.mxu0 %v138
  %427 = vmatprep.subr.mxu0 0.0
  %428 = vmatpush1.msra.mxu0 %v139
  %429 = vmatprep.subr.mxu0 0.0
  %430 = vmatpush1.msra.mxu0 %v140
  %431 = vmatprep.subr.mxu0 0.0
  %432 = vmatpush1.msra.mxu0 %v141
  %433 = vmatprep.subr.mxu0 0.0
  %434 = vmatpush1.msra.mxu0 %v142
  %435 = vmatprep.subr.mxu0 0.0
  %436 = vmatpush1.msra.mxu0 %v143
  %437 = vmatprep.subr.mxu0 0.0
  %438 = vmatpush1.msra.mxu0 %v144
  %439 = vmatprep.subr.mxu0 0.0
  %440 = vmatpush1.msra.mxu0 %v145
  %441 = vmatprep.subr.mxu0 0.0
  %442 = vmatpush1.msra.mxu0 %v146
  %443 = vmatprep.subr.mxu0 0.0
  %444 = vmatpush1.msra.mxu0 %v147
  %445 = vmatprep.subr.mxu0 0.0
  %446 = vmatpush1.msra.mxu0 %v148
  %447 = vmatprep.subr.mxu0 0.0
  %448 = vmatpush1.msra.mxu0 %v149
  %449 = vmatprep.subr.mxu0 0.0
  %450 = vmatpush1.msra.mxu0 0.0
  %451 = vmatprep.subr.mxu0 0.0
  %452 = vmatpush1.msra.mxu0 0.0
  %453 = vmatprep.subr.mxu0 0.0
  %454 = vmatpush1.msra.mxu0 0.0
  %455 = vmatprep.subr.mxu0 0.0
  %456 = vmatpush1.msra.mxu0 0.0
  %457 = vmatprep.subr.mxu0 0.0
  %458 = vmatpush1.msra.mxu0 0.0
  %459 = vmatprep.subr.mxu0 0.0
  %460 = vmatpush1.msra.mxu0 0.0
  %461 = vmatprep.subr.mxu0 0.0
  %462 = vmatpush1.msra.mxu0 0.0
  %463 = vmatprep.subr.mxu0 0.0
  %464 = vmatpush1.msra.mxu0 0.0
  %465 = vmatprep.subr.mxu0 0.0
  %466 = vmatpush1.msra.mxu0 0.0
  %467 = vmatprep.subr.mxu0 0.0
  %468 = vmatpush1.msra.mxu0 0.0
  %469 = vmatprep.subr.mxu0 0.0
  %470 = vmatpush1.msra.mxu0 0.0
  %471 = vmatprep.subr.mxu0 0.0
  %472 = vmatpush1.msra.mxu0 0.0
  %473 = vmatprep.subr.mxu0 0.0
  %474 = vmatpush1.msra.mxu0 0.0
  %475 = vmatprep.subr.mxu0 0.0
  %476 = vmatpush1.msra.mxu0 0.0
  %477 = vmatprep.subr.mxu0 0.0
  %478 = vmatpush1.msra.mxu0 0.0
  %479 = vmatprep.subr.mxu0 0.0
  %480 = vmatpush1.msra.mxu0 0.0
  %481 = vmatprep.subr.mxu0 0.0
  %482 = vmatpush1.msra.mxu0 0.0
  %483 = vmatprep.subr.mxu0 0.0
  %484 = vmatpush1.msra.mxu0 0.0
  %485 = vmatprep.subr.mxu0 0.0
  %486 = vmatpush1.msra.mxu0 0.0
  %487 = vmatprep.subr.mxu0 0.0
  %488 = vmatpush1.msra.mxu0 0.0
  %489 = vmatprep.mubr.f32.mxu0 0.0
  %490 = vmatmul.mubr.f32.gmra.mrb[0].mxu0 %v159
  %v491 = vpop.f32.mrb[0].mxu0
  %v492 = vadd.f32 %v407, %v491
  %v493 = vpop.f32.mrb[0].mxu0
  %494 = vmatprep.mubr.f32.mxu0 0.0
  %495 = vmatmul.mubr.f32.gmra.mrb[0].mxu0 %v162
  %v496 = vpop.f32.mrb[0].mxu0
  %v497 = vadd.f32 %v412, %v496
  %v498 = vpop.f32.mrb[0].mxu0
  %499 = vmatprep.mubr.f32.mxu0 0.0
  %500 = vmatmul.mubr.f32.gmra.mrb[0].mxu0 %v165
  %v501 = vpop.f32.mrb[0].mxu0
  %v502 = vadd.f32 %v417, %v501
  %v503 = vpop.f32.mrb[0].mxu0
  %504 = vmatprep.mubr.f32.mxu0 0.0
  %505 = vmatmul.mubr.f32.gmra.mrb[0].mxu0 %v168
  %v506 = vpop.f32.mrb[0].mxu0
  %v507 = vadd.f32 %v422, %v506
  %v508 = vpop.f32.mrb[0].mxu0
  %509 = vdwg.mxu0
  %vm510 = vcmp.ge.f32.partialorder %v492, 0.0
  %vm511 = vcmp.ge.f32.partialorder %v497, 0.0
  %vm512 = vcmp.ge.f32.partialorder %v502, 0.0
  %vm513 = vcmp.ge.f32.partialorder %v507, 0.0
  %v514 = vmul.f32 %v492, 0.1
  %v515 = vmul.f32 %v497, 0.1
  %v516 = vmul.f32 %v502, 0.1
  %v517 = vmul.f32 %v507, 0.1
  %v518 = vsel %vm510, %v492, %v514
  %v519 = vsel %vm511, %v497, %v515
  %v520 = vsel %vm512, %v502, %v516
  %v521 = vsel %vm513, %v507, %v517
  %522 = vst.msk [vmem:[%s3] sm:$0xff] %vm157, %v518
  %523 = vst.msk [vmem:[%s3 + $0x8] sm:$0xff] %vm157, %v519
  %524 = vst.msk [vmem:[%s3 + $0x10] sm:$0xff] %vm157, %v520
  %525 = vst.msk [vmem:[%s3 + $0x18] sm:$0xff] %vm157, %v521
  // Predicated region
  $region14: #{_lambda_.21} parent=0 // pred_check
    _
  $region15: #{_lambda_.21} parent=0 // pred_check_branch
    %527 = sbr.rel (0) target = $region17
  $region16: #{_lambda_.21} parent=0 // pred_region
    _
  $region17: #{_lambda_.21} parent=0 // pred_fallthru
    _
  // Predicated region
  $region18: #{_lambda_.21} parent=0 // pred_check
    _
  $region19: #{_lambda_.21} parent=0 // pred_check_branch
    %529 = sbr.rel (0) target = $region21
  $region20: #{_lambda_.21} parent=0 // pred_region
    _
  $region21: #{_lambda_.21} parent=0 // pred_fallthru
    _

// kernel: _lambda_.23
$region0: #{_lambda_.23}
  #allocation0 [shape = 'u32[]', space=smem, size = 0x4, offset = 0x4, fixed_abs, tag = 'smem constant byte address 0x4 - core index']
  #allocation1 [shape = 'u32[144,128]{1,0:T(1,128)}', space=vmem, size = 0x12000, scoped, tag = 'internal scratch']
  %s0 = inlined_call_operand.vmem [shape: f32[32,864], index: 0, kind: input, shape index: {}]
  %s1 = inlined_call_operand.vmem [shape: f32[864,96], index: 1, kind: input, shape index: {}]
  %s2 = inlined_call_operand.vmem [shape: f32[1,96], index: 2, kind: input, shape index: {}]
  %s3 = inlined_call_operand.hbm [shape: f32[32,96], index: 3, kind: output, shape index: {}]
  %s4 = sld [smem:[#allocation0]]
  $region22: #{_lambda_.23} parent=0
    _
  %s6 = ssub.s32 1, %s4
  %s7 = scalar_select 0, %s6, %s4
  $region1: #{_lambda_.23} parent=0
    #allocation2 [shape = 'u8[16384]{0}', space=vmem, size = 0x4000, scoped, tag = 'output window, operand 0, single buffered']
    #allocation3 [shape = 's32[1]{0}', space=sflag, size = 0x4, scoped, tag = 'scoped memory for _lambda_.23']
    %8 = vsyncpa [#allocation3], 0
    // Predicated region
    $region2: #{_lambda_.23} parent=1 // pred_check
      _
    $region3: #{_lambda_.23} parent=1 // pred_check_branch
      %10 = sbr.rel (0) target = $region5
    $region4: #{_lambda_.23} parent=1 // pred_region
      _
    $region5: #{_lambda_.23} parent=1 // pred_fallthru
      _
    // Predicated region
    $region6: #{_lambda_.23} parent=1 // pred_check
      _
    $region7: #{_lambda_.23} parent=1 // pred_check_branch
      %12 = sbr.rel (0) target = $region9
    $region8: #{_lambda_.23} parent=1 // pred_region
      _
    $region9: #{_lambda_.23} parent=1 // pred_fallthru
      _
    // Predicated region
    $region10: #{_lambda_.23} parent=1 // pred_check
      _
    $region11: #{_lambda_.23} parent=1 // pred_check_branch
      %14 = sbr.rel (0) target = $region13
    $region12: #{_lambda_.23} parent=1 // pred_region
      _
    $region13: #{_lambda_.23} parent=1 // pred_fallthru
      _
    %v15 = vld [vmem:[%s0] sm:$0xff]
    %v16 = vld [vmem:[%s0 + $0x8] sm:$0xff]
    %v17 = vld [vmem:[%s0 + $0x10] sm:$0xff]
    %v18 = vld [vmem:[%s0 + $0x18] sm:$0xff]
    %v19 = vld [vmem:[%s0 + $0x20] sm:$0xff]
    %v20 = vld [vmem:[%s0 + $0x28] sm:$0xff]
    %v21 = vld [vmem:[%s0 + $0x30] sm:$0xff]
    %v22 = vld [vmem:[%s0 + $0x38] sm:$0xff]
    %v23 = vld [vmem:[%s0 + $0x40] sm:$0xff]
    %v24 = vld [vmem:[%s0 + $0x48] sm:$0xff]
    %v25 = vld [vmem:[%s0 + $0x50] sm:$0xff]
    %v26 = vld [vmem:[%s0 + $0x58] sm:$0xff]
    %v27 = vld [vmem:[%s0 + $0x60] sm:$0xff]
    %v28 = vld [vmem:[%s0 + $0x68] sm:$0xff]
    %v29 = vld [vmem:[%s0 + $0x70] sm:$0xff]
    %v30 = vld [vmem:[%s0 + $0x78] sm:$0xff]
    %v31 = vld [vmem:[%s0 + $0x80] sm:$0xff]
    %v32 = vld [vmem:[%s0 + $0x88] sm:$0xff]
    %v33 = vld [vmem:[%s0 + $0x90] sm:$0xff]
    %v34 = vld [vmem:[%s0 + $0x98] sm:$0xff]
    %v35 = vld [vmem:[%s0 + $0xa0] sm:$0xff]
    %v36 = vld [vmem:[%s0 + $0xa8] sm:$0xff]
    %v37 = vld [vmem:[%s0 + $0xb0] sm:$0xff]
    %v38 = vld [vmem:[%s0 + $0xb8] sm:$0xff]
    %v39 = vld [vmem:[%s0 + $0xc0] sm:$0xff]
    %v40 = vld [vmem:[%s0 + $0xc8] sm:$0xff]
    %v41 = vld [vmem:[%s0 + $0xd0] sm:$0xff]
    %v42 = vld [vmem:[%s0 + $0xd8] sm:$0xff]
    %v43 = vld [vmem:[%s1] sm:$0xff]
    %v44 = vld [vmem:[%s1 + $0x8] sm:$0xff]
    %v45 = vld [vmem:[%s1 + $0x10] sm:$0xff]
    %v46 = vld [vmem:[%s1 + $0x18] sm:$0xff]
    %v47 = vld [vmem:[%s1 + $0x20] sm:$0xff]
    %v48 = vld [vmem:[%s1 + $0x28] sm:$0xff]
    %v49 = vld [vmem:[%s1 + $0x30] sm:$0xff]
    %v50 = vld [vmem:[%s1 + $0x38] sm:$0xff]
    %v51 = vld [vmem:[%s1 + $0x40] sm:$0xff]
    %v52 = vld [vmem:[%s1 + $0x48] sm:$0xff]
    %v53 = vld [vmem:[%s1 + $0x50] sm:$0xff]
    %v54 = vld [vmem:[%s1 + $0x58] sm:$0xff]
    %v55 = vld [vmem:[%s1 + $0x60] sm:$0xff]
    %v56 = vld [vmem:[%s1 + $0x68] sm:$0xff]
    %v57 = vld [vmem:[%s1 + $0x70] sm:$0xff]
    %v58 = vld [vmem:[%s1 + $0x78] sm:$0xff]
    %v59 = vld [vmem:[%s1 + $0x80] sm:$0xff]
    %v60 = vld [vmem:[%s1 + $0x88] sm:$0xff]
    %v61 = vld [vmem:[%s1 + $0x90] sm:$0xff]
    %v62 = vld [vmem:[%s1 + $0x98] sm:$0xff]
    %v63 = vld [vmem:[%s1 + $0xa0] sm:$0xff]
    %v64 = vld [vmem:[%s1 + $0xa8] sm:$0xff]
    %v65 = vld [vmem:[%s1 + $0xb0] sm:$0xff]
    %v66 = vld [vmem:[%s1 + $0xb8] sm:$0xff]
    %v67 = vld [vmem:[%s1 + $0xc0] sm:$0xff]
    %v68 = vld [vmem:[%s1 + $0xc8] sm:$0xff]
    %v69 = vld [vmem:[%s1 + $0xd0] sm:$0xff]
    %v70 = vld [vmem:[%s1 + $0xd8] sm:$0xff]
    %v71 = vld [vmem:[%s1 + $0xe0] sm:$0xff]
    %v72 = vld [vmem:[%s1 + $0xe8] sm:$0xff]
    %v73 = vld [vmem:[%s1 + $0xf0] sm:$0xff]
    %v74 = vld [vmem:[%s1 + $0xf8] sm:$0xff]
    %v75 = vld [vmem:[%s1 + $0x100] sm:$0xff]
    %v76 = vld [vmem:[%s1 + $0x108] sm:$0xff]
    %v77 = vld [vmem:[%s1 + $0x110] sm:$0xff]
    %v78 = vld [vmem:[%s1 + $0x118] sm:$0xff]
    %v79 = vld [vmem:[%s1 + $0x120] sm:$0xff]
    %v80 = vld [vmem:[%s1 + $0x128] sm:$0xff]
    %v81 = vld [vmem:[%s1 + $0x130] sm:$0xff]
    %v82 = vld [vmem:[%s1 + $0x138] sm:$0xff]
    %v83 = vld [vmem:[%s1 + $0x140] sm:$0xff]
    %v84 = vld [vmem:[%s1 + $0x148] sm:$0xff]
    %v85 = vld [vmem:[%s1 + $0x150] sm:$0xff]
    %v86 = vld [vmem:[%s1 + $0x158] sm:$0xff]
    %v87 = vld [vmem:[%s1 + $0x160] sm:$0xff]
    %v88 = vld [vmem:[%s1 + $0x168] sm:$0xff]
    %v89 = vld [vmem:[%s1 + $0x170] sm:$0xff]
    %v90 = vld [vmem:[%s1 + $0x178] sm:$0xff]
    %v91 = vld [vmem:[%s1 + $0x180] sm:$0xff]
    %v92 = vld [vmem:[%s1 + $0x188] sm:$0xff]
    %v93 = vld [vmem:[%s1 + $0x190] sm:$0xff]
    %v94 = vld [vmem:[%s1 + $0x198] sm:$0xff]
    %v95 = vld [vmem:[%s1 + $0x1a0] sm:$0xff]
    %v96 = vld [vmem:[%s1 + $0x1a8] sm:$0xff]
    %v97 = vld [vmem:[%s1 + $0x1b0] sm:$0xff]
    %v98 = vld [vmem:[%s1 + $0x1b8] sm:$0xff]
    %v99 = vld [vmem:[%s1 + $0x1c0] sm:$0xff]
    %v100 = vld [vmem:[%s1 + $0x1c8] sm:$0xff]
    %v101 = vld [vmem:[%s1 + $0x1d0] sm:$0xff]
    %v102 = vld [vmem:[%s1 + $0x1d8] sm:$0xff]
    %v103 = vld [vmem:[%s1 + $0x1e0] sm:$0xff]
    %v104 = vld [vmem:[%s1 + $0x1e8] sm:$0xff]
    %v105 = vld [vmem:[%s1 + $0x1f0] sm:$0xff]
    %v106 = vld [vmem:[%s1 + $0x1f8] sm:$0xff]
    %v107 = vld [vmem:[%s1 + $0x200] sm:$0xff]
    %v108 = vld [vmem:[%s1 + $0x208] sm:$0xff]
    %v109 = vld [vmem:[%s1 + $0x210] sm:$0xff]
    %v110 = vld [vmem:[%s1 + $0x218] sm:$0xff]
    %v111 = vld [vmem:[%s1 + $0x220] sm:$0xff]
    %v112 = vld [vmem:[%s1 + $0x228] sm:$0xff]
    %v113 = vld [vmem:[%s1 + $0x230] sm:$0xff]
    %v114 = vld [vmem:[%s1 + $0x238] sm:$0xff]
    %v115 = vld [vmem:[%s1 + $0x240] sm:$0xff]
    %v116 = vld [vmem:[%s1 + $0x248] sm:$0xff]
    %v117 = vld [vmem:[%s1 + $0x250] sm:$0xff]
    %v118 = vld [vmem:[%s1 + $0x258] sm:$0xff]
    %v119 = vld [vmem:[%s1 + $0x260] sm:$0xff]
    %v120 = vld [vmem:[%s1 + $0x268] sm:$0xff]
    %v121 = vld [vmem:[%s1 + $0x270] sm:$0xff]
    %v122 = vld [vmem:[%s1 + $0x278] sm:$0xff]
    %v123 = vld [vmem:[%s1 + $0x280] sm:$0xff]
    %v124 = vld [vmem:[%s1 + $0x288] sm:$0xff]
    %v125 = vld [vmem:[%s1 + $0x290] sm:$0xff]
    %v126 = vld [vmem:[%s1 + $0x298] sm:$0xff]
    %v127 = vld [vmem:[%s1 + $0x2a0] sm:$0xff]
    %v128 = vld [vmem:[%s1 + $0x2a8] sm:$0xff]
    %v129 = vld [vmem:[%s1 + $0x2b0] sm:$0xff]
    %v130 = vld [vmem:[%s1 + $0x2b8] sm:$0xff]
    %v131 = vld [vmem:[%s1 + $0x2c0] sm:$0xff]
    %v132 = vld [vmem:[%s1 + $0x2c8] sm:$0xff]
    %v133 = vld [vmem:[%s1 + $0x2d0] sm:$0xff]
    %v134 = vld [vmem:[%s1 + $0x2d8] sm:$0xff]
    %v135 = vld [vmem:[%s1 + $0x2e0] sm:$0xff]
    %v136 = vld [vmem:[%s1 + $0x2e8] sm:$0xff]
    %v137 = vld [vmem:[%s1 + $0x2f0] sm:$0xff]
    %v138 = vld [vmem:[%s1 + $0x2f8] sm:$0xff]
    %v139 = vld [vmem:[%s1 + $0x300] sm:$0xff]
    %v140 = vld [vmem:[%s1 + $0x308] sm:$0xff]
    %v141 = vld [vmem:[%s1 + $0x310] sm:$0xff]
    %v142 = vld [vmem:[%s1 + $0x318] sm:$0xff]
    %v143 = vld [vmem:[%s1 + $0x320] sm:$0xff]
    %v144 = vld [vmem:[%s1 + $0x328] sm:$0xff]
    %v145 = vld [vmem:[%s1 + $0x330] sm:$0xff]
    %v146 = vld [vmem:[%s1 + $0x338] sm:$0xff]
    %v147 = vld [vmem:[%s1 + $0x340] sm:$0xff]
    %v148 = vld [vmem:[%s1 + $0x348] sm:$0xff]
    %v149 = vld [vmem:[%s1 + $0x350] sm:$0xff]
    %v150 = vld [vmem:[%s1 + $0x358] sm:$0xff]
    %v151 = vld [vmem:[%s2] sm:$0x1]
    %v153 = vlaneseq
    %v154 = vshrl.u32 %v153, 7
    %v155 = vsub.s32 0, %v154
    %v156 = vrot.slane %v151, %v155
    %vm158 = vcmask 785408
    %v160 = vsel %vm158, %v21, 0
    %v163 = vsel %vm158, %v28, 0
    %v166 = vsel %vm158, %v35, 0
    %v169 = vsel %vm158, %v42, 0
    %171 = vmatprep.subr.mxu0 0.0
    %172 = vmatpush1.msra.mxu0 %v43
    %173 = vmatprep.subr.mxu0 0.0
    %174 = vmatpush1.msra.mxu0 %v44
    %175 = vmatprep.subr.mxu0 0.0
    %176 = vmatpush1.msra.mxu0 %v45
    %177 = vmatprep.subr.mxu0 0.0
    %178 = vmatpush1.msra.mxu0 %v46
    %179 = vmatprep.subr.mxu0 0.0
    %180 = vmatpush1.msra.mxu0 %v47
    %181 = vmatprep.subr.mxu0 0.0
    %182 = vmatpush1.msra.mxu0 %v48
    %183 = vmatprep.subr.mxu0 0.0
    %184 = vmatpush1.msra.mxu0 %v49
    %185 = vmatprep.subr.mxu0 0.0
    %186 = vmatpush1.msra.mxu0 %v50
    %187 = vmatprep.subr.mxu0 0.0
    %188 = vmatpush1.msra.mxu0 %v51
    %189 = vmatprep.subr.mxu0 0.0
    %190 = vmatpush1.msra.mxu0 %v52
    %191 = vmatprep.subr.mxu0 0.0
    %192 = vmatpush1.msra.mxu0 %v53
    %193 = vmatprep.subr.mxu0 0.0
    %194 = vmatpush1.msra.mxu0 %v54
    %195 = vmatprep.subr.mxu0 0.0
    %196 = vmatpush1.msra.mxu0 %v55
    %197 = vmatprep.subr.mxu0 0.0
    %198 = vmatpush1.msra.mxu0 %v56
    %199 = vmatprep.subr.mxu0 0.0
    %200 = vmatpush1.msra.mxu0 %v57
    %201 = vmatprep.subr.mxu0 0.0
    %202 = vmatpush1.msra.mxu0 %v58
    %203 = vmatprep.subr.mxu0 0.0
    %204 = vmatpush1.msra.mxu0 %v59
    %205 = vmatprep.subr.mxu0 0.0
    %206 = vmatpush1.msra.mxu0 %v60
    %207 = vmatprep.subr.mxu0 0.0
    %208 = vmatpush1.msra.mxu0 %v61
    %209 = vmatprep.subr.mxu0 0.0
    %210 = vmatpush1.msra.mxu0 %v62
    %211 = vmatprep.subr.mxu0 0.0
    %212 = vmatpush1.msra.mxu0 %v63
    %213 = vmatprep.subr.mxu0 0.0
    %214 = vmatpush1.msra.mxu0 %v64
    %215 = vmatprep.subr.mxu0 0.0
    %216 = vmatpush1.msra.mxu0 %v65
    %217 = vmatprep.subr.mxu0 0.0
    %218 = vmatpush1.msra.mxu0 %v66
    %219 = vmatprep.subr.mxu0 0.0
    %220 = vmatpush1.msra.mxu0 %v67
    %221 = vmatprep.subr.mxu0 0.0
    %222 = vmatpush1.msra.mxu0 %v68
    %223 = vmatprep.subr.mxu0 0.0
    %224 = vmatpush1.msra.mxu0 %v69
    %225 = vmatprep.subr.mxu0 0.0
    %226 = vmatpush1.msra.mxu0 %v70
    %227 = vmatprep.subr.mxu0 0.0
    %228 = vmatpush1.msra.mxu0 %v71
    %229 = vmatprep.subr.mxu0 0.0
    %230 = vmatpush1.msra.mxu0 %v72
    %231 = vmatprep.subr.mxu0 0.0
    %232 = vmatpush1.msra.mxu0 %v73
    %233 = vmatprep.subr.mxu0 0.0
    %234 = vmatpush1.msra.mxu0 %v74
    %235 = vmatprep.mubr.f32.mxu0 %v16
    %236 = vmatmul.mubr.f32.gmra.mrb[0].mxu0 %v15
    %v237 = vpop.f32.mrb[0].mxu0
    %v238 = vadd.f32 %v156, %v237
    %v239 = vpop.f32.mrb[0].mxu0
    %240 = vmatprep.mubr.f32.mxu0 %v23
    %241 = vmatmul.mubr.f32.gmra.mrb[0].mxu0 %v22
    %v242 = vpop.f32.mrb[0].mxu0
    %v243 = vadd.f32 %v156, %v242
    %v244 = vpop.f32.mrb[0].mxu0
    %245 = vmatprep.mubr.f32.mxu0 %v30
    %246 = vmatmul.mubr.f32.gmra.mrb[0].mxu0 %v29
    %v247 = vpop.f32.mrb[0].mxu0
    %v248 = vadd.f32 %v156, %v247
    %v249 = vpop.f32.mrb[0].mxu0
    %250 = vmatprep.mubr.f32.mxu0 %v37
    %251 = vmatmul.mubr.f32.gmra.mrb[0].mxu0 %v36
    %v252 = vpop.f32.mrb[0].mxu0
    %v253 = vadd.f32 %v156, %v252
    %v254 = vpop.f32.mrb[0].mxu0
    %255 = vdwg.mxu0
    %256 = vmatprep.subr.mxu0 0.0
    %257 = vmatpush1.msra.mxu0 %v75
    %258 = vmatprep.subr.mxu0 0.0
    %259 = vmatpush1.msra.mxu0 %v76
    %260 = vmatprep.subr.mxu0 0.0
    %261 = vmatpush1.msra.mxu0 %v77
    %262 = vmatprep.subr.mxu0 0.0
    %263 = vmatpush1.msra.mxu0 %v78
    %264 = vmatprep.subr.mxu0 0.0
    %265 = vmatpush1.msra.mxu0 %v79
    %266 = vmatprep.subr.mxu0 0.0
    %267 = vmatpush1.msra.mxu0 %v80
    %268 = vmatprep.subr.mxu0 0.0
    %269 = vmatpush1.msra.mxu0 %v81
    %270 = vmatprep.subr.mxu0 0.0
    %271 = vmatpush1.msra.mxu0 %v82
    %272 = vmatprep.subr.mxu0 0.0
    %273 = vmatpush1.msra.mxu0 %v83
    %274 = vmatprep.subr.mxu0 0.0
    %275 = vmatpush1.msra.mxu0 %v84
    %276 = vmatprep.subr.mxu0 0.0
    %277 = vmatpush1.msra.mxu0 %v85
    %278 = vmatprep.subr.mxu0 0.0
    %279 = vmatpush1.msra.mxu0 %v86
    %280 = vmatprep.subr.mxu0 0.0
    %281 = vmatpush1.msra.mxu0 %v87
    %282 = vmatprep.subr.mxu0 0.0
    %283 = vmatpush1.msra.mxu0 %v88
    %284 = vmatprep.subr.mxu0 0.0
    %285 = vmatpush1.msra.mxu0 %v89
    %286 = vmatprep.subr.mxu0 0.0
    %287 = vmatpush1.msra.mxu0 %v90
    %288 = vmatprep.subr.mxu0 0.0
    %289 = vmatpush1.msra.mxu0 %v91
    %290 = vmatprep.subr.mxu0 0.0
    %291 = vmatpush1.msra.mxu0 %v92
    %292 = vmatprep.subr.mxu0 0.0
    %293 = vmatpush1.msra.mxu0 %v93
    %294 = vmatprep.subr.mxu0 0.0
    %295 = vmatpush1.msra.mxu0 %v94
    %296 = vmatprep.subr.mxu0 0.0
    %297 = vmatpush1.msra.mxu0 %v95
    %298 = vmatprep.subr.mxu0 0.0
    %299 = vmatpush1.msra.mxu0 %v96
    %300 = vmatprep.subr.mxu0 0.0
    %301 = vmatpush1.msra.mxu0 %v97
    %302 = vmatprep.subr.mxu0 0.0
    %303 = vmatpush1.msra.mxu0 %v98
    %304 = vmatprep.subr.mxu0 0.0
    %305 = vmatpush1.msra.mxu0 %v99
    %306 = vmatprep.subr.mxu0 0.0
    %307 = vmatpush1.msra.mxu0 %v100
    %308 = vmatprep.subr.mxu0 0.0
    %309 = vmatpush1.msra.mxu0 %v101
    %310 = vmatprep.subr.mxu0 0.0
    %311 = vmatpush1.msra.mxu0 %v102
    %312 = vmatprep.subr.mxu0 0.0
    %313 = vmatpush1.msra.mxu0 %v103
    %314 = vmatprep.subr.mxu0 0.0
    %315 = vmatpush1.msra.mxu0 %v104
    %316 = vmatprep.subr.mxu0 0.0
    %317 = vmatpush1.msra.mxu0 %v105
    %318 = vmatprep.subr.mxu0 0.0
    %319 = vmatpush1.msra.mxu0 %v106
    %320 = vmatprep.mubr.f32.mxu0 %v18
    %321 = vmatmul.mubr.f32.gmra.mrb[0].mxu0 %v17
    %v322 = vpop.f32.mrb[0].mxu0
    %v323 = vadd.f32 %v238, %v322
    %v324 = vpop.f32.mrb[0].mxu0
    %325 = vmatprep.mubr.f32.mxu0 %v25
    %326 = vmatmul.mubr.f32.gmra.mrb[0].mxu0 %v24
    %v327 = vpop.f32.mrb[0].mxu0
    %v328 = vadd.f32 %v243, %v327
    %v329 = vpop.f32.mrb[0].mxu0
    %330 = vmatprep.mubr.f32.mxu0 %v32
    %331 = vmatmul.mubr.f32.gmra.mrb[0].mxu0 %v31
    %v332 = vpop.f32.mrb[0].mxu0
    %v333 = vadd.f32 %v248, %v332
    %v334 = vpop.f32.mrb[0].mxu0
    %335 = vmatprep.mubr.f32.mxu0 %v39
    %336 = vmatmul.mubr.f32.gmra.mrb[0].mxu0 %v38
    %v337 = vpop.f32.mrb[0].mxu0
    %v338 = vadd.f32 %v253, %v337
    %v339 = vpop.f32.mrb[0].mxu0
    %340 = vdwg.mxu0
    %341 = vmatprep.subr.mxu0 0.0
    %342 = vmatpush1.msra.mxu0 %v107
    %343 = vmatprep.subr.mxu0 0.0
    %344 = vmatpush1.msra.mxu0 %v108
    %345 = vmatprep.subr.mxu0 0.0
    %346 = vmatpush1.msra.mxu0 %v109
    %347 = vmatprep.subr.mxu0 0.0
    %348 = vmatpush1.msra.mxu0 %v110
    %349 = vmatprep.subr.mxu0 0.0
    %350 = vmatpush1.msra.mxu0 %v111
    %351 = vmatprep.subr.mxu0 0.0
    %352 = vmatpush1.msra.mxu0 %v112
    %353 = vmatprep.subr.mxu0 0.0
    %354 = vmatpush1.msra.mxu0 %v113
    %355 = vmatprep.subr.mxu0 0.0
    %356 = vmatpush1.msra.mxu0 %v114
    %357 = vmatprep.subr.mxu0 0.0
    %358 = vmatpush1.msra.mxu0 %v115
    %359 = vmatprep.subr.mxu0 0.0
    %360 = vmatpush1.msra.mxu0 %v116
    %361 = vmatprep.subr.mxu0 0.0
    %362 = vmatpush1.msra.mxu0 %v117
    %363 = vmatprep.subr.mxu0 0.0
    %364 = vmatpush1.msra.mxu0 %v118
    %365 = vmatprep.subr.mxu0 0.0
    %366 = vmatpush1.msra.mxu0 %v119
    %367 = vmatprep.subr.mxu0 0.0
    %368 = vmatpush1.msra.mxu0 %v120
    %369 = vmatprep.subr.mxu0 0.0
    %370 = vmatpush1.msra.mxu0 %v121
    %371 = vmatprep.subr.mxu0 0.0
    %372 = vmatpush1.msra.mxu0 %v122
    %373 = vmatprep.subr.mxu0 0.0
    %374 = vmatpush1.msra.mxu0 %v123
    %375 = vmatprep.subr.mxu0 0.0
    %376 = vmatpush1.msra.mxu0 %v124
    %377 = vmatprep.subr.mxu0 0.0
    %378 = vmatpush1.msra.mxu0 %v125
    %379 = vmatprep.subr.mxu0 0.0
    %380 = vmatpush1.msra.mxu0 %v126
    %381 = vmatprep.subr.mxu0 0.0
    %382 = vmatpush1.msra.mxu0 %v127
    %383 = vmatprep.subr.mxu0 0.0
    %384 = vmatpush1.msra.mxu0 %v128
    %385 = vmatprep.subr.mxu0 0.0
    %386 = vmatpush1.msra.mxu0 %v129
    %387 = vmatprep.subr.mxu0 0.0
    %388 = vmatpush1.msra.mxu0 %v130
    %389 = vmatprep.subr.mxu0 0.0
    %390 = vmatpush1.msra.mxu0 %v131
    %391 = vmatprep.subr.mxu0 0.0
    %392 = vmatpush1.msra.mxu0 %v132
    %393 = vmatprep.subr.mxu0 0.0
    %394 = vmatpush1.msra.mxu0 %v133
    %395 = vmatprep.subr.mxu0 0.0
    %396 = vmatpush1.msra.mxu0 %v134
    %397 = vmatprep.subr.mxu0 0.0
    %398 = vmatpush1.msra.mxu0 %v135
    %399 = vmatprep.subr.mxu0 0.0
    %400 = vmatpush1.msra.mxu0 %v136
    %401 = vmatprep.subr.mxu0 0.0
    %402 = vmatpush1.msra.mxu0 %v137
    %403 = vmatprep.subr.mxu0 0.0
    %404 = vmatpush1.msra.mxu0 %v138
    %405 = vmatprep.mubr.f32.mxu0 %v20
    %406 = vmatmul.mubr.f32.gmra.mrb[0].mxu0 %v19
    %v407 = vpop.f32.mrb[0].mxu0
    %v408 = vadd.f32 %v323, %v407
    %v409 = vpop.f32.mrb[0].mxu0
    %410 = vmatprep.mubr.f32.mxu0 %v27
    %411 = vmatmul.mubr.f32.gmra.mrb[0].mxu0 %v26
    %v412 = vpop.f32.mrb[0].mxu0
    %v413 = vadd.f32 %v328, %v412
    %v414 = vpop.f32.mrb[0].mxu0
    %415 = vmatprep.mubr.f32.mxu0 %v34
    %416 = vmatmul.mubr.f32.gmra.mrb[0].mxu0 %v33
    %v417 = vpop.f32.mrb[0].mxu0
    %v418 = vadd.f32 %v333, %v417
    %v419 = vpop.f32.mrb[0].mxu0
    %420 = vmatprep.mubr.f32.mxu0 %v41
    %421 = vmatmul.mubr.f32.gmra.mrb[0].mxu0 %v40
    %v422 = vpop.f32.mrb[0].mxu0
    %v423 = vadd.f32 %v338, %v422
    %v424 = vpop.f32.mrb[0].mxu0
    %425 = vdwg.mxu0
    %426 = vmatprep.subr.mxu0 0.0
    %427 = vmatpush1.msra.mxu0 %v139
    %428 = vmatprep.subr.mxu0 0.0
    %429 = vmatpush1.msra.mxu0 %v140
    %430 = vmatprep.subr.mxu0 0.0
    %431 = vmatpush1.msra.mxu0 %v141
    %432 = vmatprep.subr.mxu0 0.0
    %433 = vmatpush1.msra.mxu0 %v142
    %434 = vmatprep.subr.mxu0 0.0
    %435 = vmatpush1.msra.mxu0 %v143
    %436 = vmatprep.subr.mxu0 0.0
    %437 = vmatpush1.msra.mxu0 %v144
    %438 = vmatprep.subr.mxu0 0.0
    %439 = vmatpush1.msra.mxu0 %v145
    %440 = vmatprep.subr.mxu0 0.0
    %441 = vmatpush1.msra.mxu0 %v146
    %442 = vmatprep.subr.mxu0 0.0
    %443 = vmatpush1.msra.mxu0 %v147
    %444 = vmatprep.subr.mxu0 0.0
    %445 = vmatpush1.msra.mxu0 %v148
    %446 = vmatprep.subr.mxu0 0.0
    %447 = vmatpush1.msra.mxu0 %v149
    %448 = vmatprep.subr.mxu0 0.0
    %449 = vmatpush1.msra.mxu0 %v150
    %450 = vmatprep.subr.mxu0 0.0
    %451 = vmatpush1.msra.mxu0 0.0
    %452 = vmatprep.subr.mxu0 0.0
    %453 = vmatpush1.msra.mxu0 0.0
    %454 = vmatprep.subr.mxu0 0.0
    %455 = vmatpush1.msra.mxu0 0.0
    %456 = vmatprep.subr.mxu0 0.0
    %457 = vmatpush1.msra.mxu0 0.0
    %458 = vmatprep.subr.mxu0 0.0
    %459 = vmatpush1.msra.mxu0 0.0
    %460 = vmatprep.subr.mxu0 0.0
    %461 = vmatpush1.msra.mxu0 0.0
    %462 = vmatprep.subr.mxu0 0.0
    %463 = vmatpush1.msra.mxu0 0.0
    %464 = vmatprep.subr.mxu0 0.0
    %465 = vmatpush1.msra.mxu0 0.0
    %466 = vmatprep.subr.mxu0 0.0
    %467 = vmatpush1.msra.mxu0 0.0
    %468 = vmatprep.subr.mxu0 0.0
    %469 = vmatpush1.msra.mxu0 0.0
    %470 = vmatprep.subr.mxu0 0.0
    %471 = vmatpush1.msra.mxu0 0.0
    %472 = vmatprep.subr.mxu0 0.0
    %473 = vmatpush1.msra.mxu0 0.0
    %474 = vmatprep.subr.mxu0 0.0
    %475 = vmatpush1.msra.mxu0 0.0
    %476 = vmatprep.subr.mxu0 0.0
    %477 = vmatpush1.msra.mxu0 0.0
    %478 = vmatprep.subr.mxu0 0.0
    %479 = vmatpush1.msra.mxu0 0.0
    %480 = vmatprep.subr.mxu0 0.0
    %481 = vmatpush1.msra.mxu0 0.0
    %482 = vmatprep.subr.mxu0 0.0
    %483 = vmatpush1.msra.mxu0 0.0
    %484 = vmatprep.subr.mxu0 0.0
    %485 = vmatpush1.msra.mxu0 0.0
    %486 = vmatprep.subr.mxu0 0.0
    %487 = vmatpush1.msra.mxu0 0.0
    %488 = vmatprep.subr.mxu0 0.0
    %489 = vmatpush1.msra.mxu0 0.0
    %490 = vmatprep.mubr.f32.mxu0 0.0
    %491 = vmatmul.mubr.f32.gmra.mrb[0].mxu0 %v160
    %v492 = vpop.f32.mrb[0].mxu0
    %v493 = vadd.f32 %v408, %v492
    %v494 = vpop.f32.mrb[0].mxu0
    %495 = vmatprep.mubr.f32.mxu0 0.0
    %496 = vmatmul.mubr.f32.gmra.mrb[0].mxu0 %v163
    %v497 = vpop.f32.mrb[0].mxu0
    %v498 = vadd.f32 %v413, %v497
    %v499 = vpop.f32.mrb[0].mxu0
    %500 = vmatprep.mubr.f32.mxu0 0.0
    %501 = vmatmul.mubr.f32.gmra.mrb[0].mxu0 %v166
    %v502 = vpop.f32.mrb[0].mxu0
    %v503 = vadd.f32 %v418, %v502
    %v504 = vpop.f32.mrb[0].mxu0
    %505 = vmatprep.mubr.f32.mxu0 0.0
    %506 = vmatmul.mubr.f32.gmra.mrb[0].mxu0 %v169
    %v507 = vpop.f32.mrb[0].mxu0
    %v508 = vadd.f32 %v423, %v507
    %v509 = vpop.f32.mrb[0].mxu0
    %510 = vdwg.mxu0
    %vm511 = vcmp.ge.f32.partialorder %v493, 0.0
    %vm512 = vcmp.ge.f32.partialorder %v498, 0.0
    %vm513 = vcmp.ge.f32.partialorder %v503, 0.0
    %vm514 = vcmp.ge.f32.partialorder %v508, 0.0
    %v515 = vmul.f32 %v493, 0.1
    %v516 = vmul.f32 %v498, 0.1
    %v517 = vmul.f32 %v503, 0.1
    %v518 = vmul.f32 %v508, 0.1
    %v519 = vsel %vm511, %v493, %v515
    %v520 = vsel %vm512, %v498, %v516
    %v521 = vsel %vm513, %v503, %v517
    %v522 = vsel %vm514, %v508, %v518
    %523 = vst.msk [vmem:[#allocation2] sm:$0xff] %vm158, %v519
    %524 = vst.msk [vmem:[#allocation2 + $0x8] sm:$0xff] %vm158, %v520
    %525 = vst.msk [vmem:[#allocation2 + $0x10] sm:$0xff] %vm158, %v521
    %526 = vst.msk [vmem:[#allocation2 + $0x18] sm:$0xff] %vm158, %v522
    // Predicated region
    $region14: #{_lambda_.23} parent=1 // pred_check
      _
    $region15: #{_lambda_.23} parent=1 // pred_check_branch
      %528 = sbr.rel (0) target = $region17
    $region16: #{_lambda_.23} parent=1 // pred_region
      %s530 = ssub.s32 512, 512
      %531 = vsyncadd [#allocation3], %s530
      %s532 = sshll.u32 [#allocation2], 4
      %s533 = int_to_ptr.vmem [resolvable:$true] %s532
      %538 = dma.vmem_to_hbm [thread:$0]  %s533, 512, %s3, [#allocation3], 128, 128, 8
    $region17: #{_lambda_.23} parent=1 // pred_fallthru
      _
    // Predicated region
    $region18: #{_lambda_.23} parent=1 // pred_check
      _
    $region19: #{_lambda_.23} parent=1 // pred_check_branch
      %540 = sbr.rel (0) target = $region21
    $region20: #{_lambda_.23} parent=1 // pred_region
      %541 = dma.done [#allocation3], 512
    $region21: #{_lambda_.23} parent=1 // pred_fallthru
      _
    %542 = vsyncpa [#allocation3], 1

</llo_original>
